<compile_context>
chip_gen: v7x
topology: tpu7x:2x2x1
jax: 0.10.0
libtpu: 0.0.40
codegen_flags: <defaults>
</compile_context>

<pallas_src>
import jax
import jax.numpy as jnp
from jax.experimental import pallas as pl
from jax.experimental.pallas import tpu as pltpu

STATE_DIM = 24
ACTION_DIM = 4
IN_DIM = STATE_DIM + ACTION_DIM              # 28
H1, H2, H3, OUT = 400, 300, 300, 1           # hard-coded in the PyTorch module

# padded feature dims
IN_P = 32                                    # sa padded to 32 lanes (not 128)
H1P = 512                                    # layer-1 width per head (fused: 2*H1P)
H2P, H3P = 384, 384                          # keep 384 (do not pad to 512)
OUT_P = 128                                  # fused twin-Q output: lane 0 = q1, lane 1 = q2
BIAS_ROWS, BIAS_LANES = 8, 2 * H1P           # packed bias array (8, 1024)

NO_GRID_MAX_B = 128                          # <= this: single invocation, no grid
TILE_B_MAX = 512                             # max batch tile for the gridded path


def _rup(n, m):
    return ((n + m - 1) // m) * m


def _critic_kernel(sa_ref,
                   w15, w2, w3, w4, w6, w7, w8,
                   b_ref,
                   q_ref):
    """Twin-Q forward on one VMEM-resident batch tile.

    Weights are bf16; activations are cast to bf16 at each MXU input and
    accumulated in f32 (preferred_element_type). Biases stay f32 and are
    packed row-wise into a single (8, 1024) array."""
    sa = sa_ref[...].astype(jnp.bfloat16)
    b = b_ref[...]                                      # (8, 1024) f32

    def lin(x_bf16, w_ref, bias):
        return jnp.dot(x_bf16, w_ref[...],
                       preferred_element_type=jnp.float32) + bias

    # Fused first layer of both heads: [W1 | W5] -> (B, 2*H1P)
    hg = jnp.maximum(lin(sa, w15, b[0:1, :]), 0.0)
    h = hg[:, :H1P].astype(jnp.bfloat16)                # Q1 head (lane-aligned slice)
    g = hg[:, H1P:].astype(jnp.bfloat16)                # Q2 head

    # Q1 head
    h = jnp.maximum(lin(h, w2, b[1:2, :H2P]), 0.0).astype(jnp.bfloat16)
    h = jnp.maximum(lin(h, w3, b[2:3, :H3P]), 0.0).astype(jnp.bfloat16)

    # Q2 head
    g = jnp.maximum(lin(g, w6, b[3:4, :H2P]), 0.0).astype(jnp.bfloat16)
    g = jnp.maximum(lin(g, w7, b[4:5, :H3P]), 0.0).astype(jnp.bfloat16)

    # Fused output layer: w4 writes lane 0, w8 writes lane 1 -> one store stream.
    q_ref[...] = (jnp.dot(h, w4[...], preferred_element_type=jnp.float32)
                  + jnp.dot(g, w8[...], preferred_element_type=jnp.float32)
                  + b[5:6, :OUT_P])


def init_critic_params(key, state_dim=STATE_DIM, action_dim=ACTION_DIM):
    """Deterministic init matching PyTorch nn.Linear default (U[-1/sqrt(fan_in), +])."""
    io = [(state_dim + action_dim, H1), (H1, H2), (H2, H3), (H3, OUT)] * 2
    params = {}
    for i, (fan_in, fan_out) in enumerate(io, start=1):
        key, kw, kb = jax.random.split(key, 3)
        bound = 1.0 / float(fan_in) ** 0.5
        # stored in PyTorch convention: weight (out, in), bias (out,)
        params[f"w{i}"] = jax.random.uniform(kw, (fan_out, fan_in), jnp.float32, -bound, bound)
        params[f"b{i}"] = jax.random.uniform(kb, (fan_out,), jnp.float32, -bound, bound)
    return params


def prepare_critic_params(params):
    """One-time preprocessing: transpose to (in, out), zero-pad to padded dims,
    fuse layer 1 of both heads and the two output layers, pack biases into one
    f32 array, cast weights to bf16."""
    def padT(w, fi, fo, fip, fop, col_off=0):
        out = jnp.zeros((fip, fop), jnp.float32)
        return out.at[:fi, col_off:col_off + fo].set(w.T)

    # fused layer 1: lanes [0:H1P) = head 1, [H1P:2*H1P) = head 2
    w15 = jnp.zeros((IN_P, 2 * H1P), jnp.float32)
    w15 = w15.at[:IN_DIM, :H1].set(params["w1"].T)
    w15 = w15.at[:IN_DIM, H1P:H1P + H1].set(params["w5"].T)

    w2 = padT(params["w2"], H1, H2, H1P, H2P)
    w3 = padT(params["w3"], H2, H3, H2P, H3P)
    w6 = padT(params["w6"], H1, H2, H1P, H2P)
    w7 = padT(params["w7"], H2, H3, H2P, H3P)
    # fused output layer: q1 -> lane 0, q2 -> lane 1
    w4 = padT(params["w4"], H3, OUT, H3P, OUT_P, col_off=0)
    w8 = padT(params["w8"], H3, OUT, H3P, OUT_P, col_off=1)

    biases = jnp.zeros((BIAS_ROWS, BIAS_LANES), jnp.float32)
    biases = biases.at[0, :H1].set(params["b1"])
    biases = biases.at[0, H1P:H1P + H1].set(params["b5"])
    biases = biases.at[1, :H2].set(params["b2"])
    biases = biases.at[2, :H3].set(params["b3"])
    biases = biases.at[3, :H2].set(params["b6"])
    biases = biases.at[4, :H3].set(params["b7"])
    biases = biases.at[5, :OUT].set(params["b4"])
    biases = biases.at[5, OUT:2 * OUT].set(params["b8"])

    prepped = {
        "w15": w15.astype(jnp.bfloat16),
        "w2": w2.astype(jnp.bfloat16), "w3": w3.astype(jnp.bfloat16),
        "w4": w4.astype(jnp.bfloat16),
        "w6": w6.astype(jnp.bfloat16), "w7": w7.astype(jnp.bfloat16),
        "w8": w8.astype(jnp.bfloat16),
        "biases": biases,
    }
    return jax.tree_util.tree_map(jax.block_until_ready, prepped)


@jax.jit
def critic_forward(state, action, prepped):
    """Equivalent of Critic.forward(state, action) -> (q1, q2), each (B, 1)."""
    B = state.shape[0]
    sa = jnp.concatenate([state.astype(jnp.float32),
                          action.astype(jnp.float32)], axis=1)      # (B, 28)

    weight_args = [prepped["w15"], prepped["w2"], prepped["w3"], prepped["w4"],
                   prepped["w6"], prepped["w7"], prepped["w8"], prepped["biases"]]

    if B <= NO_GRID_MAX_B:
        # Inference-sized batch: single invocation, no grid -> whole arrays in
        # VMEM, no double-buffering, default VMEM limit (v7x safe).
        Bp = _rup(max(B, 1), 8)
        sa_p = jnp.pad(sa, ((0, Bp - B), (0, IN_P - IN_DIM)))        # (Bp, 32)
        q = pl.pallas_call(
            _critic_kernel,
            out_shape=jax.ShapeDtypeStruct((Bp, OUT_P), jnp.float32),
        )(sa_p, *weight_args)
    else:
        # Training-sized batch: tile the batch with at least 2 tiles so
        # "parallel" can split work across TensorCores on v7x. Tile size is
        # chosen so tiles divide the (minimally) padded batch exactly:
        # padding waste is < 8 rows per tile and padded rows are real zeros.
        n_tiles = max(2, pl.cdiv(B, TILE_B_MAX))
        tile_b = _rup(pl.cdiv(B, n_tiles), 8)
        Bp = n_tiles * tile_b
        sa_p = jnp.pad(sa, ((0, Bp - B), (0, IN_P - IN_DIM)))        # (Bp, 32)

        # Weights/biases: constant index_map -> VMEM-resident, never re-DMA'd
        # across grid steps. (pl.Buffered(1) would also drop the unused second
        # buffer, ~1.6 MB, but the total footprint is already << the scoped
        # VMEM limit on all generations, so default pipeline mode is kept.)
        w_specs = [pl.BlockSpec(a.shape, lambda b: (0, 0)) for a in weight_args]
        q = pl.pallas_call(
            _critic_kernel,
            out_shape=jax.ShapeDtypeStruct((Bp, OUT_P), jnp.float32),
            grid=(n_tiles,),
            in_specs=[pl.BlockSpec((tile_b, IN_P), lambda b: (b, 0))] + w_specs,
            out_specs=pl.BlockSpec((tile_b, OUT_P), lambda b: (b, 0)),
            compiler_params=pltpu.CompilerParams(
                dimension_semantics=("parallel",)),
        )(sa_p, *weight_args)

    return q[:B, 0:1], q[:B, 1:2]


def _critic_forward_ref(state, action, params):
    """Pure-JAX f32 reference reproducing the PyTorch forward exactly."""
    sa = jnp.concatenate([state, action], axis=1).astype(jnp.float32)

    def lin(x, i):
        return x @ params[f"w{i}"].T + params[f"b{i}"]

    q1 = jax.nn.relu(lin(sa, 1))
    q1 = jax.nn.relu(lin(q1, 2))
    q1 = jax.nn.relu(lin(q1, 3))
    q1 = lin(q1, 4)
    q2 = jax.nn.relu(lin(sa, 5))
    q2 = jax.nn.relu(lin(q2, 6))
    q2 = jax.nn.relu(lin(q2, 7))
    q2 = lin(q2, 8)
    return q1, q2


# TODO(synk): checkpoint save/load (nn_critic_td3.pth) and torch.device placement
# from the PyTorch module are host-side concerns with no Pallas equivalent; omitted.

if __name__ == "__main__":
    key = jax.random.PRNGKey(0)
    kp, ks, ka, ks2, ka2 = jax.random.split(key, 5)

    params = init_critic_params(kp)
    prepped = prepare_critic_params(params)   # one-time weight prep (padded, fused, bf16)

    # bf16 weights -> slightly looser tolerance vs. the f32 reference.
    TOL = dict(atol=5e-2, rtol=5e-2)

    # Small-batch (inference) path: no grid.
    batch = 2
    state = jax.random.normal(ks, (batch, STATE_DIM), jnp.float32)
    action = jax.random.uniform(ka, (batch, ACTION_DIM), jnp.float32, -1.0, 1.0)
    q1, q2 = critic_forward(state, action, prepped)
    q1 = jax.block_until_ready(q1)
    q2 = jax.block_until_ready(q2)
    q1_ref, q2_ref = _critic_forward_ref(state, action, params)
    assert q1.shape == (batch, 1) and q2.shape == (batch, 1)
    assert jnp.allclose(q1, q1_ref, **TOL)
    assert jnp.allclose(q2, q2_ref, **TOL)

    # Training-batch path: batch grid (2 parallel tiles), batch not a multiple
    # of 8 to exercise the minimal zero-row padding.
    batch2 = 300
    state2 = jax.random.normal(ks2, (batch2, STATE_DIM), jnp.float32)
    action2 = jax.random.uniform(ka2, (batch2, ACTION_DIM), jnp.float32, -1.0, 1.0)
    q1b, q2b = critic_forward(state2, action2, prepped)
    q1b = jax.block_until_ready(q1b)
    q2b = jax.block_until_ready(q2b)
    q1b_ref, q2b_ref = _critic_forward_ref(state2, action2, params)
    assert q1b.shape == (batch2, 1) and q2b.shape == (batch2, 1)
    assert jnp.allclose(q1b, q1b_ref, **TOL)
    assert jnp.allclose(q2b, q2b_ref, **TOL)

    print("KERNEL_OK")
</pallas_src>

<mosaic_0001>
module attributes {stable_mosaic.version = 11 : i64} {
  func.func @_critic_kernel(%arg0: memref<8x32xf32, #tpu.memory_space<vmem>>, %arg1: memref<32x1024xbf16, #tpu.memory_space<vmem>>, %arg2: memref<512x384xbf16, #tpu.memory_space<vmem>>, %arg3: memref<384x384xbf16, #tpu.memory_space<vmem>>, %arg4: memref<384x128xbf16, #tpu.memory_space<vmem>>, %arg5: memref<512x384xbf16, #tpu.memory_space<vmem>>, %arg6: memref<384x384xbf16, #tpu.memory_space<vmem>>, %arg7: memref<384x128xbf16, #tpu.memory_space<vmem>>, %arg8: memref<8x1024xf32, #tpu.memory_space<vmem>>, %arg9: memref<8x128xf32, #tpu.memory_space<vmem>>) attributes {dimension_semantics = [], scalar_prefetch = 0 : i64, scratch_operands = 0 : i64, tpu.core_type = #tpu.core_type<tc>} {
    %c0 = arith.constant 0 : index
    %c0_0 = arith.constant 0 : index
    %0 = vector.load %arg0[%c0, %c0_0] : memref<8x32xf32, #tpu.memory_space<vmem>>, vector<8x32xf32>
    %1 = arith.truncf %0 : vector<8x32xf32> to vector<8x32xbf16>
    %c0_1 = arith.constant 0 : index
    %c0_2 = arith.constant 0 : index
    %2 = vector.load %arg8[%c0_1, %c0_2] : memref<8x1024xf32, #tpu.memory_space<vmem>>, vector<8x1024xf32>
    %3 = vector.extract_strided_slice %2 {offsets = [0, 0], sizes = [1, 1024], strides = [1, 1]} : vector<8x1024xf32> to vector<1x1024xf32>
    %c0_3 = arith.constant 0 : index
    %c0_4 = arith.constant 0 : index
    %4 = vector.load %arg1[%c0_3, %c0_4] : memref<32x1024xbf16, #tpu.memory_space<vmem>>, vector<32x1024xbf16>
    %cst = arith.constant dense<0.000000e+00> : vector<8x1024xf32>
    %5 = tpu.matmul %1, %4, %cst {dimension_numbers = #tpu.dot_dimension_numbers<[1], [0], [0], [1], [0, 0, 1, 1], [], []>} : vector<8x32xbf16>, vector<32x1024xbf16>, vector<8x1024xf32> -> vector<8x1024xf32>
    %6 = vector.broadcast %3 : vector<1x1024xf32> to vector<8x1024xf32>
    %7 = arith.addf %5, %6 : vector<8x1024xf32>
    %cst_5 = arith.constant 0.000000e+00 : f32
    %8 = vector.broadcast %cst_5 : f32 to vector<8x1024xf32>
    %9 = arith.maximumf %7, %8 : vector<8x1024xf32>
    %10 = vector.extract_strided_slice %9 {offsets = [0, 0], sizes = [8, 512], strides = [1, 1]} : vector<8x1024xf32> to vector<8x512xf32>
    %11 = arith.truncf %10 : vector<8x512xf32> to vector<8x512xbf16>
    %12 = vector.extract_strided_slice %9 {offsets = [0, 512], sizes = [8, 512], strides = [1, 1]} : vector<8x1024xf32> to vector<8x512xf32>
    %13 = arith.truncf %12 : vector<8x512xf32> to vector<8x512xbf16>
    %14 = vector.extract_strided_slice %2 {offsets = [1, 0], sizes = [1, 384], strides = [1, 1]} : vector<8x1024xf32> to vector<1x384xf32>
    %c0_6 = arith.constant 0 : index
    %c0_7 = arith.constant 0 : index
    %15 = vector.load %arg2[%c0_6, %c0_7] : memref<512x384xbf16, #tpu.memory_space<vmem>>, vector<512x384xbf16>
    %cst_8 = arith.constant dense<0.000000e+00> : vector<8x384xf32>
    %16 = tpu.matmul %11, %15, %cst_8 {dimension_numbers = #tpu.dot_dimension_numbers<[1], [0], [0], [1], [0, 0, 1, 1], [], []>} : vector<8x512xbf16>, vector<512x384xbf16>, vector<8x384xf32> -> vector<8x384xf32>
    %17 = vector.broadcast %14 : vector<1x384xf32> to vector<8x384xf32>
    %18 = arith.addf %16, %17 : vector<8x384xf32>
    %cst_9 = arith.constant 0.000000e+00 : f32
    %19 = vector.broadcast %cst_9 : f32 to vector<8x384xf32>
    %20 = arith.maximumf %18, %19 : vector<8x384xf32>
    %21 = arith.truncf %20 : vector<8x384xf32> to vector<8x384xbf16>
    %22 = vector.extract_strided_slice %2 {offsets = [2, 0], sizes = [1, 384], strides = [1, 1]} : vector<8x1024xf32> to vector<1x384xf32>
    %c0_10 = arith.constant 0 : index
    %c0_11 = arith.constant 0 : index
    %23 = vector.load %arg3[%c0_10, %c0_11] : memref<384x384xbf16, #tpu.memory_space<vmem>>, vector<384x384xbf16>
    %cst_12 = arith.constant dense<0.000000e+00> : vector<8x384xf32>
    %24 = tpu.matmul %21, %23, %cst_12 {dimension_numbers = #tpu.dot_dimension_numbers<[1], [0], [0], [1], [0, 0, 1, 1], [], []>} : vector<8x384xbf16>, vector<384x384xbf16>, vector<8x384xf32> -> vector<8x384xf32>
    %25 = vector.broadcast %22 : vector<1x384xf32> to vector<8x384xf32>
    %26 = arith.addf %24, %25 : vector<8x384xf32>
    %cst_13 = arith.constant 0.000000e+00 : f32
    %27 = vector.broadcast %cst_13 : f32 to vector<8x384xf32>
    %28 = arith.maximumf %26, %27 : vector<8x384xf32>
    %29 = arith.truncf %28 : vector<8x384xf32> to vector<8x384xbf16>
    %30 = vector.extract_strided_slice %2 {offsets = [3, 0], sizes = [1, 384], strides = [1, 1]} : vector<8x1024xf32> to vector<1x384xf32>
    %c0_14 = arith.constant 0 : index
    %c0_15 = arith.constant 0 : index
    %31 = vector.load %arg5[%c0_14, %c0_15] : memref<512x384xbf16, #tpu.memory_space<vmem>>, vector<512x384xbf16>
    %cst_16 = arith.constant dense<0.000000e+00> : vector<8x384xf32>
    %32 = tpu.matmul %13, %31, %cst_16 {dimension_numbers = #tpu.dot_dimension_numbers<[1], [0], [0], [1], [0, 0, 1, 1], [], []>} : vector<8x512xbf16>, vector<512x384xbf16>, vector<8x384xf32> -> vector<8x384xf32>
    %33 = vector.broadcast %30 : vector<1x384xf32> to vector<8x384xf32>
    %34 = arith.addf %32, %33 : vector<8x384xf32>
    %cst_17 = arith.constant 0.000000e+00 : f32
    %35 = vector.broadcast %cst_17 : f32 to vector<8x384xf32>
    %36 = arith.maximumf %34, %35 : vector<8x384xf32>
    %37 = arith.truncf %36 : vector<8x384xf32> to vector<8x384xbf16>
    %38 = vector.extract_strided_slice %2 {offsets = [4, 0], sizes = [1, 384], strides = [1, 1]} : vector<8x1024xf32> to vector<1x384xf32>
    %c0_18 = arith.constant 0 : index
    %c0_19 = arith.constant 0 : index
    %39 = vector.load %arg6[%c0_18, %c0_19] : memref<384x384xbf16, #tpu.memory_space<vmem>>, vector<384x384xbf16>
    %cst_20 = arith.constant dense<0.000000e+00> : vector<8x384xf32>
    %40 = tpu.matmul %37, %39, %cst_20 {dimension_numbers = #tpu.dot_dimension_numbers<[1], [0], [0], [1], [0, 0, 1, 1], [], []>} : vector<8x384xbf16>, vector<384x384xbf16>, vector<8x384xf32> -> vector<8x384xf32>
    %41 = vector.broadcast %38 : vector<1x384xf32> to vector<8x384xf32>
    %42 = arith.addf %40, %41 : vector<8x384xf32>
    %cst_21 = arith.constant 0.000000e+00 : f32
    %43 = vector.broadcast %cst_21 : f32 to vector<8x384xf32>
    %44 = arith.maximumf %42, %43 : vector<8x384xf32>
    %45 = arith.truncf %44 : vector<8x384xf32> to vector<8x384xbf16>
    %c0_22 = arith.constant 0 : index
    %c0_23 = arith.constant 0 : index
    %46 = vector.load %arg4[%c0_22, %c0_23] : memref<384x128xbf16, #tpu.memory_space<vmem>>, vector<384x128xbf16>
    %cst_24 = arith.constant dense<0.000000e+00> : vector<8x128xf32>
    %47 = tpu.matmul %29, %46, %cst_24 {dimension_numbers = #tpu.dot_dimension_numbers<[1], [0], [0], [1], [0, 0, 1, 1], [], []>} : vector<8x384xbf16>, vector<384x128xbf16>, vector<8x128xf32> -> vector<8x128xf32>
    %c0_25 = arith.constant 0 : index
    %c0_26 = arith.constant 0 : index
    %48 = vector.load %arg7[%c0_25, %c0_26] : memref<384x128xbf16, #tpu.memory_space<vmem>>, vector<384x128xbf16>
    %cst_27 = arith.constant dense<0.000000e+00> : vector<8x128xf32>
    %49 = tpu.matmul %45, %48, %cst_27 {dimension_numbers = #tpu.dot_dimension_numbers<[1], [0], [0], [1], [0, 0, 1, 1], [], []>} : vector<8x384xbf16>, vector<384x128xbf16>, vector<8x128xf32> -> vector<8x128xf32>
    %50 = arith.addf %47, %49 : vector<8x128xf32>
    %51 = vector.extract_strided_slice %2 {offsets = [5, 0], sizes = [1, 128], strides = [1, 1]} : vector<8x1024xf32> to vector<1x128xf32>
    %52 = vector.broadcast %51 : vector<1x128xf32> to vector<8x128xf32>
    %53 = arith.addf %50, %52 : vector<8x128xf32>
    %c0_28 = arith.constant 0 : index
    %c0_29 = arith.constant 0 : index
    %54 = vector.load %arg9[%c0_28, %c0_29] : memref<8x128xf32, #tpu.memory_space<vmem>>, vector<8x128xf32>
    tpu.vector_store %arg9[%c0_28, %c0_29], %53 {strides = array<i32>} : memref<8x128xf32, #tpu.memory_space<vmem>>, vector<8x128xf32>,
    return
  }
}

</mosaic_0001>

<llo_original>
// kernel: critic_forward.1
$region0: #{critic_forward.1}
  #allocation0 [shape = 'u32[]', space=smem, size = 0x4, offset = 0x4, fixed_abs, tag = 'smem constant byte address 0x4 - core index']
  #allocation1 [shape = 'u32[144,128]{1,0:T(1,128)}', space=vmem, size = 0x12000, scoped, tag = 'internal scratch']
  %s0 = inlined_call_operand.vmem [shape: f32[8,32], index: 0, kind: input, shape index: {}]
  %s1 = inlined_call_operand.hbm [shape: bf16[32,1024], index: 1, kind: input, shape index: {}]
  %s2 = inlined_call_operand.hbm [shape: bf16[512,384], index: 2, kind: input, shape index: {}]
  %s3 = inlined_call_operand.hbm [shape: bf16[384,384], index: 3, kind: input, shape index: {}]
  %s4 = inlined_call_operand.hbm [shape: bf16[384,128], index: 4, kind: input, shape index: {}]
  %s5 = inlined_call_operand.hbm [shape: bf16[512,384], index: 5, kind: input, shape index: {}]
  %s6 = inlined_call_operand.hbm [shape: bf16[384,384], index: 6, kind: input, shape index: {}]
  %s7 = inlined_call_operand.hbm [shape: bf16[384,128], index: 7, kind: input, shape index: {}]
  %s8 = inlined_call_operand.hbm [shape: f32[8,1024], index: 8, kind: input, shape index: {}]
  %s9 = inlined_call_operand.vmem [shape: f32[8,128], index: 9, kind: output, shape index: {}]
  %s10 = sld [smem:[#allocation0]]
  $region78: #{critic_forward.1} parent=0
    _
  %s12 = ssub.s32 1, %s10
  %s13 = scalar_select 0, %s12, %s10
  $region1: #{critic_forward.1} parent=0
    #allocation2 [shape = 'u8[65536]{0}', space=vmem, size = 0x10000, scoped, tag = 'input window, operand 1, single buffered']
    #allocation3 [shape = 's32[1]{0}', space=sflag, size = 0x4, scoped, tag = 'scoped memory for critic_forward.1']
    #allocation4 [shape = 'u8[393216]{0}', space=vmem, size = 0x60000, scoped, tag = 'input window, operand 2, single buffered']
    #allocation5 [shape = 's32[1]{0}', space=sflag, size = 0x4, scoped, tag = 'scoped memory for critic_forward.1']
    #allocation6 [shape = 'u8[294912]{0}', space=vmem, size = 0x48000, scoped, tag = 'input window, operand 3, single buffered']
    #allocation7 [shape = 'u8[98304]{0}', space=vmem, size = 0x18000, scoped, tag = 'input window, operand 4, single buffered']
    #allocation8 [shape = 's32[1]{0}', space=sflag, size = 0x4, scoped, tag = 'scoped memory for critic_forward.1']
    #allocation9 [shape = 'u8[393216]{0}', space=vmem, size = 0x60000, scoped, tag = 'input window, operand 5, single buffered']
    #allocation10 [shape = 'u8[294912]{0}', space=vmem, size = 0x48000, scoped, tag = 'input window, operand 6, single buffered']
    #allocation11 [shape = 's32[1]{0}', space=sflag, size = 0x4, scoped, tag = 'scoped memory for critic_forward.1']
    #allocation12 [shape = 'u8[98304]{0}', space=vmem, size = 0x18000, scoped, tag = 'input window, operand 7, single buffered']
    #allocation13 [shape = 'u8[32768]{0}', space=vmem, size = 0x8000, scoped, tag = 'input window, operand 8, single buffered']
    #allocation14 [shape = 's32[1]{0}', space=sflag, size = 0x4, scoped, tag = 'scoped memory for critic_forward.1']
    %14 = vsyncpa [#allocation3], 0
    %15 = vsyncpa [#allocation5], 0
    %16 = vsyncpa [#allocation8], 0
    %17 = vsyncpa [#allocation11], 0
    %18 = vsyncpa [#allocation14], 0
    // Predicated region
    $region2: #{critic_forward.1} parent=1 // pred_check
      _
    $region3: #{critic_forward.1} parent=1 // pred_check_branch
      %20 = sbr.rel (0) target = $region5
    $region4: #{critic_forward.1} parent=1 // pred_region
      _
    $region5: #{critic_forward.1} parent=1 // pred_fallthru
      _
    // Predicated region
    $region6: #{critic_forward.1} parent=1 // pred_check
      _
    $region7: #{critic_forward.1} parent=1 // pred_check_branch
      %22 = sbr.rel (0) target = $region9
    $region8: #{critic_forward.1} parent=1 // pred_region
      %s24 = ssub.s32 2048, 2048
      %25 = vsyncadd [#allocation3], %s24
      %s26 = sshll.u32 [#allocation2], 4
      %s27 = int_to_ptr.vmem [resolvable:$true] %s26
      %32 = dma.hbm_to_vmem [thread:$0]  %s1, 2048, %s27, [#allocation3], 512, 512, 32
    $region9: #{critic_forward.1} parent=1 // pred_fallthru
      _
    // Predicated region
    $region10: #{critic_forward.1} parent=1 // pred_check
      _
    $region11: #{critic_forward.1} parent=1 // pred_check_branch
      %34 = sbr.rel (0) target = $region13
    $region12: #{critic_forward.1} parent=1 // pred_region
      %s36 = ssub.s32 12288, 12288
      %37 = vsyncadd [#allocation5], %s36
      %s38 = sshll.u32 [#allocation4], 4
      %s39 = int_to_ptr.vmem [resolvable:$true] %s38
      %44 = dma.hbm_to_vmem [thread:$0]  %s2, 12288, %s39, [#allocation5], 192, 192, 12
    $region13: #{critic_forward.1} parent=1 // pred_fallthru
      _
    // Predicated region
    $region14: #{critic_forward.1} parent=1 // pred_check
      _
    $region15: #{critic_forward.1} parent=1 // pred_check_branch
      %46 = sbr.rel (0) target = $region17
    $region16: #{critic_forward.1} parent=1 // pred_region
      %s48 = ssub.s32 9216, 9216
      %49 = vsyncadd [#allocation5], %s48
      %s50 = sshll.u32 [#allocation6], 4
      %s51 = int_to_ptr.vmem [resolvable:$true] %s50
      %56 = dma.hbm_to_vmem [thread:$0]  %s3, 9216, %s51, [#allocation5], 192, 192, 12
    $region17: #{critic_forward.1} parent=1 // pred_fallthru
      _
    // Predicated region
    $region18: #{critic_forward.1} parent=1 // pred_check
      _
    $region19: #{critic_forward.1} parent=1 // pred_check_branch
      %58 = sbr.rel (0) target = $region21
    $region20: #{critic_forward.1} parent=1 // pred_region
      %s60 = ssub.s32 3072, 3072
      %61 = vsyncadd [#allocation8], %s60
      %s62 = sshll.u32 [#allocation7], 4
      %s63 = int_to_ptr.vmem [resolvable:$true] %s62
      %68 = dma.hbm_to_vmem [thread:$0]  %s4, 3072, %s63, [#allocation8], 64, 64, 4
    $region21: #{critic_forward.1} parent=1 // pred_fallthru
      _
    // Predicated region
    $region22: #{critic_forward.1} parent=1 // pred_check
      _
    $region23: #{critic_forward.1} parent=1 // pred_check_branch
      %70 = sbr.rel (0) target = $region25
    $region24: #{critic_forward.1} parent=1 // pred_region
      %s72 = ssub.s32 12288, 12288
      %73 = vsyncadd [#allocation8], %s72
      %s74 = sshll.u32 [#allocation9], 4
      %s75 = int_to_ptr.vmem [resolvable:$true] %s74
      %80 = dma.hbm_to_vmem [thread:$0]  %s5, 12288, %s75, [#allocation8], 192, 192, 12
    $region25: #{critic_forward.1} parent=1 // pred_fallthru
      _
    // Predicated region
    $region26: #{critic_forward.1} parent=1 // pred_check
      _
    $region27: #{critic_forward.1} parent=1 // pred_check_branch
      %82 = sbr.rel (0) target = $region29
    $region28: #{critic_forward.1} parent=1 // pred_region
      %s84 = ssub.s32 9216, 9216
      %85 = vsyncadd [#allocation11], %s84
      %s86 = sshll.u32 [#allocation10], 4
      %s87 = int_to_ptr.vmem [resolvable:$true] %s86
      %92 = dma.hbm_to_vmem [thread:$0]  %s6, 9216, %s87, [#allocation11], 192, 192, 12
    $region29: #{critic_forward.1} parent=1 // pred_fallthru
      _
    // Predicated region
    $region30: #{critic_forward.1} parent=1 // pred_check
      _
    $region31: #{critic_forward.1} parent=1 // pred_check_branch
      %94 = sbr.rel (0) target = $region33
    $region32: #{critic_forward.1} parent=1 // pred_region
      %s96 = ssub.s32 3072, 3072
      %97 = vsyncadd [#allocation11], %s96
      %s98 = sshll.u32 [#allocation12], 4
      %s99 = int_to_ptr.vmem [resolvable:$true] %s98
      %104 = dma.hbm_to_vmem [thread:$0]  %s7, 3072, %s99, [#allocation11], 64, 64, 4
    $region33: #{critic_forward.1} parent=1 // pred_fallthru
      _
    // Predicated region
    $region34: #{critic_forward.1} parent=1 // pred_check
      _
    $region35: #{critic_forward.1} parent=1 // pred_check_branch
      %106 = sbr.rel (0) target = $region37
    $region36: #{critic_forward.1} parent=1 // pred_region
      %s108 = ssub.s32 1024, 1024
      %109 = vsyncadd [#allocation14], %s108
      %s111 = sshll.u32 [#allocation13], 4
      %s112 = int_to_ptr.vmem [resolvable:$true] %s111
      %114 = dma.hbm_to_vmem [thread:$0]  %s8, 1024, %s112, [#allocation14]
    $region37: #{critic_forward.1} parent=1 // pred_fallthru
      _
    // Predicated region
    $region38: #{critic_forward.1} parent=1 // pred_check
      _
    $region39: #{critic_forward.1} parent=1 // pred_check_branch
      %116 = sbr.rel (0) target = $region41
    $region40: #{critic_forward.1} parent=1 // pred_region
      %117 = dma.done [#allocation3], 2048
    $region41: #{critic_forward.1} parent=1 // pred_fallthru
      _
    // Predicated region
    $region42: #{critic_forward.1} parent=1 // pred_check
      _
    $region43: #{critic_forward.1} parent=1 // pred_check_branch
      %119 = sbr.rel (0) target = $region45
    $region44: #{critic_forward.1} parent=1 // pred_region
      %120 = dma.done [#allocation5], 12288
    $region45: #{critic_forward.1} parent=1 // pred_fallthru
      _
    // Predicated region
    $region46: #{critic_forward.1} parent=1 // pred_check
      _
    $region47: #{critic_forward.1} parent=1 // pred_check_branch
      %122 = sbr.rel (0) target = $region49
    $region48: #{critic_forward.1} parent=1 // pred_region
      %123 = dma.done [#allocation5], 9216
    $region49: #{critic_forward.1} parent=1 // pred_fallthru
      _
    // Predicated region
    $region50: #{critic_forward.1} parent=1 // pred_check
      _
    $region51: #{critic_forward.1} parent=1 // pred_check_branch
      %125 = sbr.rel (0) target = $region53
    $region52: #{critic_forward.1} parent=1 // pred_region
      %126 = dma.done [#allocation8], 3072
    $region53: #{critic_forward.1} parent=1 // pred_fallthru
      _
    // Predicated region
    $region54: #{critic_forward.1} parent=1 // pred_check
      _
    $region55: #{critic_forward.1} parent=1 // pred_check_branch
      %128 = sbr.rel (0) target = $region57
    $region56: #{critic_forward.1} parent=1 // pred_region
      %129 = dma.done [#allocation8], 12288
    $region57: #{critic_forward.1} parent=1 // pred_fallthru
      _
    // Predicated region
    $region58: #{critic_forward.1} parent=1 // pred_check
      _
    $region59: #{critic_forward.1} parent=1 // pred_check_branch
      %131 = sbr.rel (0) target = $region61
    $region60: #{critic_forward.1} parent=1 // pred_region
      %132 = dma.done [#allocation11], 9216
    $region61: #{critic_forward.1} parent=1 // pred_fallthru
      _
    // Predicated region
    $region62: #{critic_forward.1} parent=1 // pred_check
      _
    $region63: #{critic_forward.1} parent=1 // pred_check_branch
      %134 = sbr.rel (0) target = $region65
    $region64: #{critic_forward.1} parent=1 // pred_region
      %135 = dma.done [#allocation11], 3072
    $region65: #{critic_forward.1} parent=1 // pred_fallthru
      _
    // Predicated region
    $region66: #{critic_forward.1} parent=1 // pred_check
      _
    $region67: #{critic_forward.1} parent=1 // pred_check_branch
      %137 = sbr.rel (0) target = $region69
    $region68: #{critic_forward.1} parent=1 // pred_region
      %138 = dma.done [#allocation14], 1024
    $region69: #{critic_forward.1} parent=1 // pred_fallthru
      _
    %v140 = vld [vmem:[%s0] sm:$0xff]
    %v141 = vpack.c.bf16 %v140, %v140
    %v142 = vld [vmem:[#allocation13] sm:$0xff]
    %v143 = vld [vmem:[#allocation13 + $0x8] sm:$0xff]
    %v144 = vld [vmem:[#allocation13 + $0x10] sm:$0xff]
    %v145 = vld [vmem:[#allocation13 + $0x18] sm:$0xff]
    %v146 = vld [vmem:[#allocation13 + $0x20] sm:$0xff]
    %v147 = vld [vmem:[#allocation13 + $0x28] sm:$0xff]
    %v148 = vld [vmem:[#allocation13 + $0x30] sm:$0xff]
    %v149 = vld [vmem:[#allocation13 + $0x38] sm:$0xff]
    %v150 = vld [vmem:[#allocation2] sm:$0xff]
    %v151 = vld [vmem:[#allocation2 + $0x8] sm:$0xff]
    %v152 = vld [vmem:[#allocation2 + $0x10] sm:$0xff]
    %v153 = vld [vmem:[#allocation2 + $0x18] sm:$0xff]
    %v154 = vld [vmem:[#allocation2 + $0x20] sm:$0xff]
    %v155 = vld [vmem:[#allocation2 + $0x28] sm:$0xff]
    %v156 = vld [vmem:[#allocation2 + $0x30] sm:$0xff]
    %v157 = vld [vmem:[#allocation2 + $0x38] sm:$0xff]
    %v158 = vld [vmem:[#allocation2 + $0x40] sm:$0xff]
    %v159 = vld [vmem:[#allocation2 + $0x48] sm:$0xff]
    %v160 = vld [vmem:[#allocation2 + $0x50] sm:$0xff]
    %v161 = vld [vmem:[#allocation2 + $0x58] sm:$0xff]
    %v162 = vld [vmem:[#allocation2 + $0x60] sm:$0xff]
    %v163 = vld [vmem:[#allocation2 + $0x68] sm:$0xff]
    %v164 = vld [vmem:[#allocation2 + $0x70] sm:$0xff]
    %v165 = vld [vmem:[#allocation2 + $0x78] sm:$0xff]
    %v166 = vlaneseq
    %v167 = vshrl.u32 %v166, 7
    %v168 = vsub.s32 0, %v167
    %v169 = vrot.slane %v142, %v168
    %v170 = vlaneseq
    %v171 = vshrl.u32 %v170, 7
    %v172 = vsub.s32 0, %v171
    %v173 = vrot.slane %v143, %v172
    %v174 = vlaneseq
    %v175 = vshrl.u32 %v174, 7
    %v176 = vsub.s32 0, %v175
    %v177 = vrot.slane %v144, %v176
    %v178 = vlaneseq
    %v179 = vshrl.u32 %v178, 7
    %v180 = vsub.s32 0, %v179
    %v181 = vrot.slane %v145, %v180
    %v182 = vlaneseq
    %v183 = vshrl.u32 %v182, 7
    %v184 = vsub.s32 0, %v183
    %v185 = vrot.slane %v146, %v184
    %v186 = vlaneseq
    %v187 = vshrl.u32 %v186, 7
    %v188 = vsub.s32 0, %v187
    %v189 = vrot.slane %v147, %v188
    %v190 = vlaneseq
    %v191 = vshrl.u32 %v190, 7
    %v192 = vsub.s32 0, %v191
    %v193 = vrot.slane %v148, %v192
    %v194 = vlaneseq
    %v195 = vshrl.u32 %v194, 7
    %v196 = vsub.s32 0, %v195
    %v197 = vrot.slane %v149, %v196
    %v214 = vunpack.c.l.b16 %v150
    %v215 = vunpack.c.h.b16 %v150
    %v216 = vunpack.c.l.b16 %v151
    %v217 = vunpack.c.h.b16 %v151
    %v218 = vunpack.c.l.b16 %v152
    %v219 = vunpack.c.h.b16 %v152
    %v220 = vunpack.c.l.b16 %v153
    %v221 = vunpack.c.h.b16 %v153
    %v222 = vunpack.c.l.b16 %v154
    %v223 = vunpack.c.h.b16 %v154
    %v224 = vunpack.c.l.b16 %v155
    %v225 = vunpack.c.h.b16 %v155
    %v226 = vunpack.c.l.b16 %v156
    %v227 = vunpack.c.h.b16 %v156
    %v228 = vunpack.c.l.b16 %v157
    %v229 = vunpack.c.h.b16 %v157
    %v230 = vunpack.c.l.b16 %v158
    %v231 = vunpack.c.h.b16 %v158
    %v232 = vunpack.c.l.b16 %v159
    %v233 = vunpack.c.h.b16 %v159
    %v234 = vunpack.c.l.b16 %v160
    %v235 = vunpack.c.h.b16 %v160
    %v236 = vunpack.c.l.b16 %v161
    %v237 = vunpack.c.h.b16 %v161
    %v238 = vunpack.c.l.b16 %v162
    %v239 = vunpack.c.h.b16 %v162
    %v240 = vunpack.c.l.b16 %v163
    %v241 = vunpack.c.h.b16 %v163
    %v242 = vunpack.c.l.b16 %v164
    %v243 = vunpack.c.h.b16 %v164
    %v244 = vunpack.c.l.b16 %v165
    %v245 = vunpack.c.h.b16 %v165
    %v246 = vpack.c.b16 %v222, %v214
    %v247 = vpack.c.b16 %v223, %v215
    %v248 = vpack.c.b16 %v224, %v216
    %v249 = vpack.c.b16 %v225, %v217
    %v250 = vpack.c.b16 %v226, %v218
    %v251 = vpack.c.b16 %v227, %v219
    %v252 = vpack.c.b16 %v228, %v220
    %v253 = vpack.c.b16 %v229, %v221
    %v254 = vpack.c.b16 %v238, %v230
    %v255 = vpack.c.b16 %v239, %v231
    %v256 = vpack.c.b16 %v240, %v232
    %v257 = vpack.c.b16 %v241, %v233
    %v258 = vpack.c.b16 %v242, %v234
    %v259 = vpack.c.b16 %v243, %v235
    %v260 = vpack.c.b16 %v244, %v236
    %v261 = vpack.c.b16 %v245, %v237
    %vm278 = vcmask 261120
    %v280 = vsel %vm278, %v141, 0
    %282 = vmatprep.subr.bf16.mxu0 %v247
    %283 = vmatpush1.bf16.msra.mxu0 %v246
    %284 = vmatprep.subr.bf16.mxu0 %v255
    %285 = vmatpush1.bf16.msra.mxu0 %v254
    %286 = vmatprep.subr.bf16.mxu0 0
    %287 = vmatpush1.bf16.msra.mxu0 0
    %288 = vmatprep.subr.bf16.mxu0 0
    %289 = vmatpush1.bf16.msra.mxu0 0
    %290 = vmatprep.subr.bf16.mxu0 0
    %291 = vmatpush1.bf16.msra.mxu0 0
    %292 = vmatprep.subr.bf16.mxu0 0
    %293 = vmatpush1.bf16.msra.mxu0 0
    %294 = vmatprep.subr.bf16.mxu0 0
    %295 = vmatpush1.bf16.msra.mxu0 0
    %296 = vmatprep.subr.bf16.mxu0 0
    %297 = vmatpush1.bf16.msra.mxu0 0
    %298 = vmatprep.subr.bf16.mxu0 0
    %299 = vmatpush1.bf16.msra.mxu0 0
    %300 = vmatprep.subr.bf16.mxu0 0
    %301 = vmatpush1.bf16.msra.mxu0 0
    %302 = vmatprep.subr.bf16.mxu0 0
    %303 = vmatpush1.bf16.msra.mxu0 0
    %304 = vmatprep.subr.bf16.mxu0 0
    %305 = vmatpush1.bf16.msra.mxu0 0
    %306 = vmatprep.subr.bf16.mxu0 0
    %307 = vmatpush1.bf16.msra.mxu0 0
    %308 = vmatprep.subr.bf16.mxu0 0
    %309 = vmatpush1.bf16.msra.mxu0 0
    %310 = vmatprep.subr.bf16.mxu0 0
    %311 = vmatpush1.bf16.msra.mxu0 0
    %312 = vmatprep.subr.bf16.mxu0 0
    %313 = vmatpush1.bf16.msra.mxu0 0
    %314 = vmatprep.mubr.bf16.mxu0 0
    %315 = vmatmul.mubr.bf16.gmra.mrb[0].mxu0 %v280
    %v316 = vpop.f32.mrb[0].mxu0
    %v317 = vadd.f32 %v169, %v316
    %v318 = vpop.f32.mrb[0].mxu0
    %v319 = vadd.f32 %v173, %v318
    %v320 = vpop.f32.mrb[0].mxu0
    %v321 = vpop.f32.mrb[0].mxu0
    %322 = vdwg.mxu0
    %323 = vmatprep.subr.bf16.mxu0 %v249
    %324 = vmatpush1.bf16.msra.mxu0 %v248
    %325 = vmatprep.subr.bf16.mxu0 %v257
    %326 = vmatpush1.bf16.msra.mxu0 %v256
    %327 = vmatprep.subr.bf16.mxu0 0
    %328 = vmatpush1.bf16.msra.mxu0 0
    %329 = vmatprep.subr.bf16.mxu0 0
    %330 = vmatpush1.bf16.msra.mxu0 0
    %331 = vmatprep.subr.bf16.mxu0 0
    %332 = vmatpush1.bf16.msra.mxu0 0
    %333 = vmatprep.subr.bf16.mxu0 0
    %334 = vmatpush1.bf16.msra.mxu0 0
    %335 = vmatprep.subr.bf16.mxu0 0
    %336 = vmatpush1.bf16.msra.mxu0 0
    %337 = vmatprep.subr.bf16.mxu0 0
    %338 = vmatpush1.bf16.msra.mxu0 0
    %339 = vmatprep.subr.bf16.mxu0 0
    %340 = vmatpush1.bf16.msra.mxu0 0
    %341 = vmatprep.subr.bf16.mxu0 0
    %342 = vmatpush1.bf16.msra.mxu0 0
    %343 = vmatprep.subr.bf16.mxu0 0
    %344 = vmatpush1.bf16.msra.mxu0 0
    %345 = vmatprep.subr.bf16.mxu0 0
    %346 = vmatpush1.bf16.msra.mxu0 0
    %347 = vmatprep.subr.bf16.mxu0 0
    %348 = vmatpush1.bf16.msra.mxu0 0
    %349 = vmatprep.subr.bf16.mxu0 0
    %350 = vmatpush1.bf16.msra.mxu0 0
    %351 = vmatprep.subr.bf16.mxu0 0
    %352 = vmatpush1.bf16.msra.mxu0 0
    %353 = vmatprep.subr.bf16.mxu0 0
    %354 = vmatpush1.bf16.msra.mxu0 0
    %355 = vmatprep.mubr.bf16.mxu0 0
    %356 = vmatmul.mubr.bf16.gmra.mrb[0].mxu0 %v280
    %v357 = vpop.f32.mrb[0].mxu0
    %v358 = vadd.f32 %v177, %v357
    %v359 = vpop.f32.mrb[0].mxu0
    %v360 = vadd.f32 %v181, %v359
    %v361 = vpop.f32.mrb[0].mxu0
    %v362 = vpop.f32.mrb[0].mxu0
    %363 = vdwg.mxu0
    %364 = vmatprep.subr.bf16.mxu0 %v251
    %365 = vmatpush1.bf16.msra.mxu0 %v250
    %366 = vmatprep.subr.bf16.mxu0 %v259
    %367 = vmatpush1.bf16.msra.mxu0 %v258
    %368 = vmatprep.subr.bf16.mxu0 0
    %369 = vmatpush1.bf16.msra.mxu0 0
    %370 = vmatprep.subr.bf16.mxu0 0
    %371 = vmatpush1.bf16.msra.mxu0 0
    %372 = vmatprep.subr.bf16.mxu0 0
    %373 = vmatpush1.bf16.msra.mxu0 0
    %374 = vmatprep.subr.bf16.mxu0 0
    %375 = vmatpush1.bf16.msra.mxu0 0
    %376 = vmatprep.subr.bf16.mxu0 0
    %377 = vmatpush1.bf16.msra.mxu0 0
    %378 = vmatprep.subr.bf16.mxu0 0
    %379 = vmatpush1.bf16.msra.mxu0 0
    %380 = vmatprep.subr.bf16.mxu0 0
    %381 = vmatpush1.bf16.msra.mxu0 0
    %382 = vmatprep.subr.bf16.mxu0 0
    %383 = vmatpush1.bf16.msra.mxu0 0
    %384 = vmatprep.subr.bf16.mxu0 0
    %385 = vmatpush1.bf16.msra.mxu0 0
    %386 = vmatprep.subr.bf16.mxu0 0
    %387 = vmatpush1.bf16.msra.mxu0 0
    %388 = vmatprep.subr.bf16.mxu0 0
    %389 = vmatpush1.bf16.msra.mxu0 0
    %390 = vmatprep.subr.bf16.mxu0 0
    %391 = vmatpush1.bf16.msra.mxu0 0
    %392 = vmatprep.subr.bf16.mxu0 0
    %393 = vmatpush1.bf16.msra.mxu0 0
    %394 = vmatprep.subr.bf16.mxu0 0
    %395 = vmatpush1.bf16.msra.mxu0 0
    %396 = vmatprep.mubr.bf16.mxu0 0
    %397 = vmatmul.mubr.bf16.gmra.mrb[0].mxu0 %v280
    %v398 = vpop.f32.mrb[0].mxu0
    %v399 = vadd.f32 %v185, %v398
    %v400 = vpop.f32.mrb[0].mxu0
    %v401 = vadd.f32 %v189, %v400
    %v402 = vpop.f32.mrb[0].mxu0
    %v403 = vpop.f32.mrb[0].mxu0
    %404 = vdwg.mxu0
    %405 = vmatprep.subr.bf16.mxu0 %v253
    %406 = vmatpush1.bf16.msra.mxu0 %v252
    %407 = vmatprep.subr.bf16.mxu0 %v261
    %408 = vmatpush1.bf16.msra.mxu0 %v260
    %409 = vmatprep.subr.bf16.mxu0 0
    %410 = vmatpush1.bf16.msra.mxu0 0
    %411 = vmatprep.subr.bf16.mxu0 0
    %412 = vmatpush1.bf16.msra.mxu0 0
    %413 = vmatprep.subr.bf16.mxu0 0
    %414 = vmatpush1.bf16.msra.mxu0 0
    %415 = vmatprep.subr.bf16.mxu0 0
    %416 = vmatpush1.bf16.msra.mxu0 0
    %417 = vmatprep.subr.bf16.mxu0 0
    %418 = vmatpush1.bf16.msra.mxu0 0
    %419 = vmatprep.subr.bf16.mxu0 0
    %420 = vmatpush1.bf16.msra.mxu0 0
    %421 = vmatprep.subr.bf16.mxu0 0
    %422 = vmatpush1.bf16.msra.mxu0 0
    %423 = vmatprep.subr.bf16.mxu0 0
    %424 = vmatpush1.bf16.msra.mxu0 0
    %425 = vmatprep.subr.bf16.mxu0 0
    %426 = vmatpush1.bf16.msra.mxu0 0
    %427 = vmatprep.subr.bf16.mxu0 0
    %428 = vmatpush1.bf16.msra.mxu0 0
    %429 = vmatprep.subr.bf16.mxu0 0
    %430 = vmatpush1.bf16.msra.mxu0 0
    %431 = vmatprep.subr.bf16.mxu0 0
    %432 = vmatpush1.bf16.msra.mxu0 0
    %433 = vmatprep.subr.bf16.mxu0 0
    %434 = vmatpush1.bf16.msra.mxu0 0
    %435 = vmatprep.subr.bf16.mxu0 0
    %436 = vmatpush1.bf16.msra.mxu0 0
    %437 = vmatprep.mubr.bf16.mxu0 0
    %438 = vmatmul.mubr.bf16.gmra.mrb[0].mxu0 %v280
    %v439 = vpop.f32.mrb[0].mxu0
    %v440 = vadd.f32 %v193, %v439
    %v441 = vpop.f32.mrb[0].mxu0
    %v442 = vadd.f32 %v197, %v441
    %v443 = vpop.f32.mrb[0].mxu0
    %v444 = vpop.f32.mrb[0].mxu0
    %445 = vdwg.mxu0
    %v446 = vmax.f32 %v317, 0.0
    %v447 = vmax.f32 %v319, 0.0
    %v448 = vmax.f32 %v358, 0.0
    %v449 = vmax.f32 %v360, 0.0
    %v450 = vmax.f32 %v399, 0.0
    %v451 = vmax.f32 %v401, 0.0
    %v452 = vmax.f32 %v440, 0.0
    %v453 = vmax.f32 %v442, 0.0
    %v454 = vpack.c.bf16 %v446, %v446
    %v455 = vpack.c.bf16 %v447, %v447
    %v456 = vpack.c.bf16 %v448, %v448
    %v457 = vpack.c.bf16 %v449, %v449
    %v458 = vpack.c.bf16 %v450, %v450
    %v459 = vpack.c.bf16 %v451, %v451
    %v460 = vpack.c.bf16 %v452, %v452
    %v461 = vpack.c.bf16 %v453, %v453
    %v462 = vld [vmem:[#allocation4] sm:$0xff]
    %v463 = vld [vmem:[#allocation4 + $0x8] sm:$0xf]
    %v464 = vld [vmem:[#allocation4 + $0xc] sm:$0xff]
    %v465 = vld [vmem:[#allocation4 + $0x14] sm:$0xf]
    %v466 = vld [vmem:[#allocation4 + $0x18] sm:$0xff]
    %v467 = vld [vmem:[#allocation4 + $0x20] sm:$0xf]
    %v468 = vld [vmem:[#allocation4 + $0x24] sm:$0xff]
    %v469 = vld [vmem:[#allocation4 + $0x2c] sm:$0xf]
    %v470 = vld [vmem:[#allocation4 + $0x30] sm:$0xff]
    %v471 = vld [vmem:[#allocation4 + $0x38] sm:$0xf]
    %v472 = vld [vmem:[#allocation4 + $0x3c] sm:$0xff]
    %v473 = vld [vmem:[#allocation4 + $0x44] sm:$0xf]
    %v474 = vld [vmem:[#allocation4 + $0x48] sm:$0xff]
    %v475 = vld [vmem:[#allocation4 + $0x50] sm:$0xf]
    %v476 = vld [vmem:[#allocation4 + $0x54] sm:$0xff]
    %v477 = vld [vmem:[#allocation4 + $0x5c] sm:$0xf]
    %v478 = vld [vmem:[#allocation4 + $0x60] sm:$0xff]
    %v479 = vld [vmem:[#allocation4 + $0x68] sm:$0xf]
    %v480 = vld [vmem:[#allocation4 + $0x6c] sm:$0xff]
    %v481 = vld [vmem:[#allocation4 + $0x74] sm:$0xf]
    %v482 = vld [vmem:[#allocation4 + $0x78] sm:$0xff]
    %v483 = vld [vmem:[#allocation4 + $0x80] sm:$0xf]
    %v484 = vld [vmem:[#allocation4 + $0x84] sm:$0xff]
    %v485 = vld [vmem:[#allocation4 + $0x8c] sm:$0xf]
    %v486 = vld [vmem:[#allocation4 + $0x90] sm:$0xff]
    %v487 = vld [vmem:[#allocation4 + $0x98] sm:$0xf]
    %v488 = vld [vmem:[#allocation4 + $0x9c] sm:$0xff]
    %v489 = vld [vmem:[#allocation4 + $0xa4] sm:$0xf]
    %v490 = vld [vmem:[#allocation4 + $0xa8] sm:$0xff]
    %v491 = vld [vmem:[#allocation4 + $0xb0] sm:$0xf]
    %v492 = vld [vmem:[#allocation4 + $0xb4] sm:$0xff]
    %v493 = vld [vmem:[#allocation4 + $0xbc] sm:$0xf]
    %v494 = vld [vmem:[#allocation4 + $0xc0] sm:$0xff]
    %v495 = vld [vmem:[#allocation4 + $0xc8] sm:$0xf]
    %v496 = vld [vmem:[#allocation4 + $0xcc] sm:$0xff]
    %v497 = vld [vmem:[#allocation4 + $0xd4] sm:$0xf]
    %v498 = vld [vmem:[#allocation4 + $0xd8] sm:$0xff]
    %v499 = vld [vmem:[#allocation4 + $0xe0] sm:$0xf]
    %v500 = vld [vmem:[#allocation4 + $0xe4] sm:$0xff]
    %v501 = vld [vmem:[#allocation4 + $0xec] sm:$0xf]
    %v502 = vld [vmem:[#allocation4 + $0xf0] sm:$0xff]
    %v503 = vld [vmem:[#allocation4 + $0xf8] sm:$0xf]
    %v504 = vld [vmem:[#allocation4 + $0xfc] sm:$0xff]
    %v505 = vld [vmem:[#allocation4 + $0x104] sm:$0xf]
    %v506 = vld [vmem:[#allocation4 + $0x108] sm:$0xff]
    %v507 = vld [vmem:[#allocation4 + $0x110] sm:$0xf]
    %v508 = vld [vmem:[#allocation4 + $0x114] sm:$0xff]
    %v509 = vld [vmem:[#allocation4 + $0x11c] sm:$0xf]
    %v510 = vld [vmem:[#allocation4 + $0x120] sm:$0xff]
    %v511 = vld [vmem:[#allocation4 + $0x128] sm:$0xf]
    %v512 = vld [vmem:[#allocation4 + $0x12c] sm:$0xff]
    %v513 = vld [vmem:[#allocation4 + $0x134] sm:$0xf]
    %v514 = vld [vmem:[#allocation4 + $0x138] sm:$0xff]
    %v515 = vld [vmem:[#allocation4 + $0x140] sm:$0xf]
    %v516 = vld [vmem:[#allocation4 + $0x144] sm:$0xff]
    %v517 = vld [vmem:[#allocation4 + $0x14c] sm:$0xf]
    %v518 = vld [vmem:[#allocation4 + $0x150] sm:$0xff]
    %v519 = vld [vmem:[#allocation4 + $0x158] sm:$0xf]
    %v520 = vld [vmem:[#allocation4 + $0x15c] sm:$0xff]
    %v521 = vld [vmem:[#allocation4 + $0x164] sm:$0xf]
    %v522 = vld [vmem:[#allocation4 + $0x168] sm:$0xff]
    %v523 = vld [vmem:[#allocation4 + $0x170] sm:$0xf]
    %v524 = vld [vmem:[#allocation4 + $0x174] sm:$0xff]
    %v525 = vld [vmem:[#allocation4 + $0x17c] sm:$0xf]
    %v526 = vld [vmem:[#allocation4 + $0x180] sm:$0xff]
    %v527 = vld [vmem:[#allocation4 + $0x188] sm:$0xf]
    %v528 = vld [vmem:[#allocation4 + $0x18c] sm:$0xff]
    %v529 = vld [vmem:[#allocation4 + $0x194] sm:$0xf]
    %v530 = vld [vmem:[#allocation4 + $0x198] sm:$0xff]
    %v531 = vld [vmem:[#allocation4 + $0x1a0] sm:$0xf]
    %v532 = vld [vmem:[#allocation4 + $0x1a4] sm:$0xff]
    %v533 = vld [vmem:[#allocation4 + $0x1ac] sm:$0xf]
    %v534 = vld [vmem:[#allocation4 + $0x1b0] sm:$0xff]
    %v535 = vld [vmem:[#allocation4 + $0x1b8] sm:$0xf]
    %v536 = vld [vmem:[#allocation4 + $0x1bc] sm:$0xff]
    %v537 = vld [vmem:[#allocation4 + $0x1c4] sm:$0xf]
    %v538 = vld [vmem:[#allocation4 + $0x1c8] sm:$0xff]
    %v539 = vld [vmem:[#allocation4 + $0x1d0] sm:$0xf]
    %v540 = vld [vmem:[#allocation4 + $0x1d4] sm:$0xff]
    %v541 = vld [vmem:[#allocation4 + $0x1dc] sm:$0xf]
    %v542 = vld [vmem:[#allocation4 + $0x1e0] sm:$0xff]
    %v543 = vld [vmem:[#allocation4 + $0x1e8] sm:$0xf]
    %v544 = vld [vmem:[#allocation4 + $0x1ec] sm:$0xff]
    %v545 = vld [vmem:[#allocation4 + $0x1f4] sm:$0xf]
    %v546 = vld [vmem:[#allocation4 + $0x1f8] sm:$0xff]
    %v547 = vld [vmem:[#allocation4 + $0x200] sm:$0xf]
    %v548 = vld [vmem:[#allocation4 + $0x204] sm:$0xff]
    %v549 = vld [vmem:[#allocation4 + $0x20c] sm:$0xf]
    %v550 = vld [vmem:[#allocation4 + $0x210] sm:$0xff]
    %v551 = vld [vmem:[#allocation4 + $0x218] sm:$0xf]
    %v552 = vld [vmem:[#allocation4 + $0x21c] sm:$0xff]
    %v553 = vld [vmem:[#allocation4 + $0x224] sm:$0xf]
    %v554 = vld [vmem:[#allocation4 + $0x228] sm:$0xff]
    %v555 = vld [vmem:[#allocation4 + $0x230] sm:$0xf]
    %v556 = vld [vmem:[#allocation4 + $0x234] sm:$0xff]
    %v557 = vld [vmem:[#allocation4 + $0x23c] sm:$0xf]
    %v558 = vld [vmem:[#allocation4 + $0x240] sm:$0xff]
    %v559 = vld [vmem:[#allocation4 + $0x248] sm:$0xf]
    %v560 = vld [vmem:[#allocation4 + $0x24c] sm:$0xff]
    %v561 = vld [vmem:[#allocation4 + $0x254] sm:$0xf]
    %v562 = vld [vmem:[#allocation4 + $0x258] sm:$0xff]
    %v563 = vld [vmem:[#allocation4 + $0x260] sm:$0xf]
    %v564 = vld [vmem:[#allocation4 + $0x264] sm:$0xff]
    %v565 = vld [vmem:[#allocation4 + $0x26c] sm:$0xf]
    %v566 = vld [vmem:[#allocation4 + $0x270] sm:$0xff]
    %v567 = vld [vmem:[#allocation4 + $0x278] sm:$0xf]
    %v568 = vld [vmem:[#allocation4 + $0x27c] sm:$0xff]
    %v569 = vld [vmem:[#allocation4 + $0x284] sm:$0xf]
    %v570 = vld [vmem:[#allocation4 + $0x288] sm:$0xff]
    %v571 = vld [vmem:[#allocation4 + $0x290] sm:$0xf]
    %v572 = vld [vmem:[#allocation4 + $0x294] sm:$0xff]
    %v573 = vld [vmem:[#allocation4 + $0x29c] sm:$0xf]
    %v574 = vld [vmem:[#allocation4 + $0x2a0] sm:$0xff]
    %v575 = vld [vmem:[#allocation4 + $0x2a8] sm:$0xf]
    %v576 = vld [vmem:[#allocation4 + $0x2ac] sm:$0xff]
    %v577 = vld [vmem:[#allocation4 + $0x2b4] sm:$0xf]
    %v578 = vld [vmem:[#allocation4 + $0x2b8] sm:$0xff]
    %v579 = vld [vmem:[#allocation4 + $0x2c0] sm:$0xf]
    %v580 = vld [vmem:[#allocation4 + $0x2c4] sm:$0xff]
    %v581 = vld [vmem:[#allocation4 + $0x2cc] sm:$0xf]
    %v582 = vld [vmem:[#allocation4 + $0x2d0] sm:$0xff]
    %v583 = vld [vmem:[#allocation4 + $0x2d8] sm:$0xf]
    %v584 = vld [vmem:[#allocation4 + $0x2dc] sm:$0xff]
    %v585 = vld [vmem:[#allocation4 + $0x2e4] sm:$0xf]
    %v586 = vld [vmem:[#allocation4 + $0x2e8] sm:$0xff]
    %v587 = vld [vmem:[#allocation4 + $0x2f0] sm:$0xf]
    %v588 = vld [vmem:[#allocation4 + $0x2f4] sm:$0xff]
    %v589 = vld [vmem:[#allocation4 + $0x2fc] sm:$0xf]
    %v590 = vlaneseq
    %v591 = vshrl.u32 %v590, 7
    %v592 = vsub.s32 1, %v591
    %v593 = vrot.slane %v142, %v592
    %v594 = vlaneseq
    %v595 = vshrl.u32 %v594, 7
    %v596 = vsub.s32 1, %v595
    %v597 = vrot.slane %v143, %v596
    %v598 = vlaneseq
    %v599 = vshrl.u32 %v598, 7
    %v600 = vsub.s32 1, %v599
    %v601 = vrot.slane %v144, %v600
    %v730 = vunpack.c.l.b16 %v462
    %v731 = vunpack.c.h.b16 %v462
    %v732 = vunpack.c.l.b16 %v463
    %v733 = vunpack.c.l.b16 %v464
    %v734 = vunpack.c.h.b16 %v464
    %v735 = vunpack.c.l.b16 %v465
    %v736 = vunpack.c.l.b16 %v466
    %v737 = vunpack.c.h.b16 %v466
    %v738 = vunpack.c.l.b16 %v467
    %v739 = vunpack.c.l.b16 %v468
    %v740 = vunpack.c.h.b16 %v468
    %v741 = vunpack.c.l.b16 %v469
    %v742 = vunpack.c.l.b16 %v470
    %v743 = vunpack.c.h.b16 %v470
    %v744 = vunpack.c.l.b16 %v471
    %v745 = vunpack.c.l.b16 %v472
    %v746 = vunpack.c.h.b16 %v472
    %v747 = vunpack.c.l.b16 %v473
    %v748 = vunpack.c.l.b16 %v474
    %v749 = vunpack.c.h.b16 %v474
    %v750 = vunpack.c.l.b16 %v475
    %v751 = vunpack.c.l.b16 %v476
    %v752 = vunpack.c.h.b16 %v476
    %v753 = vunpack.c.l.b16 %v477
    %v754 = vunpack.c.l.b16 %v478
    %v755 = vunpack.c.h.b16 %v478
    %v756 = vunpack.c.l.b16 %v479
    %v757 = vunpack.c.l.b16 %v480
    %v758 = vunpack.c.h.b16 %v480
    %v759 = vunpack.c.l.b16 %v481
    %v760 = vunpack.c.l.b16 %v482
    %v761 = vunpack.c.h.b16 %v482
    %v762 = vunpack.c.l.b16 %v483
    %v763 = vunpack.c.l.b16 %v484
    %v764 = vunpack.c.h.b16 %v484
    %v765 = vunpack.c.l.b16 %v485
    %v766 = vunpack.c.l.b16 %v486
    %v767 = vunpack.c.h.b16 %v486
    %v768 = vunpack.c.l.b16 %v487
    %v769 = vunpack.c.l.b16 %v488
    %v770 = vunpack.c.h.b16 %v488
    %v771 = vunpack.c.l.b16 %v489
    %v772 = vunpack.c.l.b16 %v490
    %v773 = vunpack.c.h.b16 %v490
    %v774 = vunpack.c.l.b16 %v491
    %v775 = vunpack.c.l.b16 %v492
    %v776 = vunpack.c.h.b16 %v492
    %v777 = vunpack.c.l.b16 %v493
    %v778 = vunpack.c.l.b16 %v494
    %v779 = vunpack.c.h.b16 %v494
    %v780 = vunpack.c.l.b16 %v495
    %v781 = vunpack.c.l.b16 %v496
    %v782 = vunpack.c.h.b16 %v496
    %v783 = vunpack.c.l.b16 %v497
    %v784 = vunpack.c.l.b16 %v498
    %v785 = vunpack.c.h.b16 %v498
    %v786 = vunpack.c.l.b16 %v499
    %v787 = vunpack.c.l.b16 %v500
    %v788 = vunpack.c.h.b16 %v500
    %v789 = vunpack.c.l.b16 %v501
    %v790 = vunpack.c.l.b16 %v502
    %v791 = vunpack.c.h.b16 %v502
    %v792 = vunpack.c.l.b16 %v503
    %v793 = vunpack.c.l.b16 %v504
    %v794 = vunpack.c.h.b16 %v504
    %v795 = vunpack.c.l.b16 %v505
    %v796 = vunpack.c.l.b16 %v506
    %v797 = vunpack.c.h.b16 %v506
    %v798 = vunpack.c.l.b16 %v507
    %v799 = vunpack.c.l.b16 %v508
    %v800 = vunpack.c.h.b16 %v508
    %v801 = vunpack.c.l.b16 %v509
    %v802 = vunpack.c.l.b16 %v510
    %v803 = vunpack.c.h.b16 %v510
    %v804 = vunpack.c.l.b16 %v511
    %v805 = vunpack.c.l.b16 %v512
    %v806 = vunpack.c.h.b16 %v512
    %v807 = vunpack.c.l.b16 %v513
    %v808 = vunpack.c.l.b16 %v514
    %v809 = vunpack.c.h.b16 %v514
    %v810 = vunpack.c.l.b16 %v515
    %v811 = vunpack.c.l.b16 %v516
    %v812 = vunpack.c.h.b16 %v516
    %v813 = vunpack.c.l.b16 %v517
    %v814 = vunpack.c.l.b16 %v518
    %v815 = vunpack.c.h.b16 %v518
    %v816 = vunpack.c.l.b16 %v519
    %v817 = vunpack.c.l.b16 %v520
    %v818 = vunpack.c.h.b16 %v520
    %v819 = vunpack.c.l.b16 %v521
    %v820 = vunpack.c.l.b16 %v522
    %v821 = vunpack.c.h.b16 %v522
    %v822 = vunpack.c.l.b16 %v523
    %v823 = vunpack.c.l.b16 %v524
    %v824 = vunpack.c.h.b16 %v524
    %v825 = vunpack.c.l.b16 %v525
    %v826 = vunpack.c.l.b16 %v526
    %v827 = vunpack.c.h.b16 %v526
    %v828 = vunpack.c.l.b16 %v527
    %v829 = vunpack.c.l.b16 %v528
    %v830 = vunpack.c.h.b16 %v528
    %v831 = vunpack.c.l.b16 %v529
    %v832 = vunpack.c.l.b16 %v530
    %v833 = vunpack.c.h.b16 %v530
    %v834 = vunpack.c.l.b16 %v531
    %v835 = vunpack.c.l.b16 %v532
    %v836 = vunpack.c.h.b16 %v532
    %v837 = vunpack.c.l.b16 %v533
    %v838 = vunpack.c.l.b16 %v534
    %v839 = vunpack.c.h.b16 %v534
    %v840 = vunpack.c.l.b16 %v535
    %v841 = vunpack.c.l.b16 %v536
    %v842 = vunpack.c.h.b16 %v536
    %v843 = vunpack.c.l.b16 %v537
    %v844 = vunpack.c.l.b16 %v538
    %v845 = vunpack.c.h.b16 %v538
    %v846 = vunpack.c.l.b16 %v539
    %v847 = vunpack.c.l.b16 %v540
    %v848 = vunpack.c.h.b16 %v540
    %v849 = vunpack.c.l.b16 %v541
    %v850 = vunpack.c.l.b16 %v542
    %v851 = vunpack.c.h.b16 %v542
    %v852 = vunpack.c.l.b16 %v543
    %v853 = vunpack.c.l.b16 %v544
    %v854 = vunpack.c.h.b16 %v544
    %v855 = vunpack.c.l.b16 %v545
    %v856 = vunpack.c.l.b16 %v546
    %v857 = vunpack.c.h.b16 %v546
    %v858 = vunpack.c.l.b16 %v547
    %v859 = vunpack.c.l.b16 %v548
    %v860 = vunpack.c.h.b16 %v548
    %v861 = vunpack.c.l.b16 %v549
    %v862 = vunpack.c.l.b16 %v550
    %v863 = vunpack.c.h.b16 %v550
    %v864 = vunpack.c.l.b16 %v551
    %v865 = vunpack.c.l.b16 %v552
    %v866 = vunpack.c.h.b16 %v552
    %v867 = vunpack.c.l.b16 %v553
    %v868 = vunpack.c.l.b16 %v554
    %v869 = vunpack.c.h.b16 %v554
    %v870 = vunpack.c.l.b16 %v555
    %v871 = vunpack.c.l.b16 %v556
    %v872 = vunpack.c.h.b16 %v556
    %v873 = vunpack.c.l.b16 %v557
    %v874 = vunpack.c.l.b16 %v558
    %v875 = vunpack.c.h.b16 %v558
    %v876 = vunpack.c.l.b16 %v559
    %v877 = vunpack.c.l.b16 %v560
    %v878 = vunpack.c.h.b16 %v560
    %v879 = vunpack.c.l.b16 %v561
    %v880 = vunpack.c.l.b16 %v562
    %v881 = vunpack.c.h.b16 %v562
    %v882 = vunpack.c.l.b16 %v563
    %v883 = vunpack.c.l.b16 %v564
    %v884 = vunpack.c.h.b16 %v564
    %v885 = vunpack.c.l.b16 %v565
    %v886 = vunpack.c.l.b16 %v566
    %v887 = vunpack.c.h.b16 %v566
    %v888 = vunpack.c.l.b16 %v567
    %v889 = vunpack.c.l.b16 %v568
    %v890 = vunpack.c.h.b16 %v568
    %v891 = vunpack.c.l.b16 %v569
    %v892 = vunpack.c.l.b16 %v570
    %v893 = vunpack.c.h.b16 %v570
    %v894 = vunpack.c.l.b16 %v571
    %v895 = vunpack.c.l.b16 %v572
    %v896 = vunpack.c.h.b16 %v572
    %v897 = vunpack.c.l.b16 %v573
    %v898 = vunpack.c.l.b16 %v574
    %v899 = vunpack.c.h.b16 %v574
    %v900 = vunpack.c.l.b16 %v575
    %v901 = vunpack.c.l.b16 %v576
    %v902 = vunpack.c.h.b16 %v576
    %v903 = vunpack.c.l.b16 %v577
    %v904 = vunpack.c.l.b16 %v578
    %v905 = vunpack.c.h.b16 %v578
    %v906 = vunpack.c.l.b16 %v579
    %v907 = vunpack.c.l.b16 %v580
    %v908 = vunpack.c.h.b16 %v580
    %v909 = vunpack.c.l.b16 %v581
    %v910 = vunpack.c.l.b16 %v582
    %v911 = vunpack.c.h.b16 %v582
    %v912 = vunpack.c.l.b16 %v583
    %v913 = vunpack.c.l.b16 %v584
    %v914 = vunpack.c.h.b16 %v584
    %v915 = vunpack.c.l.b16 %v585
    %v916 = vunpack.c.l.b16 %v586
    %v917 = vunpack.c.h.b16 %v586
    %v918 = vunpack.c.l.b16 %v587
    %v919 = vunpack.c.l.b16 %v588
    %v920 = vunpack.c.h.b16 %v588
    %v921 = vunpack.c.l.b16 %v589
    %v922 = vpack.c.b16 %v733, %v730
    %v923 = vpack.c.b16 %v734, %v731
    %v924 = vpack.c.b16 %v735, %v732
    %v925 = vpack.c.b16 %v739, %v736
    %v926 = vpack.c.b16 %v740, %v737
    %v927 = vpack.c.b16 %v741, %v738
    %v928 = vpack.c.b16 %v745, %v742
    %v929 = vpack.c.b16 %v746, %v743
    %v930 = vpack.c.b16 %v747, %v744
    %v931 = vpack.c.b16 %v751, %v748
    %v932 = vpack.c.b16 %v752, %v749
    %v933 = vpack.c.b16 %v753, %v750
    %v934 = vpack.c.b16 %v757, %v754
    %v935 = vpack.c.b16 %v758, %v755
    %v936 = vpack.c.b16 %v759, %v756
    %v937 = vpack.c.b16 %v763, %v760
    %v938 = vpack.c.b16 %v764, %v761
    %v939 = vpack.c.b16 %v765, %v762
    %v940 = vpack.c.b16 %v769, %v766
    %v941 = vpack.c.b16 %v770, %v767
    %v942 = vpack.c.b16 %v771, %v768
    %v943 = vpack.c.b16 %v775, %v772
    %v944 = vpack.c.b16 %v776, %v773
    %v945 = vpack.c.b16 %v777, %v774
    %v946 = vpack.c.b16 %v781, %v778
    %v947 = vpack.c.b16 %v782, %v779
    %v948 = vpack.c.b16 %v783, %v780
    %v949 = vpack.c.b16 %v787, %v784
    %v950 = vpack.c.b16 %v788, %v785
    %v951 = vpack.c.b16 %v789, %v786
    %v952 = vpack.c.b16 %v793, %v790
    %v953 = vpack.c.b16 %v794, %v791
    %v954 = vpack.c.b16 %v795, %v792
    %v955 = vpack.c.b16 %v799, %v796
    %v956 = vpack.c.b16 %v800, %v797
    %v957 = vpack.c.b16 %v801, %v798
    %v958 = vpack.c.b16 %v805, %v802
    %v959 = vpack.c.b16 %v806, %v803
    %v960 = vpack.c.b16 %v807, %v804
    %v961 = vpack.c.b16 %v811, %v808
    %v962 = vpack.c.b16 %v812, %v809
    %v963 = vpack.c.b16 %v813, %v810
    %v964 = vpack.c.b16 %v817, %v814
    %v965 = vpack.c.b16 %v818, %v815
    %v966 = vpack.c.b16 %v819, %v816
    %v967 = vpack.c.b16 %v823, %v820
    %v968 = vpack.c.b16 %v824, %v821
    %v969 = vpack.c.b16 %v825, %v822
    %v970 = vpack.c.b16 %v829, %v826
    %v971 = vpack.c.b16 %v830, %v827
    %v972 = vpack.c.b16 %v831, %v828
    %v973 = vpack.c.b16 %v835, %v832
    %v974 = vpack.c.b16 %v836, %v833
    %v975 = vpack.c.b16 %v837, %v834
    %v976 = vpack.c.b16 %v841, %v838
    %v977 = vpack.c.b16 %v842, %v839
    %v978 = vpack.c.b16 %v843, %v840
    %v979 = vpack.c.b16 %v847, %v844
    %v980 = vpack.c.b16 %v848, %v845
    %v981 = vpack.c.b16 %v849, %v846
    %v982 = vpack.c.b16 %v853, %v850
    %v983 = vpack.c.b16 %v854, %v851
    %v984 = vpack.c.b16 %v855, %v852
    %v985 = vpack.c.b16 %v859, %v856
    %v986 = vpack.c.b16 %v860, %v857
    %v987 = vpack.c.b16 %v861, %v858
    %v988 = vpack.c.b16 %v865, %v862
    %v989 = vpack.c.b16 %v866, %v863
    %v990 = vpack.c.b16 %v867, %v864
    %v991 = vpack.c.b16 %v871, %v868
    %v992 = vpack.c.b16 %v872, %v869
    %v993 = vpack.c.b16 %v873, %v870
    %v994 = vpack.c.b16 %v877, %v874
    %v995 = vpack.c.b16 %v878, %v875
    %v996 = vpack.c.b16 %v879, %v876
    %v997 = vpack.c.b16 %v883, %v880
    %v998 = vpack.c.b16 %v884, %v881
    %v999 = vpack.c.b16 %v885, %v882
    %v1000 = vpack.c.b16 %v889, %v886
    %v1001 = vpack.c.b16 %v890, %v887
    %v1002 = vpack.c.b16 %v891, %v888
    %v1003 = vpack.c.b16 %v895, %v892
    %v1004 = vpack.c.b16 %v896, %v893
    %v1005 = vpack.c.b16 %v897, %v894
    %v1006 = vpack.c.b16 %v901, %v898
    %v1007 = vpack.c.b16 %v902, %v899
    %v1008 = vpack.c.b16 %v903, %v900
    %v1009 = vpack.c.b16 %v907, %v904
    %v1010 = vpack.c.b16 %v908, %v905
    %v1011 = vpack.c.b16 %v909, %v906
    %v1012 = vpack.c.b16 %v913, %v910
    %v1013 = vpack.c.b16 %v914, %v911
    %v1014 = vpack.c.b16 %v915, %v912
    %v1015 = vpack.c.b16 %v919, %v916
    %v1016 = vpack.c.b16 %v920, %v917
    %v1017 = vpack.c.b16 %v921, %v918
    %1114 = vmatprep.subr.bf16.mxu0 %v923
    %1115 = vmatpush1.bf16.msra.mxu0 %v922
    %1116 = vmatprep.subr.bf16.mxu0 %v926
    %1117 = vmatpush1.bf16.msra.mxu0 %v925
    %1118 = vmatprep.subr.bf16.mxu0 %v929
    %1119 = vmatpush1.bf16.msra.mxu0 %v928
    %1120 = vmatprep.subr.bf16.mxu0 %v932
    %1121 = vmatpush1.bf16.msra.mxu0 %v931
    %1122 = vmatprep.subr.bf16.mxu0 %v935
    %1123 = vmatpush1.bf16.msra.mxu0 %v934
    %1124 = vmatprep.subr.bf16.mxu0 %v938
    %1125 = vmatpush1.bf16.msra.mxu0 %v937
    %1126 = vmatprep.subr.bf16.mxu0 %v941
    %1127 = vmatpush1.bf16.msra.mxu0 %v940
    %1128 = vmatprep.subr.bf16.mxu0 %v944
    %1129 = vmatpush1.bf16.msra.mxu0 %v943
    %1130 = vmatprep.subr.bf16.mxu0 %v947
    %1131 = vmatpush1.bf16.msra.mxu0 %v946
    %1132 = vmatprep.subr.bf16.mxu0 %v950
    %1133 = vmatpush1.bf16.msra.mxu0 %v949
    %1134 = vmatprep.subr.bf16.mxu0 %v953
    %1135 = vmatpush1.bf16.msra.mxu0 %v952
    %1136 = vmatprep.subr.bf16.mxu0 %v956
    %1137 = vmatpush1.bf16.msra.mxu0 %v955
    %1138 = vmatprep.subr.bf16.mxu0 %v959
    %1139 = vmatpush1.bf16.msra.mxu0 %v958
    %1140 = vmatprep.subr.bf16.mxu0 %v962
    %1141 = vmatpush1.bf16.msra.mxu0 %v961
    %1142 = vmatprep.subr.bf16.mxu0 %v965
    %1143 = vmatpush1.bf16.msra.mxu0 %v964
    %1144 = vmatprep.subr.bf16.mxu0 %v968
    %1145 = vmatpush1.bf16.msra.mxu0 %v967
    %1146 = vmatprep.mubr.bf16.mxu0 %v455
    %1147 = vmatmul.mubr.bf16.gmra.mrb[0].mxu0 %v454
    %v1148 = vpop.f32.mrb[0].mxu0
    %v1149 = vadd.f32 %v593, %v1148
    %v1150 = vpop.f32.mrb[0].mxu0
    %v1151 = vadd.f32 %v597, %v1150
    %v1152 = vpop.f32.mrb[0].mxu0
    %v1153 = vpop.f32.mrb[0].mxu0
    %1154 = vdwg.mxu0
    %1155 = vmatprep.subr.bf16.mxu0 %v971
    %1156 = vmatpush1.bf16.msra.mxu0 %v970
    %1157 = vmatprep.subr.bf16.mxu0 %v974
    %1158 = vmatpush1.bf16.msra.mxu0 %v973
    %1159 = vmatprep.subr.bf16.mxu0 %v977
    %1160 = vmatpush1.bf16.msra.mxu0 %v976
    %1161 = vmatprep.subr.bf16.mxu0 %v980
    %1162 = vmatpush1.bf16.msra.mxu0 %v979
    %1163 = vmatprep.subr.bf16.mxu0 %v983
    %1164 = vmatpush1.bf16.msra.mxu0 %v982
    %1165 = vmatprep.subr.bf16.mxu0 %v986
    %1166 = vmatpush1.bf16.msra.mxu0 %v985
    %1167 = vmatprep.subr.bf16.mxu0 %v989
    %1168 = vmatpush1.bf16.msra.mxu0 %v988
    %1169 = vmatprep.subr.bf16.mxu0 %v992
    %1170 = vmatpush1.bf16.msra.mxu0 %v991
    %1171 = vmatprep.subr.bf16.mxu0 %v995
    %1172 = vmatpush1.bf16.msra.mxu0 %v994
    %1173 = vmatprep.subr.bf16.mxu0 %v998
    %1174 = vmatpush1.bf16.msra.mxu0 %v997
    %1175 = vmatprep.subr.bf16.mxu0 %v1001
    %1176 = vmatpush1.bf16.msra.mxu0 %v1000
    %1177 = vmatprep.subr.bf16.mxu0 %v1004
    %1178 = vmatpush1.bf16.msra.mxu0 %v1003
    %1179 = vmatprep.subr.bf16.mxu0 %v1007
    %1180 = vmatpush1.bf16.msra.mxu0 %v1006
    %1181 = vmatprep.subr.bf16.mxu0 %v1010
    %1182 = vmatpush1.bf16.msra.mxu0 %v1009
    %1183 = vmatprep.subr.bf16.mxu0 %v1013
    %1184 = vmatpush1.bf16.msra.mxu0 %v1012
    %1185 = vmatprep.subr.bf16.mxu0 %v1016
    %1186 = vmatpush1.bf16.msra.mxu0 %v1015
    %1187 = vmatprep.mubr.bf16.mxu0 %v457
    %1188 = vmatmul.mubr.bf16.gmra.mrb[0].mxu0 %v456
    %v1189 = vpop.f32.mrb[0].mxu0
    %v1190 = vadd.f32 %v1149, %v1189
    %v1191 = vpop.f32.mrb[0].mxu0
    %v1192 = vadd.f32 %v1151, %v1191
    %v1193 = vpop.f32.mrb[0].mxu0
    %v1194 = vpop.f32.mrb[0].mxu0
    %1195 = vdwg.mxu0
    %1196 = vmatprep.subr.bf16.mxu0 0
    %1197 = vmatpush1.bf16.msra.mxu0 %v924
    %1198 = vmatprep.subr.bf16.mxu0 0
    %1199 = vmatpush1.bf16.msra.mxu0 %v927
    %1200 = vmatprep.subr.bf16.mxu0 0
    %1201 = vmatpush1.bf16.msra.mxu0 %v930
    %1202 = vmatprep.subr.bf16.mxu0 0
    %1203 = vmatpush1.bf16.msra.mxu0 %v933
    %1204 = vmatprep.subr.bf16.mxu0 0
    %1205 = vmatpush1.bf16.msra.mxu0 %v936
    %1206 = vmatprep.subr.bf16.mxu0 0
    %1207 = vmatpush1.bf16.msra.mxu0 %v939
    %1208 = vmatprep.subr.bf16.mxu0 0
    %1209 = vmatpush1.bf16.msra.mxu0 %v942
    %1210 = vmatprep.subr.bf16.mxu0 0
    %1211 = vmatpush1.bf16.msra.mxu0 %v945
    %1212 = vmatprep.subr.bf16.mxu0 0
    %1213 = vmatpush1.bf16.msra.mxu0 %v948
    %1214 = vmatprep.subr.bf16.mxu0 0
    %1215 = vmatpush1.bf16.msra.mxu0 %v951
    %1216 = vmatprep.subr.bf16.mxu0 0
    %1217 = vmatpush1.bf16.msra.mxu0 %v954
    %1218 = vmatprep.subr.bf16.mxu0 0
    %1219 = vmatpush1.bf16.msra.mxu0 %v957
    %1220 = vmatprep.subr.bf16.mxu0 0
    %1221 = vmatpush1.bf16.msra.mxu0 %v960
    %1222 = vmatprep.subr.bf16.mxu0 0
    %1223 = vmatpush1.bf16.msra.mxu0 %v963
    %1224 = vmatprep.subr.bf16.mxu0 0
    %1225 = vmatpush1.bf16.msra.mxu0 %v966
    %1226 = vmatprep.subr.bf16.mxu0 0
    %1227 = vmatpush1.bf16.msra.mxu0 %v969
    %1228 = vmatprep.mubr.bf16.mxu0 %v455
    %1229 = vmatmul.mubr.bf16.gmra.mrb[0].mxu0 %v454
    %v1230 = vpop.f32.mrb[0].mxu0
    %v1231 = vadd.f32 %v601, %v1230
    %v1232 = vpop.f32.mrb[0].mxu0
    %v1233 = vpop.f32.mrb[0].mxu0
    %v1234 = vpop.f32.mrb[0].mxu0
    %1235 = vdwg.mxu0
    %1236 = vmatprep.subr.bf16.mxu0 0
    %1237 = vmatpush1.bf16.msra.mxu0 %v972
    %1238 = vmatprep.subr.bf16.mxu0 0
    %1239 = vmatpush1.bf16.msra.mxu0 %v975
    %1240 = vmatprep.subr.bf16.mxu0 0
    %1241 = vmatpush1.bf16.msra.mxu0 %v978
    %1242 = vmatprep.subr.bf16.mxu0 0
    %1243 = vmatpush1.bf16.msra.mxu0 %v981
    %1244 = vmatprep.subr.bf16.mxu0 0
    %1245 = vmatpush1.bf16.msra.mxu0 %v984
    %1246 = vmatprep.subr.bf16.mxu0 0
    %1247 = vmatpush1.bf16.msra.mxu0 %v987
    %1248 = vmatprep.subr.bf16.mxu0 0
    %1249 = vmatpush1.bf16.msra.mxu0 %v990
    %1250 = vmatprep.subr.bf16.mxu0 0
    %1251 = vmatpush1.bf16.msra.mxu0 %v993
    %1252 = vmatprep.subr.bf16.mxu0 0
    %1253 = vmatpush1.bf16.msra.mxu0 %v996
    %1254 = vmatprep.subr.bf16.mxu0 0
    %1255 = vmatpush1.bf16.msra.mxu0 %v999
    %1256 = vmatprep.subr.bf16.mxu0 0
    %1257 = vmatpush1.bf16.msra.mxu0 %v1002
    %1258 = vmatprep.subr.bf16.mxu0 0
    %1259 = vmatpush1.bf16.msra.mxu0 %v1005
    %1260 = vmatprep.subr.bf16.mxu0 0
    %1261 = vmatpush1.bf16.msra.mxu0 %v1008
    %1262 = vmatprep.subr.bf16.mxu0 0
    %1263 = vmatpush1.bf16.msra.mxu0 %v1011
    %1264 = vmatprep.subr.bf16.mxu0 0
    %1265 = vmatpush1.bf16.msra.mxu0 %v1014
    %1266 = vmatprep.subr.bf16.mxu0 0
    %1267 = vmatpush1.bf16.msra.mxu0 %v1017
    %1268 = vmatprep.mubr.bf16.mxu0 %v457
    %1269 = vmatmul.mubr.bf16.gmra.mrb[0].mxu0 %v456
    %v1270 = vpop.f32.mrb[0].mxu0
    %v1271 = vadd.f32 %v1231, %v1270
    %v1272 = vpop.f32.mrb[0].mxu0
    %v1273 = vpop.f32.mrb[0].mxu0
    %v1274 = vpop.f32.mrb[0].mxu0
    %1275 = vdwg.mxu0
    %v1276 = vmax.f32 %v1190, 0.0
    %v1277 = vmax.f32 %v1192, 0.0
    %v1278 = vmax.f32 %v1271, 0.0
    %v1279 = vpack.c.bf16 %v1276, %v1276
    %v1280 = vpack.c.bf16 %v1277, %v1277
    %v1281 = vpack.c.bf16 %v1278, %v1278
    %v1282 = vld [vmem:[#allocation6] sm:$0xff]
    %v1283 = vld [vmem:[#allocation6 + $0x8] sm:$0xf]
    %v1284 = vld [vmem:[#allocation6 + $0xc] sm:$0xff]
    %v1285 = vld [vmem:[#allocation6 + $0x14] sm:$0xf]
    %v1286 = vld [vmem:[#allocation6 + $0x18] sm:$0xff]
    %v1287 = vld [vmem:[#allocation6 + $0x20] sm:$0xf]
    %v1288 = vld [vmem:[#allocation6 + $0x24] sm:$0xff]
    %v1289 = vld [vmem:[#allocation6 + $0x2c] sm:$0xf]
    %v1290 = vld [vmem:[#allocation6 + $0x30] sm:$0xff]
    %v1291 = vld [vmem:[#allocation6 + $0x38] sm:$0xf]
    %v1292 = vld [vmem:[#allocation6 + $0x3c] sm:$0xff]
    %v1293 = vld [vmem:[#allocation6 + $0x44] sm:$0xf]
    %v1294 = vld [vmem:[#allocation6 + $0x48] sm:$0xff]
    %v1295 = vld [vmem:[#allocation6 + $0x50] sm:$0xf]
    %v1296 = vld [vmem:[#allocation6 + $0x54] sm:$0xff]
    %v1297 = vld [vmem:[#allocation6 + $0x5c] sm:$0xf]
    %v1298 = vld [vmem:[#allocation6 + $0x60] sm:$0xff]
    %v1299 = vld [vmem:[#allocation6 + $0x68] sm:$0xf]
    %v1300 = vld [vmem:[#allocation6 + $0x6c] sm:$0xff]
    %v1301 = vld [vmem:[#allocation6 + $0x74] sm:$0xf]
    %v1302 = vld [vmem:[#allocation6 + $0x78] sm:$0xff]
    %v1303 = vld [vmem:[#allocation6 + $0x80] sm:$0xf]
    %v1304 = vld [vmem:[#allocation6 + $0x84] sm:$0xff]
    %v1305 = vld [vmem:[#allocation6 + $0x8c] sm:$0xf]
    %v1306 = vld [vmem:[#allocation6 + $0x90] sm:$0xff]
    %v1307 = vld [vmem:[#allocation6 + $0x98] sm:$0xf]
    %v1308 = vld [vmem:[#allocation6 + $0x9c] sm:$0xff]
    %v1309 = vld [vmem:[#allocation6 + $0xa4] sm:$0xf]
    %v1310 = vld [vmem:[#allocation6 + $0xa8] sm:$0xff]
    %v1311 = vld [vmem:[#allocation6 + $0xb0] sm:$0xf]
    %v1312 = vld [vmem:[#allocation6 + $0xb4] sm:$0xff]
    %v1313 = vld [vmem:[#allocation6 + $0xbc] sm:$0xf]
    %v1314 = vld [vmem:[#allocation6 + $0xc0] sm:$0xff]
    %v1315 = vld [vmem:[#allocation6 + $0xc8] sm:$0xf]
    %v1316 = vld [vmem:[#allocation6 + $0xcc] sm:$0xff]
    %v1317 = vld [vmem:[#allocation6 + $0xd4] sm:$0xf]
    %v1318 = vld [vmem:[#allocation6 + $0xd8] sm:$0xff]
    %v1319 = vld [vmem:[#allocation6 + $0xe0] sm:$0xf]
    %v1320 = vld [vmem:[#allocation6 + $0xe4] sm:$0xff]
    %v1321 = vld [vmem:[#allocation6 + $0xec] sm:$0xf]
    %v1322 = vld [vmem:[#allocation6 + $0xf0] sm:$0xff]
    %v1323 = vld [vmem:[#allocation6 + $0xf8] sm:$0xf]
    %v1324 = vld [vmem:[#allocation6 + $0xfc] sm:$0xff]
    %v1325 = vld [vmem:[#allocation6 + $0x104] sm:$0xf]
    %v1326 = vld [vmem:[#allocation6 + $0x108] sm:$0xff]
    %v1327 = vld [vmem:[#allocation6 + $0x110] sm:$0xf]
    %v1328 = vld [vmem:[#allocation6 + $0x114] sm:$0xff]
    %v1329 = vld [vmem:[#allocation6 + $0x11c] sm:$0xf]
    %v1330 = vld [vmem:[#allocation6 + $0x120] sm:$0xff]
    %v1331 = vld [vmem:[#allocation6 + $0x128] sm:$0xf]
    %v1332 = vld [vmem:[#allocation6 + $0x12c] sm:$0xff]
    %v1333 = vld [vmem:[#allocation6 + $0x134] sm:$0xf]
    %v1334 = vld [vmem:[#allocation6 + $0x138] sm:$0xff]
    %v1335 = vld [vmem:[#allocation6 + $0x140] sm:$0xf]
    %v1336 = vld [vmem:[#allocation6 + $0x144] sm:$0xff]
    %v1337 = vld [vmem:[#allocation6 + $0x14c] sm:$0xf]
    %v1338 = vld [vmem:[#allocation6 + $0x150] sm:$0xff]
    %v1339 = vld [vmem:[#allocation6 + $0x158] sm:$0xf]
    %v1340 = vld [vmem:[#allocation6 + $0x15c] sm:$0xff]
    %v1341 = vld [vmem:[#allocation6 + $0x164] sm:$0xf]
    %v1342 = vld [vmem:[#allocation6 + $0x168] sm:$0xff]
    %v1343 = vld [vmem:[#allocation6 + $0x170] sm:$0xf]
    %v1344 = vld [vmem:[#allocation6 + $0x174] sm:$0xff]
    %v1345 = vld [vmem:[#allocation6 + $0x17c] sm:$0xf]
    %v1346 = vld [vmem:[#allocation6 + $0x180] sm:$0xff]
    %v1347 = vld [vmem:[#allocation6 + $0x188] sm:$0xf]
    %v1348 = vld [vmem:[#allocation6 + $0x18c] sm:$0xff]
    %v1349 = vld [vmem:[#allocation6 + $0x194] sm:$0xf]
    %v1350 = vld [vmem:[#allocation6 + $0x198] sm:$0xff]
    %v1351 = vld [vmem:[#allocation6 + $0x1a0] sm:$0xf]
    %v1352 = vld [vmem:[#allocation6 + $0x1a4] sm:$0xff]
    %v1353 = vld [vmem:[#allocation6 + $0x1ac] sm:$0xf]
    %v1354 = vld [vmem:[#allocation6 + $0x1b0] sm:$0xff]
    %v1355 = vld [vmem:[#allocation6 + $0x1b8] sm:$0xf]
    %v1356 = vld [vmem:[#allocation6 + $0x1bc] sm:$0xff]
    %v1357 = vld [vmem:[#allocation6 + $0x1c4] sm:$0xf]
    %v1358 = vld [vmem:[#allocation6 + $0x1c8] sm:$0xff]
    %v1359 = vld [vmem:[#allocation6 + $0x1d0] sm:$0xf]
    %v1360 = vld [vmem:[#allocation6 + $0x1d4] sm:$0xff]
    %v1361 = vld [vmem:[#allocation6 + $0x1dc] sm:$0xf]
    %v1362 = vld [vmem:[#allocation6 + $0x1e0] sm:$0xff]
    %v1363 = vld [vmem:[#allocation6 + $0x1e8] sm:$0xf]
    %v1364 = vld [vmem:[#allocation6 + $0x1ec] sm:$0xff]
    %v1365 = vld [vmem:[#allocation6 + $0x1f4] sm:$0xf]
    %v1366 = vld [vmem:[#allocation6 + $0x1f8] sm:$0xff]
    %v1367 = vld [vmem:[#allocation6 + $0x200] sm:$0xf]
    %v1368 = vld [vmem:[#allocation6 + $0x204] sm:$0xff]
    %v1369 = vld [vmem:[#allocation6 + $0x20c] sm:$0xf]
    %v1370 = vld [vmem:[#allocation6 + $0x210] sm:$0xff]
    %v1371 = vld [vmem:[#allocation6 + $0x218] sm:$0xf]
    %v1372 = vld [vmem:[#allocation6 + $0x21c] sm:$0xff]
    %v1373 = vld [vmem:[#allocation6 + $0x224] sm:$0xf]
    %v1374 = vld [vmem:[#allocation6 + $0x228] sm:$0xff]
    %v1375 = vld [vmem:[#allocation6 + $0x230] sm:$0xf]
    %v1376 = vld [vmem:[#allocation6 + $0x234] sm:$0xff]
    %v1377 = vld [vmem:[#allocation6 + $0x23c] sm:$0xf]
    %v1378 = vlaneseq
    %v1379 = vshrl.u32 %v1378, 7
    %v1380 = vsub.s32 2, %v1379
    %v1381 = vrot.slane %v142, %v1380
    %v1382 = vlaneseq
    %v1383 = vshrl.u32 %v1382, 7
    %v1384 = vsub.s32 2, %v1383
    %v1385 = vrot.slane %v143, %v1384
    %v1386 = vlaneseq
    %v1387 = vshrl.u32 %v1386, 7
    %v1388 = vsub.s32 2, %v1387
    %v1389 = vrot.slane %v144, %v1388
    %v1486 = vunpack.c.l.b16 %v1282
    %v1487 = vunpack.c.h.b16 %v1282
    %v1488 = vunpack.c.l.b16 %v1283
    %v1489 = vunpack.c.l.b16 %v1284
    %v1490 = vunpack.c.h.b16 %v1284
    %v1491 = vunpack.c.l.b16 %v1285
    %v1492 = vunpack.c.l.b16 %v1286
    %v1493 = vunpack.c.h.b16 %v1286
    %v1494 = vunpack.c.l.b16 %v1287
    %v1495 = vunpack.c.l.b16 %v1288
    %v1496 = vunpack.c.h.b16 %v1288
    %v1497 = vunpack.c.l.b16 %v1289
    %v1498 = vunpack.c.l.b16 %v1290
    %v1499 = vunpack.c.h.b16 %v1290
    %v1500 = vunpack.c.l.b16 %v1291
    %v1501 = vunpack.c.l.b16 %v1292
    %v1502 = vunpack.c.h.b16 %v1292
    %v1503 = vunpack.c.l.b16 %v1293
    %v1504 = vunpack.c.l.b16 %v1294
    %v1505 = vunpack.c.h.b16 %v1294
    %v1506 = vunpack.c.l.b16 %v1295
    %v1507 = vunpack.c.l.b16 %v1296
    %v1508 = vunpack.c.h.b16 %v1296
    %v1509 = vunpack.c.l.b16 %v1297
    %v1510 = vunpack.c.l.b16 %v1298
    %v1511 = vunpack.c.h.b16 %v1298
    %v1512 = vunpack.c.l.b16 %v1299
    %v1513 = vunpack.c.l.b16 %v1300
    %v1514 = vunpack.c.h.b16 %v1300
    %v1515 = vunpack.c.l.b16 %v1301
    %v1516 = vunpack.c.l.b16 %v1302
    %v1517 = vunpack.c.h.b16 %v1302
    %v1518 = vunpack.c.l.b16 %v1303
    %v1519 = vunpack.c.l.b16 %v1304
    %v1520 = vunpack.c.h.b16 %v1304
    %v1521 = vunpack.c.l.b16 %v1305
    %v1522 = vunpack.c.l.b16 %v1306
    %v1523 = vunpack.c.h.b16 %v1306
    %v1524 = vunpack.c.l.b16 %v1307
    %v1525 = vunpack.c.l.b16 %v1308
    %v1526 = vunpack.c.h.b16 %v1308
    %v1527 = vunpack.c.l.b16 %v1309
    %v1528 = vunpack.c.l.b16 %v1310
    %v1529 = vunpack.c.h.b16 %v1310
    %v1530 = vunpack.c.l.b16 %v1311
    %v1531 = vunpack.c.l.b16 %v1312
    %v1532 = vunpack.c.h.b16 %v1312
    %v1533 = vunpack.c.l.b16 %v1313
    %v1534 = vunpack.c.l.b16 %v1314
    %v1535 = vunpack.c.h.b16 %v1314
    %v1536 = vunpack.c.l.b16 %v1315
    %v1537 = vunpack.c.l.b16 %v1316
    %v1538 = vunpack.c.h.b16 %v1316
    %v1539 = vunpack.c.l.b16 %v1317
    %v1540 = vunpack.c.l.b16 %v1318
    %v1541 = vunpack.c.h.b16 %v1318
    %v1542 = vunpack.c.l.b16 %v1319
    %v1543 = vunpack.c.l.b16 %v1320
    %v1544 = vunpack.c.h.b16 %v1320
    %v1545 = vunpack.c.l.b16 %v1321
    %v1546 = vunpack.c.l.b16 %v1322
    %v1547 = vunpack.c.h.b16 %v1322
    %v1548 = vunpack.c.l.b16 %v1323
    %v1549 = vunpack.c.l.b16 %v1324
    %v1550 = vunpack.c.h.b16 %v1324
    %v1551 = vunpack.c.l.b16 %v1325
    %v1552 = vunpack.c.l.b16 %v1326
    %v1553 = vunpack.c.h.b16 %v1326
    %v1554 = vunpack.c.l.b16 %v1327
    %v1555 = vunpack.c.l.b16 %v1328
    %v1556 = vunpack.c.h.b16 %v1328
    %v1557 = vunpack.c.l.b16 %v1329
    %v1558 = vunpack.c.l.b16 %v1330
    %v1559 = vunpack.c.h.b16 %v1330
    %v1560 = vunpack.c.l.b16 %v1331
    %v1561 = vunpack.c.l.b16 %v1332
    %v1562 = vunpack.c.h.b16 %v1332
    %v1563 = vunpack.c.l.b16 %v1333
    %v1564 = vunpack.c.l.b16 %v1334
    %v1565 = vunpack.c.h.b16 %v1334
    %v1566 = vunpack.c.l.b16 %v1335
    %v1567 = vunpack.c.l.b16 %v1336
    %v1568 = vunpack.c.h.b16 %v1336
    %v1569 = vunpack.c.l.b16 %v1337
    %v1570 = vunpack.c.l.b16 %v1338
    %v1571 = vunpack.c.h.b16 %v1338
    %v1572 = vunpack.c.l.b16 %v1339
    %v1573 = vunpack.c.l.b16 %v1340
    %v1574 = vunpack.c.h.b16 %v1340
    %v1575 = vunpack.c.l.b16 %v1341
    %v1576 = vunpack.c.l.b16 %v1342
    %v1577 = vunpack.c.h.b16 %v1342
    %v1578 = vunpack.c.l.b16 %v1343
    %v1579 = vunpack.c.l.b16 %v1344
    %v1580 = vunpack.c.h.b16 %v1344
    %v1581 = vunpack.c.l.b16 %v1345
    %v1582 = vunpack.c.l.b16 %v1346
    %v1583 = vunpack.c.h.b16 %v1346
    %v1584 = vunpack.c.l.b16 %v1347
    %v1585 = vunpack.c.l.b16 %v1348
    %v1586 = vunpack.c.h.b16 %v1348
    %v1587 = vunpack.c.l.b16 %v1349
    %v1588 = vunpack.c.l.b16 %v1350
    %v1589 = vunpack.c.h.b16 %v1350
    %v1590 = vunpack.c.l.b16 %v1351
    %v1591 = vunpack.c.l.b16 %v1352
    %v1592 = vunpack.c.h.b16 %v1352
    %v1593 = vunpack.c.l.b16 %v1353
    %v1594 = vunpack.c.l.b16 %v1354
    %v1595 = vunpack.c.h.b16 %v1354
    %v1596 = vunpack.c.l.b16 %v1355
    %v1597 = vunpack.c.l.b16 %v1356
    %v1598 = vunpack.c.h.b16 %v1356
    %v1599 = vunpack.c.l.b16 %v1357
    %v1600 = vunpack.c.l.b16 %v1358
    %v1601 = vunpack.c.h.b16 %v1358
    %v1602 = vunpack.c.l.b16 %v1359
    %v1603 = vunpack.c.l.b16 %v1360
    %v1604 = vunpack.c.h.b16 %v1360
    %v1605 = vunpack.c.l.b16 %v1361
    %v1606 = vunpack.c.l.b16 %v1362
    %v1607 = vunpack.c.h.b16 %v1362
    %v1608 = vunpack.c.l.b16 %v1363
    %v1609 = vunpack.c.l.b16 %v1364
    %v1610 = vunpack.c.h.b16 %v1364
    %v1611 = vunpack.c.l.b16 %v1365
    %v1612 = vunpack.c.l.b16 %v1366
    %v1613 = vunpack.c.h.b16 %v1366
    %v1614 = vunpack.c.l.b16 %v1367
    %v1615 = vunpack.c.l.b16 %v1368
    %v1616 = vunpack.c.h.b16 %v1368
    %v1617 = vunpack.c.l.b16 %v1369
    %v1618 = vunpack.c.l.b16 %v1370
    %v1619 = vunpack.c.h.b16 %v1370
    %v1620 = vunpack.c.l.b16 %v1371
    %v1621 = vunpack.c.l.b16 %v1372
    %v1622 = vunpack.c.h.b16 %v1372
    %v1623 = vunpack.c.l.b16 %v1373
    %v1624 = vunpack.c.l.b16 %v1374
    %v1625 = vunpack.c.h.b16 %v1374
    %v1626 = vunpack.c.l.b16 %v1375
    %v1627 = vunpack.c.l.b16 %v1376
    %v1628 = vunpack.c.h.b16 %v1376
    %v1629 = vunpack.c.l.b16 %v1377
    %v1630 = vpack.c.b16 %v1489, %v1486
    %v1631 = vpack.c.b16 %v1490, %v1487
    %v1632 = vpack.c.b16 %v1491, %v1488
    %v1633 = vpack.c.b16 %v1495, %v1492
    %v1634 = vpack.c.b16 %v1496, %v1493
    %v1635 = vpack.c.b16 %v1497, %v1494
    %v1636 = vpack.c.b16 %v1501, %v1498
    %v1637 = vpack.c.b16 %v1502, %v1499
    %v1638 = vpack.c.b16 %v1503, %v1500
    %v1639 = vpack.c.b16 %v1507, %v1504
    %v1640 = vpack.c.b16 %v1508, %v1505
    %v1641 = vpack.c.b16 %v1509, %v1506
    %v1642 = vpack.c.b16 %v1513, %v1510
    %v1643 = vpack.c.b16 %v1514, %v1511
    %v1644 = vpack.c.b16 %v1515, %v1512
    %v1645 = vpack.c.b16 %v1519, %v1516
    %v1646 = vpack.c.b16 %v1520, %v1517
    %v1647 = vpack.c.b16 %v1521, %v1518
    %v1648 = vpack.c.b16 %v1525, %v1522
    %v1649 = vpack.c.b16 %v1526, %v1523
    %v1650 = vpack.c.b16 %v1527, %v1524
    %v1651 = vpack.c.b16 %v1531, %v1528
    %v1652 = vpack.c.b16 %v1532, %v1529
    %v1653 = vpack.c.b16 %v1533, %v1530
    %v1654 = vpack.c.b16 %v1537, %v1534
    %v1655 = vpack.c.b16 %v1538, %v1535
    %v1656 = vpack.c.b16 %v1539, %v1536
    %v1657 = vpack.c.b16 %v1543, %v1540
    %v1658 = vpack.c.b16 %v1544, %v1541
    %v1659 = vpack.c.b16 %v1545, %v1542
    %v1660 = vpack.c.b16 %v1549, %v1546
    %v1661 = vpack.c.b16 %v1550, %v1547
    %v1662 = vpack.c.b16 %v1551, %v1548
    %v1663 = vpack.c.b16 %v1555, %v1552
    %v1664 = vpack.c.b16 %v1556, %v1553
    %v1665 = vpack.c.b16 %v1557, %v1554
    %v1666 = vpack.c.b16 %v1561, %v1558
    %v1667 = vpack.c.b16 %v1562, %v1559
    %v1668 = vpack.c.b16 %v1563, %v1560
    %v1669 = vpack.c.b16 %v1567, %v1564
    %v1670 = vpack.c.b16 %v1568, %v1565
    %v1671 = vpack.c.b16 %v1569, %v1566
    %v1672 = vpack.c.b16 %v1573, %v1570
    %v1673 = vpack.c.b16 %v1574, %v1571
    %v1674 = vpack.c.b16 %v1575, %v1572
    %v1675 = vpack.c.b16 %v1579, %v1576
    %v1676 = vpack.c.b16 %v1580, %v1577
    %v1677 = vpack.c.b16 %v1581, %v1578
    %v1678 = vpack.c.b16 %v1585, %v1582
    %v1679 = vpack.c.b16 %v1586, %v1583
    %v1680 = vpack.c.b16 %v1587, %v1584
    %v1681 = vpack.c.b16 %v1591, %v1588
    %v1682 = vpack.c.b16 %v1592, %v1589
    %v1683 = vpack.c.b16 %v1593, %v1590
    %v1684 = vpack.c.b16 %v1597, %v1594
    %v1685 = vpack.c.b16 %v1598, %v1595
    %v1686 = vpack.c.b16 %v1599, %v1596
    %v1687 = vpack.c.b16 %v1603, %v1600
    %v1688 = vpack.c.b16 %v1604, %v1601
    %v1689 = vpack.c.b16 %v1605, %v1602
    %v1690 = vpack.c.b16 %v1609, %v1606
    %v1691 = vpack.c.b16 %v1610, %v1607
    %v1692 = vpack.c.b16 %v1611, %v1608
    %v1693 = vpack.c.b16 %v1615, %v1612
    %v1694 = vpack.c.b16 %v1616, %v1613
    %v1695 = vpack.c.b16 %v1617, %v1614
    %v1696 = vpack.c.b16 %v1621, %v1618
    %v1697 = vpack.c.b16 %v1622, %v1619
    %v1698 = vpack.c.b16 %v1623, %v1620
    %v1699 = vpack.c.b16 %v1627, %v1624
    %v1700 = vpack.c.b16 %v1628, %v1625
    %v1701 = vpack.c.b16 %v1629, %v1626
    %1774 = vmatprep.subr.bf16.mxu0 %v1631
    %1775 = vmatpush1.bf16.msra.mxu0 %v1630
    %1776 = vmatprep.subr.bf16.mxu0 %v1634
    %1777 = vmatpush1.bf16.msra.mxu0 %v1633
    %1778 = vmatprep.subr.bf16.mxu0 %v1637
    %1779 = vmatpush1.bf16.msra.mxu0 %v1636
    %1780 = vmatprep.subr.bf16.mxu0 %v1640
    %1781 = vmatpush1.bf16.msra.mxu0 %v1639
    %1782 = vmatprep.subr.bf16.mxu0 %v1643
    %1783 = vmatpush1.bf16.msra.mxu0 %v1642
    %1784 = vmatprep.subr.bf16.mxu0 %v1646
    %1785 = vmatpush1.bf16.msra.mxu0 %v1645
    %1786 = vmatprep.subr.bf16.mxu0 %v1649
    %1787 = vmatpush1.bf16.msra.mxu0 %v1648
    %1788 = vmatprep.subr.bf16.mxu0 %v1652
    %1789 = vmatpush1.bf16.msra.mxu0 %v1651
    %1790 = vmatprep.subr.bf16.mxu0 %v1655
    %1791 = vmatpush1.bf16.msra.mxu0 %v1654
    %1792 = vmatprep.subr.bf16.mxu0 %v1658
    %1793 = vmatpush1.bf16.msra.mxu0 %v1657
    %1794 = vmatprep.subr.bf16.mxu0 %v1661
    %1795 = vmatpush1.bf16.msra.mxu0 %v1660
    %1796 = vmatprep.subr.bf16.mxu0 %v1664
    %1797 = vmatpush1.bf16.msra.mxu0 %v1663
    %1798 = vmatprep.subr.bf16.mxu0 %v1667
    %1799 = vmatpush1.bf16.msra.mxu0 %v1666
    %1800 = vmatprep.subr.bf16.mxu0 %v1670
    %1801 = vmatpush1.bf16.msra.mxu0 %v1669
    %1802 = vmatprep.subr.bf16.mxu0 %v1673
    %1803 = vmatpush1.bf16.msra.mxu0 %v1672
    %1804 = vmatprep.subr.bf16.mxu0 %v1676
    %1805 = vmatpush1.bf16.msra.mxu0 %v1675
    %1806 = vmatprep.mubr.bf16.mxu0 %v1280
    %1807 = vmatmul.mubr.bf16.gmra.mrb[0].mxu0 %v1279
    %v1808 = vpop.f32.mrb[0].mxu0
    %v1809 = vadd.f32 %v1381, %v1808
    %v1810 = vpop.f32.mrb[0].mxu0
    %v1811 = vadd.f32 %v1385, %v1810
    %v1812 = vpop.f32.mrb[0].mxu0
    %v1813 = vpop.f32.mrb[0].mxu0
    %1814 = vdwg.mxu0
    %1815 = vmatprep.subr.bf16.mxu0 %v1679
    %1816 = vmatpush1.bf16.msra.mxu0 %v1678
    %1817 = vmatprep.subr.bf16.mxu0 %v1682
    %1818 = vmatpush1.bf16.msra.mxu0 %v1681
    %1819 = vmatprep.subr.bf16.mxu0 %v1685
    %1820 = vmatpush1.bf16.msra.mxu0 %v1684
    %1821 = vmatprep.subr.bf16.mxu0 %v1688
    %1822 = vmatpush1.bf16.msra.mxu0 %v1687
    %1823 = vmatprep.subr.bf16.mxu0 %v1691
    %1824 = vmatpush1.bf16.msra.mxu0 %v1690
    %1825 = vmatprep.subr.bf16.mxu0 %v1694
    %1826 = vmatpush1.bf16.msra.mxu0 %v1693
    %1827 = vmatprep.subr.bf16.mxu0 %v1697
    %1828 = vmatpush1.bf16.msra.mxu0 %v1696
    %1829 = vmatprep.subr.bf16.mxu0 %v1700
    %1830 = vmatpush1.bf16.msra.mxu0 %v1699
    %1831 = vmatprep.subr.bf16.mxu0 0
    %1832 = vmatpush1.bf16.msra.mxu0 0
    %1833 = vmatprep.subr.bf16.mxu0 0
    %1834 = vmatpush1.bf16.msra.mxu0 0
    %1835 = vmatprep.subr.bf16.mxu0 0
    %1836 = vmatpush1.bf16.msra.mxu0 0
    %1837 = vmatprep.subr.bf16.mxu0 0
    %1838 = vmatpush1.bf16.msra.mxu0 0
    %1839 = vmatprep.subr.bf16.mxu0 0
    %1840 = vmatpush1.bf16.msra.mxu0 0
    %1841 = vmatprep.subr.bf16.mxu0 0
    %1842 = vmatpush1.bf16.msra.mxu0 0
    %1843 = vmatprep.subr.bf16.mxu0 0
    %1844 = vmatpush1.bf16.msra.mxu0 0
    %1845 = vmatprep.subr.bf16.mxu0 0
    %1846 = vmatpush1.bf16.msra.mxu0 0
    %1847 = vmatprep.mubr.bf16.mxu0 0
    %1848 = vmatmul.mubr.bf16.gmra.mrb[0].mxu0 %v1281
    %v1849 = vpop.f32.mrb[0].mxu0
    %v1850 = vadd.f32 %v1809, %v1849
    %v1851 = vpop.f32.mrb[0].mxu0
    %v1852 = vadd.f32 %v1811, %v1851
    %v1853 = vpop.f32.mrb[0].mxu0
    %v1854 = vpop.f32.mrb[0].mxu0
    %1855 = vdwg.mxu0
    %1856 = vmatprep.subr.bf16.mxu0 0
    %1857 = vmatpush1.bf16.msra.mxu0 %v1632
    %1858 = vmatprep.subr.bf16.mxu0 0
    %1859 = vmatpush1.bf16.msra.mxu0 %v1635
    %1860 = vmatprep.subr.bf16.mxu0 0
    %1861 = vmatpush1.bf16.msra.mxu0 %v1638
    %1862 = vmatprep.subr.bf16.mxu0 0
    %1863 = vmatpush1.bf16.msra.mxu0 %v1641
    %1864 = vmatprep.subr.bf16.mxu0 0
    %1865 = vmatpush1.bf16.msra.mxu0 %v1644
    %1866 = vmatprep.subr.bf16.mxu0 0
    %1867 = vmatpush1.bf16.msra.mxu0 %v1647
    %1868 = vmatprep.subr.bf16.mxu0 0
    %1869 = vmatpush1.bf16.msra.mxu0 %v1650
    %1870 = vmatprep.subr.bf16.mxu0 0
    %1871 = vmatpush1.bf16.msra.mxu0 %v1653
    %1872 = vmatprep.subr.bf16.mxu0 0
    %1873 = vmatpush1.bf16.msra.mxu0 %v1656
    %1874 = vmatprep.subr.bf16.mxu0 0
    %1875 = vmatpush1.bf16.msra.mxu0 %v1659
    %1876 = vmatprep.subr.bf16.mxu0 0
    %1877 = vmatpush1.bf16.msra.mxu0 %v1662
    %1878 = vmatprep.subr.bf16.mxu0 0
    %1879 = vmatpush1.bf16.msra.mxu0 %v1665
    %1880 = vmatprep.subr.bf16.mxu0 0
    %1881 = vmatpush1.bf16.msra.mxu0 %v1668
    %1882 = vmatprep.subr.bf16.mxu0 0
    %1883 = vmatpush1.bf16.msra.mxu0 %v1671
    %1884 = vmatprep.subr.bf16.mxu0 0
    %1885 = vmatpush1.bf16.msra.mxu0 %v1674
    %1886 = vmatprep.subr.bf16.mxu0 0
    %1887 = vmatpush1.bf16.msra.mxu0 %v1677
    %1888 = vmatprep.mubr.bf16.mxu0 %v1280
    %1889 = vmatmul.mubr.bf16.gmra.mrb[0].mxu0 %v1279
    %v1890 = vpop.f32.mrb[0].mxu0
    %v1891 = vadd.f32 %v1389, %v1890
    %v1892 = vpop.f32.mrb[0].mxu0
    %v1893 = vpop.f32.mrb[0].mxu0
    %v1894 = vpop.f32.mrb[0].mxu0
    %1895 = vdwg.mxu0
    %1896 = vmatprep.subr.bf16.mxu0 0
    %1897 = vmatpush1.bf16.msra.mxu0 %v1680
    %1898 = vmatprep.subr.bf16.mxu0 0
    %1899 = vmatpush1.bf16.msra.mxu0 %v1683
    %1900 = vmatprep.subr.bf16.mxu0 0
    %1901 = vmatpush1.bf16.msra.mxu0 %v1686
    %1902 = vmatprep.subr.bf16.mxu0 0
    %1903 = vmatpush1.bf16.msra.mxu0 %v1689
    %1904 = vmatprep.subr.bf16.mxu0 0
    %1905 = vmatpush1.bf16.msra.mxu0 %v1692
    %1906 = vmatprep.subr.bf16.mxu0 0
    %1907 = vmatpush1.bf16.msra.mxu0 %v1695
    %1908 = vmatprep.subr.bf16.mxu0 0
    %1909 = vmatpush1.bf16.msra.mxu0 %v1698
    %1910 = vmatprep.subr.bf16.mxu0 0
    %1911 = vmatpush1.bf16.msra.mxu0 %v1701
    %1912 = vmatprep.subr.bf16.mxu0 0
    %1913 = vmatpush1.bf16.msra.mxu0 0
    %1914 = vmatprep.subr.bf16.mxu0 0
    %1915 = vmatpush1.bf16.msra.mxu0 0
    %1916 = vmatprep.subr.bf16.mxu0 0
    %1917 = vmatpush1.bf16.msra.mxu0 0
    %1918 = vmatprep.subr.bf16.mxu0 0
    %1919 = vmatpush1.bf16.msra.mxu0 0
    %1920 = vmatprep.subr.bf16.mxu0 0
    %1921 = vmatpush1.bf16.msra.mxu0 0
    %1922 = vmatprep.subr.bf16.mxu0 0
    %1923 = vmatpush1.bf16.msra.mxu0 0
    %1924 = vmatprep.subr.bf16.mxu0 0
    %1925 = vmatpush1.bf16.msra.mxu0 0
    %1926 = vmatprep.subr.bf16.mxu0 0
    %1927 = vmatpush1.bf16.msra.mxu0 0
    %1928 = vmatprep.mubr.bf16.mxu0 0
    %1929 = vmatmul.mubr.bf16.gmra.mrb[0].mxu0 %v1281
    %v1930 = vpop.f32.mrb[0].mxu0
    %v1931 = vadd.f32 %v1891, %v1930
    %v1932 = vpop.f32.mrb[0].mxu0
    %v1933 = vpop.f32.mrb[0].mxu0
    %v1934 = vpop.f32.mrb[0].mxu0
    %1935 = vdwg.mxu0
    %v1936 = vmax.f32 %v1850, 0.0
    %v1937 = vmax.f32 %v1852, 0.0
    %v1938 = vmax.f32 %v1931, 0.0
    %v1939 = vpack.c.bf16 %v1936, %v1936
    %v1940 = vpack.c.bf16 %v1937, %v1937
    %v1941 = vpack.c.bf16 %v1938, %v1938
    %v1942 = vld [vmem:[#allocation9] sm:$0xff]
    %v1943 = vld [vmem:[#allocation9 + $0x8] sm:$0xf]
    %v1944 = vld [vmem:[#allocation9 + $0xc] sm:$0xff]
    %v1945 = vld [vmem:[#allocation9 + $0x14] sm:$0xf]
    %v1946 = vld [vmem:[#allocation9 + $0x18] sm:$0xff]
    %v1947 = vld [vmem:[#allocation9 + $0x20] sm:$0xf]
    %v1948 = vld [vmem:[#allocation9 + $0x24] sm:$0xff]
    %v1949 = vld [vmem:[#allocation9 + $0x2c] sm:$0xf]
    %v1950 = vld [vmem:[#allocation9 + $0x30] sm:$0xff]
    %v1951 = vld [vmem:[#allocation9 + $0x38] sm:$0xf]
    %v1952 = vld [vmem:[#allocation9 + $0x3c] sm:$0xff]
    %v1953 = vld [vmem:[#allocation9 + $0x44] sm:$0xf]
    %v1954 = vld [vmem:[#allocation9 + $0x48] sm:$0xff]
    %v1955 = vld [vmem:[#allocation9 + $0x50] sm:$0xf]
    %v1956 = vld [vmem:[#allocation9 + $0x54] sm:$0xff]
    %v1957 = vld [vmem:[#allocation9 + $0x5c] sm:$0xf]
    %v1958 = vld [vmem:[#allocation9 + $0x60] sm:$0xff]
    %v1959 = vld [vmem:[#allocation9 + $0x68] sm:$0xf]
    %v1960 = vld [vmem:[#allocation9 + $0x6c] sm:$0xff]
    %v1961 = vld [vmem:[#allocation9 + $0x74] sm:$0xf]
    %v1962 = vld [vmem:[#allocation9 + $0x78] sm:$0xff]
    %v1963 = vld [vmem:[#allocation9 + $0x80] sm:$0xf]
    %v1964 = vld [vmem:[#allocation9 + $0x84] sm:$0xff]
    %v1965 = vld [vmem:[#allocation9 + $0x8c] sm:$0xf]
    %v1966 = vld [vmem:[#allocation9 + $0x90] sm:$0xff]
    %v1967 = vld [vmem:[#allocation9 + $0x98] sm:$0xf]
    %v1968 = vld [vmem:[#allocation9 + $0x9c] sm:$0xff]
    %v1969 = vld [vmem:[#allocation9 + $0xa4] sm:$0xf]
    %v1970 = vld [vmem:[#allocation9 + $0xa8] sm:$0xff]
    %v1971 = vld [vmem:[#allocation9 + $0xb0] sm:$0xf]
    %v1972 = vld [vmem:[#allocation9 + $0xb4] sm:$0xff]
    %v1973 = vld [vmem:[#allocation9 + $0xbc] sm:$0xf]
    %v1974 = vld [vmem:[#allocation9 + $0xc0] sm:$0xff]
    %v1975 = vld [vmem:[#allocation9 + $0xc8] sm:$0xf]
    %v1976 = vld [vmem:[#allocation9 + $0xcc] sm:$0xff]
    %v1977 = vld [vmem:[#allocation9 + $0xd4] sm:$0xf]
    %v1978 = vld [vmem:[#allocation9 + $0xd8] sm:$0xff]
    %v1979 = vld [vmem:[#allocation9 + $0xe0] sm:$0xf]
    %v1980 = vld [vmem:[#allocation9 + $0xe4] sm:$0xff]
    %v1981 = vld [vmem:[#allocation9 + $0xec] sm:$0xf]
    %v1982 = vld [vmem:[#allocation9 + $0xf0] sm:$0xff]
    %v1983 = vld [vmem:[#allocation9 + $0xf8] sm:$0xf]
    %v1984 = vld [vmem:[#allocation9 + $0xfc] sm:$0xff]
    %v1985 = vld [vmem:[#allocation9 + $0x104] sm:$0xf]
    %v1986 = vld [vmem:[#allocation9 + $0x108] sm:$0xff]
    %v1987 = vld [vmem:[#allocation9 + $0x110] sm:$0xf]
    %v1988 = vld [vmem:[#allocation9 + $0x114] sm:$0xff]
    %v1989 = vld [vmem:[#allocation9 + $0x11c] sm:$0xf]
    %v1990 = vld [vmem:[#allocation9 + $0x120] sm:$0xff]
    %v1991 = vld [vmem:[#allocation9 + $0x128] sm:$0xf]
    %v1992 = vld [vmem:[#allocation9 + $0x12c] sm:$0xff]
    %v1993 = vld [vmem:[#allocation9 + $0x134] sm:$0xf]
    %v1994 = vld [vmem:[#allocation9 + $0x138] sm:$0xff]
    %v1995 = vld [vmem:[#allocation9 + $0x140] sm:$0xf]
    %v1996 = vld [vmem:[#allocation9 + $0x144] sm:$0xff]
    %v1997 = vld [vmem:[#allocation9 + $0x14c] sm:$0xf]
    %v1998 = vld [vmem:[#allocation9 + $0x150] sm:$0xff]
    %v1999 = vld [vmem:[#allocation9 + $0x158] sm:$0xf]
    %v2000 = vld [vmem:[#allocation9 + $0x15c] sm:$0xff]
    %v2001 = vld [vmem:[#allocation9 + $0x164] sm:$0xf]
    %v2002 = vld [vmem:[#allocation9 + $0x168] sm:$0xff]
    %v2003 = vld [vmem:[#allocation9 + $0x170] sm:$0xf]
    %v2004 = vld [vmem:[#allocation9 + $0x174] sm:$0xff]
    %v2005 = vld [vmem:[#allocation9 + $0x17c] sm:$0xf]
    %v2006 = vld [vmem:[#allocation9 + $0x180] sm:$0xff]
    %v2007 = vld [vmem:[#allocation9 + $0x188] sm:$0xf]
    %v2008 = vld [vmem:[#allocation9 + $0x18c] sm:$0xff]
    %v2009 = vld [vmem:[#allocation9 + $0x194] sm:$0xf]
    %v2010 = vld [vmem:[#allocation9 + $0x198] sm:$0xff]
    %v2011 = vld [vmem:[#allocation9 + $0x1a0] sm:$0xf]
    %v2012 = vld [vmem:[#allocation9 + $0x1a4] sm:$0xff]
    %v2013 = vld [vmem:[#allocation9 + $0x1ac] sm:$0xf]
    %v2014 = vld [vmem:[#allocation9 + $0x1b0] sm:$0xff]
    %v2015 = vld [vmem:[#allocation9 + $0x1b8] sm:$0xf]
    %v2016 = vld [vmem:[#allocation9 + $0x1bc] sm:$0xff]
    %v2017 = vld [vmem:[#allocation9 + $0x1c4] sm:$0xf]
    %v2018 = vld [vmem:[#allocation9 + $0x1c8] sm:$0xff]
    %v2019 = vld [vmem:[#allocation9 + $0x1d0] sm:$0xf]
    %v2020 = vld [vmem:[#allocation9 + $0x1d4] sm:$0xff]
    %v2021 = vld [vmem:[#allocation9 + $0x1dc] sm:$0xf]
    %v2022 = vld [vmem:[#allocation9 + $0x1e0] sm:$0xff]
    %v2023 = vld [vmem:[#allocation9 + $0x1e8] sm:$0xf]
    %v2024 = vld [vmem:[#allocation9 + $0x1ec] sm:$0xff]
    %v2025 = vld [vmem:[#allocation9 + $0x1f4] sm:$0xf]
    %v2026 = vld [vmem:[#allocation9 + $0x1f8] sm:$0xff]
    %v2027 = vld [vmem:[#allocation9 + $0x200] sm:$0xf]
    %v2028 = vld [vmem:[#allocation9 + $0x204] sm:$0xff]
    %v2029 = vld [vmem:[#allocation9 + $0x20c] sm:$0xf]
    %v2030 = vld [vmem:[#allocation9 + $0x210] sm:$0xff]
    %v2031 = vld [vmem:[#allocation9 + $0x218] sm:$0xf]
    %v2032 = vld [vmem:[#allocation9 + $0x21c] sm:$0xff]
    %v2033 = vld [vmem:[#allocation9 + $0x224] sm:$0xf]
    %v2034 = vld [vmem:[#allocation9 + $0x228] sm:$0xff]
    %v2035 = vld [vmem:[#allocation9 + $0x230] sm:$0xf]
    %v2036 = vld [vmem:[#allocation9 + $0x234] sm:$0xff]
    %v2037 = vld [vmem:[#allocation9 + $0x23c] sm:$0xf]
    %v2038 = vld [vmem:[#allocation9 + $0x240] sm:$0xff]
    %v2039 = vld [vmem:[#allocation9 + $0x248] sm:$0xf]
    %v2040 = vld [vmem:[#allocation9 + $0x24c] sm:$0xff]
    %v2041 = vld [vmem:[#allocation9 + $0x254] sm:$0xf]
    %v2042 = vld [vmem:[#allocation9 + $0x258] sm:$0xff]
    %v2043 = vld [vmem:[#allocation9 + $0x260] sm:$0xf]
    %v2044 = vld [vmem:[#allocation9 + $0x264] sm:$0xff]
    %v2045 = vld [vmem:[#allocation9 + $0x26c] sm:$0xf]
    %v2046 = vld [vmem:[#allocation9 + $0x270] sm:$0xff]
    %v2047 = vld [vmem:[#allocation9 + $0x278] sm:$0xf]
    %v2048 = vld [vmem:[#allocation9 + $0x27c] sm:$0xff]
    %v2049 = vld [vmem:[#allocation9 + $0x284] sm:$0xf]
    %v2050 = vld [vmem:[#allocation9 + $0x288] sm:$0xff]
    %v2051 = vld [vmem:[#allocation9 + $0x290] sm:$0xf]
    %v2052 = vld [vmem:[#allocation9 + $0x294] sm:$0xff]
    %v2053 = vld [vmem:[#allocation9 + $0x29c] sm:$0xf]
    %v2054 = vld [vmem:[#allocation9 + $0x2a0] sm:$0xff]
    %v2055 = vld [vmem:[#allocation9 + $0x2a8] sm:$0xf]
    %v2056 = vld [vmem:[#allocation9 + $0x2ac] sm:$0xff]
    %v2057 = vld [vmem:[#allocation9 + $0x2b4] sm:$0xf]
    %v2058 = vld [vmem:[#allocation9 + $0x2b8] sm:$0xff]
    %v2059 = vld [vmem:[#allocation9 + $0x2c0] sm:$0xf]
    %v2060 = vld [vmem:[#allocation9 + $0x2c4] sm:$0xff]
    %v2061 = vld [vmem:[#allocation9 + $0x2cc] sm:$0xf]
    %v2062 = vld [vmem:[#allocation9 + $0x2d0] sm:$0xff]
    %v2063 = vld [vmem:[#allocation9 + $0x2d8] sm:$0xf]
    %v2064 = vld [vmem:[#allocation9 + $0x2dc] sm:$0xff]
    %v2065 = vld [vmem:[#allocation9 + $0x2e4] sm:$0xf]
    %v2066 = vld [vmem:[#allocation9 + $0x2e8] sm:$0xff]
    %v2067 = vld [vmem:[#allocation9 + $0x2f0] sm:$0xf]
    %v2068 = vld [vmem:[#allocation9 + $0x2f4] sm:$0xff]
    %v2069 = vld [vmem:[#allocation9 + $0x2fc] sm:$0xf]
    %v2070 = vlaneseq
    %v2071 = vshrl.u32 %v2070, 7
    %v2072 = vsub.s32 3, %v2071
    %v2073 = vrot.slane %v142, %v2072
    %v2074 = vlaneseq
    %v2075 = vshrl.u32 %v2074, 7
    %v2076 = vsub.s32 3, %v2075
    %v2077 = vrot.slane %v143, %v2076
    %v2078 = vlaneseq
    %v2079 = vshrl.u32 %v2078, 7
    %v2080 = vsub.s32 3, %v2079
    %v2081 = vrot.slane %v144, %v2080
    %v2210 = vunpack.c.l.b16 %v1942
    %v2211 = vunpack.c.h.b16 %v1942
    %v2212 = vunpack.c.l.b16 %v1943
    %v2213 = vunpack.c.l.b16 %v1944
    %v2214 = vunpack.c.h.b16 %v1944
    %v2215 = vunpack.c.l.b16 %v1945
    %v2216 = vunpack.c.l.b16 %v1946
    %v2217 = vunpack.c.h.b16 %v1946
    %v2218 = vunpack.c.l.b16 %v1947
    %v2219 = vunpack.c.l.b16 %v1948
    %v2220 = vunpack.c.h.b16 %v1948
    %v2221 = vunpack.c.l.b16 %v1949
    %v2222 = vunpack.c.l.b16 %v1950
    %v2223 = vunpack.c.h.b16 %v1950
    %v2224 = vunpack.c.l.b16 %v1951
    %v2225 = vunpack.c.l.b16 %v1952
    %v2226 = vunpack.c.h.b16 %v1952
    %v2227 = vunpack.c.l.b16 %v1953
    %v2228 = vunpack.c.l.b16 %v1954
    %v2229 = vunpack.c.h.b16 %v1954
    %v2230 = vunpack.c.l.b16 %v1955
    %v2231 = vunpack.c.l.b16 %v1956
    %v2232 = vunpack.c.h.b16 %v1956
    %v2233 = vunpack.c.l.b16 %v1957
    %v2234 = vunpack.c.l.b16 %v1958
    %v2235 = vunpack.c.h.b16 %v1958
    %v2236 = vunpack.c.l.b16 %v1959
    %v2237 = vunpack.c.l.b16 %v1960
    %v2238 = vunpack.c.h.b16 %v1960
    %v2239 = vunpack.c.l.b16 %v1961
    %v2240 = vunpack.c.l.b16 %v1962
    %v2241 = vunpack.c.h.b16 %v1962
    %v2242 = vunpack.c.l.b16 %v1963
    %v2243 = vunpack.c.l.b16 %v1964
    %v2244 = vunpack.c.h.b16 %v1964
    %v2245 = vunpack.c.l.b16 %v1965
    %v2246 = vunpack.c.l.b16 %v1966
    %v2247 = vunpack.c.h.b16 %v1966
    %v2248 = vunpack.c.l.b16 %v1967
    %v2249 = vunpack.c.l.b16 %v1968
    %v2250 = vunpack.c.h.b16 %v1968
    %v2251 = vunpack.c.l.b16 %v1969
    %v2252 = vunpack.c.l.b16 %v1970
    %v2253 = vunpack.c.h.b16 %v1970
    %v2254 = vunpack.c.l.b16 %v1971
    %v2255 = vunpack.c.l.b16 %v1972
    %v2256 = vunpack.c.h.b16 %v1972
    %v2257 = vunpack.c.l.b16 %v1973
    %v2258 = vunpack.c.l.b16 %v1974
    %v2259 = vunpack.c.h.b16 %v1974
    %v2260 = vunpack.c.l.b16 %v1975
    %v2261 = vunpack.c.l.b16 %v1976
    %v2262 = vunpack.c.h.b16 %v1976
    %v2263 = vunpack.c.l.b16 %v1977
    %v2264 = vunpack.c.l.b16 %v1978
    %v2265 = vunpack.c.h.b16 %v1978
    %v2266 = vunpack.c.l.b16 %v1979
    %v2267 = vunpack.c.l.b16 %v1980
    %v2268 = vunpack.c.h.b16 %v1980
    %v2269 = vunpack.c.l.b16 %v1981
    %v2270 = vunpack.c.l.b16 %v1982
    %v2271 = vunpack.c.h.b16 %v1982
    %v2272 = vunpack.c.l.b16 %v1983
    %v2273 = vunpack.c.l.b16 %v1984
    %v2274 = vunpack.c.h.b16 %v1984
    %v2275 = vunpack.c.l.b16 %v1985
    %v2276 = vunpack.c.l.b16 %v1986
    %v2277 = vunpack.c.h.b16 %v1986
    %v2278 = vunpack.c.l.b16 %v1987
    %v2279 = vunpack.c.l.b16 %v1988
    %v2280 = vunpack.c.h.b16 %v1988
    %v2281 = vunpack.c.l.b16 %v1989
    %v2282 = vunpack.c.l.b16 %v1990
    %v2283 = vunpack.c.h.b16 %v1990
    %v2284 = vunpack.c.l.b16 %v1991
    %v2285 = vunpack.c.l.b16 %v1992
    %v2286 = vunpack.c.h.b16 %v1992
    %v2287 = vunpack.c.l.b16 %v1993
    %v2288 = vunpack.c.l.b16 %v1994
    %v2289 = vunpack.c.h.b16 %v1994
    %v2290 = vunpack.c.l.b16 %v1995
    %v2291 = vunpack.c.l.b16 %v1996
    %v2292 = vunpack.c.h.b16 %v1996
    %v2293 = vunpack.c.l.b16 %v1997
    %v2294 = vunpack.c.l.b16 %v1998
    %v2295 = vunpack.c.h.b16 %v1998
    %v2296 = vunpack.c.l.b16 %v1999
    %v2297 = vunpack.c.l.b16 %v2000
    %v2298 = vunpack.c.h.b16 %v2000
    %v2299 = vunpack.c.l.b16 %v2001
    %v2300 = vunpack.c.l.b16 %v2002
    %v2301 = vunpack.c.h.b16 %v2002
    %v2302 = vunpack.c.l.b16 %v2003
    %v2303 = vunpack.c.l.b16 %v2004
    %v2304 = vunpack.c.h.b16 %v2004
    %v2305 = vunpack.c.l.b16 %v2005
    %v2306 = vunpack.c.l.b16 %v2006
    %v2307 = vunpack.c.h.b16 %v2006
    %v2308 = vunpack.c.l.b16 %v2007
    %v2309 = vunpack.c.l.b16 %v2008
    %v2310 = vunpack.c.h.b16 %v2008
    %v2311 = vunpack.c.l.b16 %v2009
    %v2312 = vunpack.c.l.b16 %v2010
    %v2313 = vunpack.c.h.b16 %v2010
    %v2314 = vunpack.c.l.b16 %v2011
    %v2315 = vunpack.c.l.b16 %v2012
    %v2316 = vunpack.c.h.b16 %v2012
    %v2317 = vunpack.c.l.b16 %v2013
    %v2318 = vunpack.c.l.b16 %v2014
    %v2319 = vunpack.c.h.b16 %v2014
    %v2320 = vunpack.c.l.b16 %v2015
    %v2321 = vunpack.c.l.b16 %v2016
    %v2322 = vunpack.c.h.b16 %v2016
    %v2323 = vunpack.c.l.b16 %v2017
    %v2324 = vunpack.c.l.b16 %v2018
    %v2325 = vunpack.c.h.b16 %v2018
    %v2326 = vunpack.c.l.b16 %v2019
    %v2327 = vunpack.c.l.b16 %v2020
    %v2328 = vunpack.c.h.b16 %v2020
    %v2329 = vunpack.c.l.b16 %v2021
    %v2330 = vunpack.c.l.b16 %v2022
    %v2331 = vunpack.c.h.b16 %v2022
    %v2332 = vunpack.c.l.b16 %v2023
    %v2333 = vunpack.c.l.b16 %v2024
    %v2334 = vunpack.c.h.b16 %v2024
    %v2335 = vunpack.c.l.b16 %v2025
    %v2336 = vunpack.c.l.b16 %v2026
    %v2337 = vunpack.c.h.b16 %v2026
    %v2338 = vunpack.c.l.b16 %v2027
    %v2339 = vunpack.c.l.b16 %v2028
    %v2340 = vunpack.c.h.b16 %v2028
    %v2341 = vunpack.c.l.b16 %v2029
    %v2342 = vunpack.c.l.b16 %v2030
    %v2343 = vunpack.c.h.b16 %v2030
    %v2344 = vunpack.c.l.b16 %v2031
    %v2345 = vunpack.c.l.b16 %v2032
    %v2346 = vunpack.c.h.b16 %v2032
    %v2347 = vunpack.c.l.b16 %v2033
    %v2348 = vunpack.c.l.b16 %v2034
    %v2349 = vunpack.c.h.b16 %v2034
    %v2350 = vunpack.c.l.b16 %v2035
    %v2351 = vunpack.c.l.b16 %v2036
    %v2352 = vunpack.c.h.b16 %v2036
    %v2353 = vunpack.c.l.b16 %v2037
    %v2354 = vunpack.c.l.b16 %v2038
    %v2355 = vunpack.c.h.b16 %v2038
    %v2356 = vunpack.c.l.b16 %v2039
    %v2357 = vunpack.c.l.b16 %v2040
    %v2358 = vunpack.c.h.b16 %v2040
    %v2359 = vunpack.c.l.b16 %v2041
    %v2360 = vunpack.c.l.b16 %v2042
    %v2361 = vunpack.c.h.b16 %v2042
    %v2362 = vunpack.c.l.b16 %v2043
    %v2363 = vunpack.c.l.b16 %v2044
    %v2364 = vunpack.c.h.b16 %v2044
    %v2365 = vunpack.c.l.b16 %v2045
    %v2366 = vunpack.c.l.b16 %v2046
    %v2367 = vunpack.c.h.b16 %v2046
    %v2368 = vunpack.c.l.b16 %v2047
    %v2369 = vunpack.c.l.b16 %v2048
    %v2370 = vunpack.c.h.b16 %v2048
    %v2371 = vunpack.c.l.b16 %v2049
    %v2372 = vunpack.c.l.b16 %v2050
    %v2373 = vunpack.c.h.b16 %v2050
    %v2374 = vunpack.c.l.b16 %v2051
    %v2375 = vunpack.c.l.b16 %v2052
    %v2376 = vunpack.c.h.b16 %v2052
    %v2377 = vunpack.c.l.b16 %v2053
    %v2378 = vunpack.c.l.b16 %v2054
    %v2379 = vunpack.c.h.b16 %v2054
    %v2380 = vunpack.c.l.b16 %v2055
    %v2381 = vunpack.c.l.b16 %v2056
    %v2382 = vunpack.c.h.b16 %v2056
    %v2383 = vunpack.c.l.b16 %v2057
    %v2384 = vunpack.c.l.b16 %v2058
    %v2385 = vunpack.c.h.b16 %v2058
    %v2386 = vunpack.c.l.b16 %v2059
    %v2387 = vunpack.c.l.b16 %v2060
    %v2388 = vunpack.c.h.b16 %v2060
    %v2389 = vunpack.c.l.b16 %v2061
    %v2390 = vunpack.c.l.b16 %v2062
    %v2391 = vunpack.c.h.b16 %v2062
    %v2392 = vunpack.c.l.b16 %v2063
    %v2393 = vunpack.c.l.b16 %v2064
    %v2394 = vunpack.c.h.b16 %v2064
    %v2395 = vunpack.c.l.b16 %v2065
    %v2396 = vunpack.c.l.b16 %v2066
    %v2397 = vunpack.c.h.b16 %v2066
    %v2398 = vunpack.c.l.b16 %v2067
    %v2399 = vunpack.c.l.b16 %v2068
    %v2400 = vunpack.c.h.b16 %v2068
    %v2401 = vunpack.c.l.b16 %v2069
    %v2402 = vpack.c.b16 %v2213, %v2210
    %v2403 = vpack.c.b16 %v2214, %v2211
    %v2404 = vpack.c.b16 %v2215, %v2212
    %v2405 = vpack.c.b16 %v2219, %v2216
    %v2406 = vpack.c.b16 %v2220, %v2217
    %v2407 = vpack.c.b16 %v2221, %v2218
    %v2408 = vpack.c.b16 %v2225, %v2222
    %v2409 = vpack.c.b16 %v2226, %v2223
    %v2410 = vpack.c.b16 %v2227, %v2224
    %v2411 = vpack.c.b16 %v2231, %v2228
    %v2412 = vpack.c.b16 %v2232, %v2229
    %v2413 = vpack.c.b16 %v2233, %v2230
    %v2414 = vpack.c.b16 %v2237, %v2234
    %v2415 = vpack.c.b16 %v2238, %v2235
    %v2416 = vpack.c.b16 %v2239, %v2236
    %v2417 = vpack.c.b16 %v2243, %v2240
    %v2418 = vpack.c.b16 %v2244, %v2241
    %v2419 = vpack.c.b16 %v2245, %v2242
    %v2420 = vpack.c.b16 %v2249, %v2246
    %v2421 = vpack.c.b16 %v2250, %v2247
    %v2422 = vpack.c.b16 %v2251, %v2248
    %v2423 = vpack.c.b16 %v2255, %v2252
    %v2424 = vpack.c.b16 %v2256, %v2253
    %v2425 = vpack.c.b16 %v2257, %v2254
    %v2426 = vpack.c.b16 %v2261, %v2258
    %v2427 = vpack.c.b16 %v2262, %v2259
    %v2428 = vpack.c.b16 %v2263, %v2260
    %v2429 = vpack.c.b16 %v2267, %v2264
    %v2430 = vpack.c.b16 %v2268, %v2265
    %v2431 = vpack.c.b16 %v2269, %v2266
    %v2432 = vpack.c.b16 %v2273, %v2270
    %v2433 = vpack.c.b16 %v2274, %v2271
    %v2434 = vpack.c.b16 %v2275, %v2272
    %v2435 = vpack.c.b16 %v2279, %v2276
    %v2436 = vpack.c.b16 %v2280, %v2277
    %v2437 = vpack.c.b16 %v2281, %v2278
    %v2438 = vpack.c.b16 %v2285, %v2282
    %v2439 = vpack.c.b16 %v2286, %v2283
    %v2440 = vpack.c.b16 %v2287, %v2284
    %v2441 = vpack.c.b16 %v2291, %v2288
    %v2442 = vpack.c.b16 %v2292, %v2289
    %v2443 = vpack.c.b16 %v2293, %v2290
    %v2444 = vpack.c.b16 %v2297, %v2294
    %v2445 = vpack.c.b16 %v2298, %v2295
    %v2446 = vpack.c.b16 %v2299, %v2296
    %v2447 = vpack.c.b16 %v2303, %v2300
    %v2448 = vpack.c.b16 %v2304, %v2301
    %v2449 = vpack.c.b16 %v2305, %v2302
    %v2450 = vpack.c.b16 %v2309, %v2306
    %v2451 = vpack.c.b16 %v2310, %v2307
    %v2452 = vpack.c.b16 %v2311, %v2308
    %v2453 = vpack.c.b16 %v2315, %v2312
    %v2454 = vpack.c.b16 %v2316, %v2313
    %v2455 = vpack.c.b16 %v2317, %v2314
    %v2456 = vpack.c.b16 %v2321, %v2318
    %v2457 = vpack.c.b16 %v2322, %v2319
    %v2458 = vpack.c.b16 %v2323, %v2320
    %v2459 = vpack.c.b16 %v2327, %v2324
    %v2460 = vpack.c.b16 %v2328, %v2325
    %v2461 = vpack.c.b16 %v2329, %v2326
    %v2462 = vpack.c.b16 %v2333, %v2330
    %v2463 = vpack.c.b16 %v2334, %v2331
    %v2464 = vpack.c.b16 %v2335, %v2332
    %v2465 = vpack.c.b16 %v2339, %v2336
    %v2466 = vpack.c.b16 %v2340, %v2337
    %v2467 = vpack.c.b16 %v2341, %v2338
    %v2468 = vpack.c.b16 %v2345, %v2342
    %v2469 = vpack.c.b16 %v2346, %v2343
    %v2470 = vpack.c.b16 %v2347, %v2344
    %v2471 = vpack.c.b16 %v2351, %v2348
    %v2472 = vpack.c.b16 %v2352, %v2349
    %v2473 = vpack.c.b16 %v2353, %v2350
    %v2474 = vpack.c.b16 %v2357, %v2354
    %v2475 = vpack.c.b16 %v2358, %v2355
    %v2476 = vpack.c.b16 %v2359, %v2356
    %v2477 = vpack.c.b16 %v2363, %v2360
    %v2478 = vpack.c.b16 %v2364, %v2361
    %v2479 = vpack.c.b16 %v2365, %v2362
    %v2480 = vpack.c.b16 %v2369, %v2366
    %v2481 = vpack.c.b16 %v2370, %v2367
    %v2482 = vpack.c.b16 %v2371, %v2368
    %v2483 = vpack.c.b16 %v2375, %v2372
    %v2484 = vpack.c.b16 %v2376, %v2373
    %v2485 = vpack.c.b16 %v2377, %v2374
    %v2486 = vpack.c.b16 %v2381, %v2378
    %v2487 = vpack.c.b16 %v2382, %v2379
    %v2488 = vpack.c.b16 %v2383, %v2380
    %v2489 = vpack.c.b16 %v2387, %v2384
    %v2490 = vpack.c.b16 %v2388, %v2385
    %v2491 = vpack.c.b16 %v2389, %v2386
    %v2492 = vpack.c.b16 %v2393, %v2390
    %v2493 = vpack.c.b16 %v2394, %v2391
    %v2494 = vpack.c.b16 %v2395, %v2392
    %v2495 = vpack.c.b16 %v2399, %v2396
    %v2496 = vpack.c.b16 %v2400, %v2397
    %v2497 = vpack.c.b16 %v2401, %v2398
    %2594 = vmatprep.subr.bf16.mxu0 %v2403
    %2595 = vmatpush1.bf16.msra.mxu0 %v2402
    %2596 = vmatprep.subr.bf16.mxu0 %v2406
    %2597 = vmatpush1.bf16.msra.mxu0 %v2405
    %2598 = vmatprep.subr.bf16.mxu0 %v2409
    %2599 = vmatpush1.bf16.msra.mxu0 %v2408
    %2600 = vmatprep.subr.bf16.mxu0 %v2412
    %2601 = vmatpush1.bf16.msra.mxu0 %v2411
    %2602 = vmatprep.subr.bf16.mxu0 %v2415
    %2603 = vmatpush1.bf16.msra.mxu0 %v2414
    %2604 = vmatprep.subr.bf16.mxu0 %v2418
    %2605 = vmatpush1.bf16.msra.mxu0 %v2417
    %2606 = vmatprep.subr.bf16.mxu0 %v2421
    %2607 = vmatpush1.bf16.msra.mxu0 %v2420
    %2608 = vmatprep.subr.bf16.mxu0 %v2424
    %2609 = vmatpush1.bf16.msra.mxu0 %v2423
    %2610 = vmatprep.subr.bf16.mxu0 %v2427
    %2611 = vmatpush1.bf16.msra.mxu0 %v2426
    %2612 = vmatprep.subr.bf16.mxu0 %v2430
    %2613 = vmatpush1.bf16.msra.mxu0 %v2429
    %2614 = vmatprep.subr.bf16.mxu0 %v2433
    %2615 = vmatpush1.bf16.msra.mxu0 %v2432
    %2616 = vmatprep.subr.bf16.mxu0 %v2436
    %2617 = vmatpush1.bf16.msra.mxu0 %v2435
    %2618 = vmatprep.subr.bf16.mxu0 %v2439
    %2619 = vmatpush1.bf16.msra.mxu0 %v2438
    %2620 = vmatprep.subr.bf16.mxu0 %v2442
    %2621 = vmatpush1.bf16.msra.mxu0 %v2441
    %2622 = vmatprep.subr.bf16.mxu0 %v2445
    %2623 = vmatpush1.bf16.msra.mxu0 %v2444
    %2624 = vmatprep.subr.bf16.mxu0 %v2448
    %2625 = vmatpush1.bf16.msra.mxu0 %v2447
    %2626 = vmatprep.mubr.bf16.mxu0 %v459
    %2627 = vmatmul.mubr.bf16.gmra.mrb[0].mxu0 %v458
    %v2628 = vpop.f32.mrb[0].mxu0
    %v2629 = vadd.f32 %v2073, %v2628
    %v2630 = vpop.f32.mrb[0].mxu0
    %v2631 = vadd.f32 %v2077, %v2630
    %v2632 = vpop.f32.mrb[0].mxu0
    %v2633 = vpop.f32.mrb[0].mxu0
    %2634 = vdwg.mxu0
    %2635 = vmatprep.subr.bf16.mxu0 %v2451
    %2636 = vmatpush1.bf16.msra.mxu0 %v2450
    %2637 = vmatprep.subr.bf16.mxu0 %v2454
    %2638 = vmatpush1.bf16.msra.mxu0 %v2453
    %2639 = vmatprep.subr.bf16.mxu0 %v2457
    %2640 = vmatpush1.bf16.msra.mxu0 %v2456
    %2641 = vmatprep.subr.bf16.mxu0 %v2460
    %2642 = vmatpush1.bf16.msra.mxu0 %v2459
    %2643 = vmatprep.subr.bf16.mxu0 %v2463
    %2644 = vmatpush1.bf16.msra.mxu0 %v2462
    %2645 = vmatprep.subr.bf16.mxu0 %v2466
    %2646 = vmatpush1.bf16.msra.mxu0 %v2465
    %2647 = vmatprep.subr.bf16.mxu0 %v2469
    %2648 = vmatpush1.bf16.msra.mxu0 %v2468
    %2649 = vmatprep.subr.bf16.mxu0 %v2472
    %2650 = vmatpush1.bf16.msra.mxu0 %v2471
    %2651 = vmatprep.subr.bf16.mxu0 %v2475
    %2652 = vmatpush1.bf16.msra.mxu0 %v2474
    %2653 = vmatprep.subr.bf16.mxu0 %v2478
    %2654 = vmatpush1.bf16.msra.mxu0 %v2477
    %2655 = vmatprep.subr.bf16.mxu0 %v2481
    %2656 = vmatpush1.bf16.msra.mxu0 %v2480
    %2657 = vmatprep.subr.bf16.mxu0 %v2484
    %2658 = vmatpush1.bf16.msra.mxu0 %v2483
    %2659 = vmatprep.subr.bf16.mxu0 %v2487
    %2660 = vmatpush1.bf16.msra.mxu0 %v2486
    %2661 = vmatprep.subr.bf16.mxu0 %v2490
    %2662 = vmatpush1.bf16.msra.mxu0 %v2489
    %2663 = vmatprep.subr.bf16.mxu0 %v2493
    %2664 = vmatpush1.bf16.msra.mxu0 %v2492
    %2665 = vmatprep.subr.bf16.mxu0 %v2496
    %2666 = vmatpush1.bf16.msra.mxu0 %v2495
    %2667 = vmatprep.mubr.bf16.mxu0 %v461
    %2668 = vmatmul.mubr.bf16.gmra.mrb[0].mxu0 %v460
    %v2669 = vpop.f32.mrb[0].mxu0
    %v2670 = vadd.f32 %v2629, %v2669
    %v2671 = vpop.f32.mrb[0].mxu0
    %v2672 = vadd.f32 %v2631, %v2671
    %v2673 = vpop.f32.mrb[0].mxu0
    %v2674 = vpop.f32.mrb[0].mxu0
    %2675 = vdwg.mxu0
    %2676 = vmatprep.subr.bf16.mxu0 0
    %2677 = vmatpush1.bf16.msra.mxu0 %v2404
    %2678 = vmatprep.subr.bf16.mxu0 0
    %2679 = vmatpush1.bf16.msra.mxu0 %v2407
    %2680 = vmatprep.subr.bf16.mxu0 0
    %2681 = vmatpush1.bf16.msra.mxu0 %v2410
    %2682 = vmatprep.subr.bf16.mxu0 0
    %2683 = vmatpush1.bf16.msra.mxu0 %v2413
    %2684 = vmatprep.subr.bf16.mxu0 0
    %2685 = vmatpush1.bf16.msra.mxu0 %v2416
    %2686 = vmatprep.subr.bf16.mxu0 0
    %2687 = vmatpush1.bf16.msra.mxu0 %v2419
    %2688 = vmatprep.subr.bf16.mxu0 0
    %2689 = vmatpush1.bf16.msra.mxu0 %v2422
    %2690 = vmatprep.subr.bf16.mxu0 0
    %2691 = vmatpush1.bf16.msra.mxu0 %v2425
    %2692 = vmatprep.subr.bf16.mxu0 0
    %2693 = vmatpush1.bf16.msra.mxu0 %v2428
    %2694 = vmatprep.subr.bf16.mxu0 0
    %2695 = vmatpush1.bf16.msra.mxu0 %v2431
    %2696 = vmatprep.subr.bf16.mxu0 0
    %2697 = vmatpush1.bf16.msra.mxu0 %v2434
    %2698 = vmatprep.subr.bf16.mxu0 0
    %2699 = vmatpush1.bf16.msra.mxu0 %v2437
    %2700 = vmatprep.subr.bf16.mxu0 0
    %2701 = vmatpush1.bf16.msra.mxu0 %v2440
    %2702 = vmatprep.subr.bf16.mxu0 0
    %2703 = vmatpush1.bf16.msra.mxu0 %v2443
    %2704 = vmatprep.subr.bf16.mxu0 0
    %2705 = vmatpush1.bf16.msra.mxu0 %v2446
    %2706 = vmatprep.subr.bf16.mxu0 0
    %2707 = vmatpush1.bf16.msra.mxu0 %v2449
    %2708 = vmatprep.mubr.bf16.mxu0 %v459
    %2709 = vmatmul.mubr.bf16.gmra.mrb[0].mxu0 %v458
    %v2710 = vpop.f32.mrb[0].mxu0
    %v2711 = vadd.f32 %v2081, %v2710
    %v2712 = vpop.f32.mrb[0].mxu0
    %v2713 = vpop.f32.mrb[0].mxu0
    %v2714 = vpop.f32.mrb[0].mxu0
    %2715 = vdwg.mxu0
    %2716 = vmatprep.subr.bf16.mxu0 0
    %2717 = vmatpush1.bf16.msra.mxu0 %v2452
    %2718 = vmatprep.subr.bf16.mxu0 0
    %2719 = vmatpush1.bf16.msra.mxu0 %v2455
    %2720 = vmatprep.subr.bf16.mxu0 0
    %2721 = vmatpush1.bf16.msra.mxu0 %v2458
    %2722 = vmatprep.subr.bf16.mxu0 0
    %2723 = vmatpush1.bf16.msra.mxu0 %v2461
    %2724 = vmatprep.subr.bf16.mxu0 0
    %2725 = vmatpush1.bf16.msra.mxu0 %v2464
    %2726 = vmatprep.subr.bf16.mxu0 0
    %2727 = vmatpush1.bf16.msra.mxu0 %v2467
    %2728 = vmatprep.subr.bf16.mxu0 0
    %2729 = vmatpush1.bf16.msra.mxu0 %v2470
    %2730 = vmatprep.subr.bf16.mxu0 0
    %2731 = vmatpush1.bf16.msra.mxu0 %v2473
    %2732 = vmatprep.subr.bf16.mxu0 0
    %2733 = vmatpush1.bf16.msra.mxu0 %v2476
    %2734 = vmatprep.subr.bf16.mxu0 0
    %2735 = vmatpush1.bf16.msra.mxu0 %v2479
    %2736 = vmatprep.subr.bf16.mxu0 0
    %2737 = vmatpush1.bf16.msra.mxu0 %v2482
    %2738 = vmatprep.subr.bf16.mxu0 0
    %2739 = vmatpush1.bf16.msra.mxu0 %v2485
    %2740 = vmatprep.subr.bf16.mxu0 0
    %2741 = vmatpush1.bf16.msra.mxu0 %v2488
    %2742 = vmatprep.subr.bf16.mxu0 0
    %2743 = vmatpush1.bf16.msra.mxu0 %v2491
    %2744 = vmatprep.subr.bf16.mxu0 0
    %2745 = vmatpush1.bf16.msra.mxu0 %v2494
    %2746 = vmatprep.subr.bf16.mxu0 0
    %2747 = vmatpush1.bf16.msra.mxu0 %v2497
    %2748 = vmatprep.mubr.bf16.mxu0 %v461
    %2749 = vmatmul.mubr.bf16.gmra.mrb[0].mxu0 %v460
    %v2750 = vpop.f32.mrb[0].mxu0
    %v2751 = vadd.f32 %v2711, %v2750
    %v2752 = vpop.f32.mrb[0].mxu0
    %v2753 = vpop.f32.mrb[0].mxu0
    %v2754 = vpop.f32.mrb[0].mxu0
    %2755 = vdwg.mxu0
    %v2756 = vmax.f32 %v2670, 0.0
    %v2757 = vmax.f32 %v2672, 0.0
    %v2758 = vmax.f32 %v2751, 0.0
    %v2759 = vpack.c.bf16 %v2756, %v2756
    %v2760 = vpack.c.bf16 %v2757, %v2757
    %v2761 = vpack.c.bf16 %v2758, %v2758
    %v2762 = vld [vmem:[#allocation10] sm:$0xff]
    %v2763 = vld [vmem:[#allocation10 + $0x8] sm:$0xf]
    %v2764 = vld [vmem:[#allocation10 + $0xc] sm:$0xff]
    %v2765 = vld [vmem:[#allocation10 + $0x14] sm:$0xf]
    %v2766 = vld [vmem:[#allocation10 + $0x18] sm:$0xff]
    %v2767 = vld [vmem:[#allocation10 + $0x20] sm:$0xf]
    %v2768 = vld [vmem:[#allocation10 + $0x24] sm:$0xff]
    %v2769 = vld [vmem:[#allocation10 + $0x2c] sm:$0xf]
    %v2770 = vld [vmem:[#allocation10 + $0x30] sm:$0xff]
    %v2771 = vld [vmem:[#allocation10 + $0x38] sm:$0xf]
    %v2772 = vld [vmem:[#allocation10 + $0x3c] sm:$0xff]
    %v2773 = vld [vmem:[#allocation10 + $0x44] sm:$0xf]
    %v2774 = vld [vmem:[#allocation10 + $0x48] sm:$0xff]
    %v2775 = vld [vmem:[#allocation10 + $0x50] sm:$0xf]
    %v2776 = vld [vmem:[#allocation10 + $0x54] sm:$0xff]
    %v2777 = vld [vmem:[#allocation10 + $0x5c] sm:$0xf]
    %v2778 = vld [vmem:[#allocation10 + $0x60] sm:$0xff]
    %v2779 = vld [vmem:[#allocation10 + $0x68] sm:$0xf]
    %v2780 = vld [vmem:[#allocation10 + $0x6c] sm:$0xff]
    %v2781 = vld [vmem:[#allocation10 + $0x74] sm:$0xf]
    %v2782 = vld [vmem:[#allocation10 + $0x78] sm:$0xff]
    %v2783 = vld [vmem:[#allocation10 + $0x80] sm:$0xf]
    %v2784 = vld [vmem:[#allocation10 + $0x84] sm:$0xff]
    %v2785 = vld [vmem:[#allocation10 + $0x8c] sm:$0xf]
    %v2786 = vld [vmem:[#allocation10 + $0x90] sm:$0xff]
    %v2787 = vld [vmem:[#allocation10 + $0x98] sm:$0xf]
    %v2788 = vld [vmem:[#allocation10 + $0x9c] sm:$0xff]
    %v2789 = vld [vmem:[#allocation10 + $0xa4] sm:$0xf]
    %v2790 = vld [vmem:[#allocation10 + $0xa8] sm:$0xff]
    %v2791 = vld [vmem:[#allocation10 + $0xb0] sm:$0xf]
    %v2792 = vld [vmem:[#allocation10 + $0xb4] sm:$0xff]
    %v2793 = vld [vmem:[#allocation10 + $0xbc] sm:$0xf]
    %v2794 = vld [vmem:[#allocation10 + $0xc0] sm:$0xff]
    %v2795 = vld [vmem:[#allocation10 + $0xc8] sm:$0xf]
    %v2796 = vld [vmem:[#allocation10 + $0xcc] sm:$0xff]
    %v2797 = vld [vmem:[#allocation10 + $0xd4] sm:$0xf]
    %v2798 = vld [vmem:[#allocation10 + $0xd8] sm:$0xff]
    %v2799 = vld [vmem:[#allocation10 + $0xe0] sm:$0xf]
    %v2800 = vld [vmem:[#allocation10 + $0xe4] sm:$0xff]
    %v2801 = vld [vmem:[#allocation10 + $0xec] sm:$0xf]
    %v2802 = vld [vmem:[#allocation10 + $0xf0] sm:$0xff]
    %v2803 = vld [vmem:[#allocation10 + $0xf8] sm:$0xf]
    %v2804 = vld [vmem:[#allocation10 + $0xfc] sm:$0xff]
    %v2805 = vld [vmem:[#allocation10 + $0x104] sm:$0xf]
    %v2806 = vld [vmem:[#allocation10 + $0x108] sm:$0xff]
    %v2807 = vld [vmem:[#allocation10 + $0x110] sm:$0xf]
    %v2808 = vld [vmem:[#allocation10 + $0x114] sm:$0xff]
    %v2809 = vld [vmem:[#allocation10 + $0x11c] sm:$0xf]
    %v2810 = vld [vmem:[#allocation10 + $0x120] sm:$0xff]
    %v2811 = vld [vmem:[#allocation10 + $0x128] sm:$0xf]
    %v2812 = vld [vmem:[#allocation10 + $0x12c] sm:$0xff]
    %v2813 = vld [vmem:[#allocation10 + $0x134] sm:$0xf]
    %v2814 = vld [vmem:[#allocation10 + $0x138] sm:$0xff]
    %v2815 = vld [vmem:[#allocation10 + $0x140] sm:$0xf]
    %v2816 = vld [vmem:[#allocation10 + $0x144] sm:$0xff]
    %v2817 = vld [vmem:[#allocation10 + $0x14c] sm:$0xf]
    %v2818 = vld [vmem:[#allocation10 + $0x150] sm:$0xff]
    %v2819 = vld [vmem:[#allocation10 + $0x158] sm:$0xf]
    %v2820 = vld [vmem:[#allocation10 + $0x15c] sm:$0xff]
    %v2821 = vld [vmem:[#allocation10 + $0x164] sm:$0xf]
    %v2822 = vld [vmem:[#allocation10 + $0x168] sm:$0xff]
    %v2823 = vld [vmem:[#allocation10 + $0x170] sm:$0xf]
    %v2824 = vld [vmem:[#allocation10 + $0x174] sm:$0xff]
    %v2825 = vld [vmem:[#allocation10 + $0x17c] sm:$0xf]
    %v2826 = vld [vmem:[#allocation10 + $0x180] sm:$0xff]
    %v2827 = vld [vmem:[#allocation10 + $0x188] sm:$0xf]
    %v2828 = vld [vmem:[#allocation10 + $0x18c] sm:$0xff]
    %v2829 = vld [vmem:[#allocation10 + $0x194] sm:$0xf]
    %v2830 = vld [vmem:[#allocation10 + $0x198] sm:$0xff]
    %v2831 = vld [vmem:[#allocation10 + $0x1a0] sm:$0xf]
    %v2832 = vld [vmem:[#allocation10 + $0x1a4] sm:$0xff]
    %v2833 = vld [vmem:[#allocation10 + $0x1ac] sm:$0xf]
    %v2834 = vld [vmem:[#allocation10 + $0x1b0] sm:$0xff]
    %v2835 = vld [vmem:[#allocation10 + $0x1b8] sm:$0xf]
    %v2836 = vld [vmem:[#allocation10 + $0x1bc] sm:$0xff]
    %v2837 = vld [vmem:[#allocation10 + $0x1c4] sm:$0xf]
    %v2838 = vld [vmem:[#allocation10 + $0x1c8] sm:$0xff]
    %v2839 = vld [vmem:[#allocation10 + $0x1d0] sm:$0xf]
    %v2840 = vld [vmem:[#allocation10 + $0x1d4] sm:$0xff]
    %v2841 = vld [vmem:[#allocation10 + $0x1dc] sm:$0xf]
    %v2842 = vld [vmem:[#allocation10 + $0x1e0] sm:$0xff]
    %v2843 = vld [vmem:[#allocation10 + $0x1e8] sm:$0xf]
    %v2844 = vld [vmem:[#allocation10 + $0x1ec] sm:$0xff]
    %v2845 = vld [vmem:[#allocation10 + $0x1f4] sm:$0xf]
    %v2846 = vld [vmem:[#allocation10 + $0x1f8] sm:$0xff]
    %v2847 = vld [vmem:[#allocation10 + $0x200] sm:$0xf]
    %v2848 = vld [vmem:[#allocation10 + $0x204] sm:$0xff]
    %v2849 = vld [vmem:[#allocation10 + $0x20c] sm:$0xf]
    %v2850 = vld [vmem:[#allocation10 + $0x210] sm:$0xff]
    %v2851 = vld [vmem:[#allocation10 + $0x218] sm:$0xf]
    %v2852 = vld [vmem:[#allocation10 + $0x21c] sm:$0xff]
    %v2853 = vld [vmem:[#allocation10 + $0x224] sm:$0xf]
    %v2854 = vld [vmem:[#allocation10 + $0x228] sm:$0xff]
    %v2855 = vld [vmem:[#allocation10 + $0x230] sm:$0xf]
    %v2856 = vld [vmem:[#allocation10 + $0x234] sm:$0xff]
    %v2857 = vld [vmem:[#allocation10 + $0x23c] sm:$0xf]
    %v2858 = vlaneseq
    %v2859 = vshrl.u32 %v2858, 7
    %v2860 = vsub.s32 4, %v2859
    %v2861 = vrot.slane %v142, %v2860
    %v2862 = vlaneseq
    %v2863 = vshrl.u32 %v2862, 7
    %v2864 = vsub.s32 4, %v2863
    %v2865 = vrot.slane %v143, %v2864
    %v2866 = vlaneseq
    %v2867 = vshrl.u32 %v2866, 7
    %v2868 = vsub.s32 4, %v2867
    %v2869 = vrot.slane %v144, %v2868
    %v2966 = vunpack.c.l.b16 %v2762
    %v2967 = vunpack.c.h.b16 %v2762
    %v2968 = vunpack.c.l.b16 %v2763
    %v2969 = vunpack.c.l.b16 %v2764
    %v2970 = vunpack.c.h.b16 %v2764
    %v2971 = vunpack.c.l.b16 %v2765
    %v2972 = vunpack.c.l.b16 %v2766
    %v2973 = vunpack.c.h.b16 %v2766
    %v2974 = vunpack.c.l.b16 %v2767
    %v2975 = vunpack.c.l.b16 %v2768
    %v2976 = vunpack.c.h.b16 %v2768
    %v2977 = vunpack.c.l.b16 %v2769
    %v2978 = vunpack.c.l.b16 %v2770
    %v2979 = vunpack.c.h.b16 %v2770
    %v2980 = vunpack.c.l.b16 %v2771
    %v2981 = vunpack.c.l.b16 %v2772
    %v2982 = vunpack.c.h.b16 %v2772
    %v2983 = vunpack.c.l.b16 %v2773
    %v2984 = vunpack.c.l.b16 %v2774
    %v2985 = vunpack.c.h.b16 %v2774
    %v2986 = vunpack.c.l.b16 %v2775
    %v2987 = vunpack.c.l.b16 %v2776
    %v2988 = vunpack.c.h.b16 %v2776
    %v2989 = vunpack.c.l.b16 %v2777
    %v2990 = vunpack.c.l.b16 %v2778
    %v2991 = vunpack.c.h.b16 %v2778
    %v2992 = vunpack.c.l.b16 %v2779
    %v2993 = vunpack.c.l.b16 %v2780
    %v2994 = vunpack.c.h.b16 %v2780
    %v2995 = vunpack.c.l.b16 %v2781
    %v2996 = vunpack.c.l.b16 %v2782
    %v2997 = vunpack.c.h.b16 %v2782
    %v2998 = vunpack.c.l.b16 %v2783
    %v2999 = vunpack.c.l.b16 %v2784
    %v3000 = vunpack.c.h.b16 %v2784
    %v3001 = vunpack.c.l.b16 %v2785
    %v3002 = vunpack.c.l.b16 %v2786
    %v3003 = vunpack.c.h.b16 %v2786
    %v3004 = vunpack.c.l.b16 %v2787
    %v3005 = vunpack.c.l.b16 %v2788
    %v3006 = vunpack.c.h.b16 %v2788
    %v3007 = vunpack.c.l.b16 %v2789
    %v3008 = vunpack.c.l.b16 %v2790
    %v3009 = vunpack.c.h.b16 %v2790
    %v3010 = vunpack.c.l.b16 %v2791
    %v3011 = vunpack.c.l.b16 %v2792
    %v3012 = vunpack.c.h.b16 %v2792
    %v3013 = vunpack.c.l.b16 %v2793
    %v3014 = vunpack.c.l.b16 %v2794
    %v3015 = vunpack.c.h.b16 %v2794
    %v3016 = vunpack.c.l.b16 %v2795
    %v3017 = vunpack.c.l.b16 %v2796
    %v3018 = vunpack.c.h.b16 %v2796
    %v3019 = vunpack.c.l.b16 %v2797
    %v3020 = vunpack.c.l.b16 %v2798
    %v3021 = vunpack.c.h.b16 %v2798
    %v3022 = vunpack.c.l.b16 %v2799
    %v3023 = vunpack.c.l.b16 %v2800
    %v3024 = vunpack.c.h.b16 %v2800
    %v3025 = vunpack.c.l.b16 %v2801
    %v3026 = vunpack.c.l.b16 %v2802
    %v3027 = vunpack.c.h.b16 %v2802
    %v3028 = vunpack.c.l.b16 %v2803
    %v3029 = vunpack.c.l.b16 %v2804
    %v3030 = vunpack.c.h.b16 %v2804
    %v3031 = vunpack.c.l.b16 %v2805
    %v3032 = vunpack.c.l.b16 %v2806
    %v3033 = vunpack.c.h.b16 %v2806
    %v3034 = vunpack.c.l.b16 %v2807
    %v3035 = vunpack.c.l.b16 %v2808
    %v3036 = vunpack.c.h.b16 %v2808
    %v3037 = vunpack.c.l.b16 %v2809
    %v3038 = vunpack.c.l.b16 %v2810
    %v3039 = vunpack.c.h.b16 %v2810
    %v3040 = vunpack.c.l.b16 %v2811
    %v3041 = vunpack.c.l.b16 %v2812
    %v3042 = vunpack.c.h.b16 %v2812
    %v3043 = vunpack.c.l.b16 %v2813
    %v3044 = vunpack.c.l.b16 %v2814
    %v3045 = vunpack.c.h.b16 %v2814
    %v3046 = vunpack.c.l.b16 %v2815
    %v3047 = vunpack.c.l.b16 %v2816
    %v3048 = vunpack.c.h.b16 %v2816
    %v3049 = vunpack.c.l.b16 %v2817
    %v3050 = vunpack.c.l.b16 %v2818
    %v3051 = vunpack.c.h.b16 %v2818
    %v3052 = vunpack.c.l.b16 %v2819
    %v3053 = vunpack.c.l.b16 %v2820
    %v3054 = vunpack.c.h.b16 %v2820
    %v3055 = vunpack.c.l.b16 %v2821
    %v3056 = vunpack.c.l.b16 %v2822
    %v3057 = vunpack.c.h.b16 %v2822
    %v3058 = vunpack.c.l.b16 %v2823
    %v3059 = vunpack.c.l.b16 %v2824
    %v3060 = vunpack.c.h.b16 %v2824
    %v3061 = vunpack.c.l.b16 %v2825
    %v3062 = vunpack.c.l.b16 %v2826
    %v3063 = vunpack.c.h.b16 %v2826
    %v3064 = vunpack.c.l.b16 %v2827
    %v3065 = vunpack.c.l.b16 %v2828
    %v3066 = vunpack.c.h.b16 %v2828
    %v3067 = vunpack.c.l.b16 %v2829
    %v3068 = vunpack.c.l.b16 %v2830
    %v3069 = vunpack.c.h.b16 %v2830
    %v3070 = vunpack.c.l.b16 %v2831
    %v3071 = vunpack.c.l.b16 %v2832
    %v3072 = vunpack.c.h.b16 %v2832
    %v3073 = vunpack.c.l.b16 %v2833
    %v3074 = vunpack.c.l.b16 %v2834
    %v3075 = vunpack.c.h.b16 %v2834
    %v3076 = vunpack.c.l.b16 %v2835
    %v3077 = vunpack.c.l.b16 %v2836
    %v3078 = vunpack.c.h.b16 %v2836
    %v3079 = vunpack.c.l.b16 %v2837
    %v3080 = vunpack.c.l.b16 %v2838
    %v3081 = vunpack.c.h.b16 %v2838
    %v3082 = vunpack.c.l.b16 %v2839
    %v3083 = vunpack.c.l.b16 %v2840
    %v3084 = vunpack.c.h.b16 %v2840
    %v3085 = vunpack.c.l.b16 %v2841
    %v3086 = vunpack.c.l.b16 %v2842
    %v3087 = vunpack.c.h.b16 %v2842
    %v3088 = vunpack.c.l.b16 %v2843
    %v3089 = vunpack.c.l.b16 %v2844
    %v3090 = vunpack.c.h.b16 %v2844
    %v3091 = vunpack.c.l.b16 %v2845
    %v3092 = vunpack.c.l.b16 %v2846
    %v3093 = vunpack.c.h.b16 %v2846
    %v3094 = vunpack.c.l.b16 %v2847
    %v3095 = vunpack.c.l.b16 %v2848
    %v3096 = vunpack.c.h.b16 %v2848
    %v3097 = vunpack.c.l.b16 %v2849
    %v3098 = vunpack.c.l.b16 %v2850
    %v3099 = vunpack.c.h.b16 %v2850
    %v3100 = vunpack.c.l.b16 %v2851
    %v3101 = vunpack.c.l.b16 %v2852
    %v3102 = vunpack.c.h.b16 %v2852
    %v3103 = vunpack.c.l.b16 %v2853
    %v3104 = vunpack.c.l.b16 %v2854
    %v3105 = vunpack.c.h.b16 %v2854
    %v3106 = vunpack.c.l.b16 %v2855
    %v3107 = vunpack.c.l.b16 %v2856
    %v3108 = vunpack.c.h.b16 %v2856
    %v3109 = vunpack.c.l.b16 %v2857
    %v3110 = vpack.c.b16 %v2969, %v2966
    %v3111 = vpack.c.b16 %v2970, %v2967
    %v3112 = vpack.c.b16 %v2971, %v2968
    %v3113 = vpack.c.b16 %v2975, %v2972
    %v3114 = vpack.c.b16 %v2976, %v2973
    %v3115 = vpack.c.b16 %v2977, %v2974
    %v3116 = vpack.c.b16 %v2981, %v2978
    %v3117 = vpack.c.b16 %v2982, %v2979
    %v3118 = vpack.c.b16 %v2983, %v2980
    %v3119 = vpack.c.b16 %v2987, %v2984
    %v3120 = vpack.c.b16 %v2988, %v2985
    %v3121 = vpack.c.b16 %v2989, %v2986
    %v3122 = vpack.c.b16 %v2993, %v2990
    %v3123 = vpack.c.b16 %v2994, %v2991
    %v3124 = vpack.c.b16 %v2995, %v2992
    %v3125 = vpack.c.b16 %v2999, %v2996
    %v3126 = vpack.c.b16 %v3000, %v2997
    %v3127 = vpack.c.b16 %v3001, %v2998
    %v3128 = vpack.c.b16 %v3005, %v3002
    %v3129 = vpack.c.b16 %v3006, %v3003
    %v3130 = vpack.c.b16 %v3007, %v3004
    %v3131 = vpack.c.b16 %v3011, %v3008
    %v3132 = vpack.c.b16 %v3012, %v3009
    %v3133 = vpack.c.b16 %v3013, %v3010
    %v3134 = vpack.c.b16 %v3017, %v3014
    %v3135 = vpack.c.b16 %v3018, %v3015
    %v3136 = vpack.c.b16 %v3019, %v3016
    %v3137 = vpack.c.b16 %v3023, %v3020
    %v3138 = vpack.c.b16 %v3024, %v3021
    %v3139 = vpack.c.b16 %v3025, %v3022
    %v3140 = vpack.c.b16 %v3029, %v3026
    %v3141 = vpack.c.b16 %v3030, %v3027
    %v3142 = vpack.c.b16 %v3031, %v3028
    %v3143 = vpack.c.b16 %v3035, %v3032
    %v3144 = vpack.c.b16 %v3036, %v3033
    %v3145 = vpack.c.b16 %v3037, %v3034
    %v3146 = vpack.c.b16 %v3041, %v3038
    %v3147 = vpack.c.b16 %v3042, %v3039
    %v3148 = vpack.c.b16 %v3043, %v3040
    %v3149 = vpack.c.b16 %v3047, %v3044
    %v3150 = vpack.c.b16 %v3048, %v3045
    %v3151 = vpack.c.b16 %v3049, %v3046
    %v3152 = vpack.c.b16 %v3053, %v3050
    %v3153 = vpack.c.b16 %v3054, %v3051
    %v3154 = vpack.c.b16 %v3055, %v3052
    %v3155 = vpack.c.b16 %v3059, %v3056
    %v3156 = vpack.c.b16 %v3060, %v3057
    %v3157 = vpack.c.b16 %v3061, %v3058
    %v3158 = vpack.c.b16 %v3065, %v3062
    %v3159 = vpack.c.b16 %v3066, %v3063
    %v3160 = vpack.c.b16 %v3067, %v3064
    %v3161 = vpack.c.b16 %v3071, %v3068
    %v3162 = vpack.c.b16 %v3072, %v3069
    %v3163 = vpack.c.b16 %v3073, %v3070
    %v3164 = vpack.c.b16 %v3077, %v3074
    %v3165 = vpack.c.b16 %v3078, %v3075
    %v3166 = vpack.c.b16 %v3079, %v3076
    %v3167 = vpack.c.b16 %v3083, %v3080
    %v3168 = vpack.c.b16 %v3084, %v3081
    %v3169 = vpack.c.b16 %v3085, %v3082
    %v3170 = vpack.c.b16 %v3089, %v3086
    %v3171 = vpack.c.b16 %v3090, %v3087
    %v3172 = vpack.c.b16 %v3091, %v3088
    %v3173 = vpack.c.b16 %v3095, %v3092
    %v3174 = vpack.c.b16 %v3096, %v3093
    %v3175 = vpack.c.b16 %v3097, %v3094
    %v3176 = vpack.c.b16 %v3101, %v3098
    %v3177 = vpack.c.b16 %v3102, %v3099
    %v3178 = vpack.c.b16 %v3103, %v3100
    %v3179 = vpack.c.b16 %v3107, %v3104
    %v3180 = vpack.c.b16 %v3108, %v3105
    %v3181 = vpack.c.b16 %v3109, %v3106
    %3254 = vmatprep.subr.bf16.mxu0 %v3111
    %3255 = vmatpush1.bf16.msra.mxu0 %v3110
    %3256 = vmatprep.subr.bf16.mxu0 %v3114
    %3257 = vmatpush1.bf16.msra.mxu0 %v3113
    %3258 = vmatprep.subr.bf16.mxu0 %v3117
    %3259 = vmatpush1.bf16.msra.mxu0 %v3116
    %3260 = vmatprep.subr.bf16.mxu0 %v3120
    %3261 = vmatpush1.bf16.msra.mxu0 %v3119
    %3262 = vmatprep.subr.bf16.mxu0 %v3123
    %3263 = vmatpush1.bf16.msra.mxu0 %v3122
    %3264 = vmatprep.subr.bf16.mxu0 %v3126
    %3265 = vmatpush1.bf16.msra.mxu0 %v3125
    %3266 = vmatprep.subr.bf16.mxu0 %v3129
    %3267 = vmatpush1.bf16.msra.mxu0 %v3128
    %3268 = vmatprep.subr.bf16.mxu0 %v3132
    %3269 = vmatpush1.bf16.msra.mxu0 %v3131
    %3270 = vmatprep.subr.bf16.mxu0 %v3135
    %3271 = vmatpush1.bf16.msra.mxu0 %v3134
    %3272 = vmatprep.subr.bf16.mxu0 %v3138
    %3273 = vmatpush1.bf16.msra.mxu0 %v3137
    %3274 = vmatprep.subr.bf16.mxu0 %v3141
    %3275 = vmatpush1.bf16.msra.mxu0 %v3140
    %3276 = vmatprep.subr.bf16.mxu0 %v3144
    %3277 = vmatpush1.bf16.msra.mxu0 %v3143
    %3278 = vmatprep.subr.bf16.mxu0 %v3147
    %3279 = vmatpush1.bf16.msra.mxu0 %v3146
    %3280 = vmatprep.subr.bf16.mxu0 %v3150
    %3281 = vmatpush1.bf16.msra.mxu0 %v3149
    %3282 = vmatprep.subr.bf16.mxu0 %v3153
    %3283 = vmatpush1.bf16.msra.mxu0 %v3152
    %3284 = vmatprep.subr.bf16.mxu0 %v3156
    %3285 = vmatpush1.bf16.msra.mxu0 %v3155
    %3286 = vmatprep.mubr.bf16.mxu0 %v2760
    %3287 = vmatmul.mubr.bf16.gmra.mrb[0].mxu0 %v2759
    %v3288 = vpop.f32.mrb[0].mxu0
    %v3289 = vadd.f32 %v2861, %v3288
    %v3290 = vpop.f32.mrb[0].mxu0
    %v3291 = vadd.f32 %v2865, %v3290
    %v3292 = vpop.f32.mrb[0].mxu0
    %v3293 = vpop.f32.mrb[0].mxu0
    %3294 = vdwg.mxu0
    %3295 = vmatprep.subr.bf16.mxu0 %v3159
    %3296 = vmatpush1.bf16.msra.mxu0 %v3158
    %3297 = vmatprep.subr.bf16.mxu0 %v3162
    %3298 = vmatpush1.bf16.msra.mxu0 %v3161
    %3299 = vmatprep.subr.bf16.mxu0 %v3165
    %3300 = vmatpush1.bf16.msra.mxu0 %v3164
    %3301 = vmatprep.subr.bf16.mxu0 %v3168
    %3302 = vmatpush1.bf16.msra.mxu0 %v3167
    %3303 = vmatprep.subr.bf16.mxu0 %v3171
    %3304 = vmatpush1.bf16.msra.mxu0 %v3170
    %3305 = vmatprep.subr.bf16.mxu0 %v3174
    %3306 = vmatpush1.bf16.msra.mxu0 %v3173
    %3307 = vmatprep.subr.bf16.mxu0 %v3177
    %3308 = vmatpush1.bf16.msra.mxu0 %v3176
    %3309 = vmatprep.subr.bf16.mxu0 %v3180
    %3310 = vmatpush1.bf16.msra.mxu0 %v3179
    %3311 = vmatprep.subr.bf16.mxu0 0
    %3312 = vmatpush1.bf16.msra.mxu0 0
    %3313 = vmatprep.subr.bf16.mxu0 0
    %3314 = vmatpush1.bf16.msra.mxu0 0
    %3315 = vmatprep.subr.bf16.mxu0 0
    %3316 = vmatpush1.bf16.msra.mxu0 0
    %3317 = vmatprep.subr.bf16.mxu0 0
    %3318 = vmatpush1.bf16.msra.mxu0 0
    %3319 = vmatprep.subr.bf16.mxu0 0
    %3320 = vmatpush1.bf16.msra.mxu0 0
    %3321 = vmatprep.subr.bf16.mxu0 0
    %3322 = vmatpush1.bf16.msra.mxu0 0
    %3323 = vmatprep.subr.bf16.mxu0 0
    %3324 = vmatpush1.bf16.msra.mxu0 0
    %3325 = vmatprep.subr.bf16.mxu0 0
    %3326 = vmatpush1.bf16.msra.mxu0 0
    %3327 = vmatprep.mubr.bf16.mxu0 0
    %3328 = vmatmul.mubr.bf16.gmra.mrb[0].mxu0 %v2761
    %v3329 = vpop.f32.mrb[0].mxu0
    %v3330 = vadd.f32 %v3289, %v3329
    %v3331 = vpop.f32.mrb[0].mxu0
    %v3332 = vadd.f32 %v3291, %v3331
    %v3333 = vpop.f32.mrb[0].mxu0
    %v3334 = vpop.f32.mrb[0].mxu0
    %3335 = vdwg.mxu0
    %3336 = vmatprep.subr.bf16.mxu0 0
    %3337 = vmatpush1.bf16.msra.mxu0 %v3112
    %3338 = vmatprep.subr.bf16.mxu0 0
    %3339 = vmatpush1.bf16.msra.mxu0 %v3115
    %3340 = vmatprep.subr.bf16.mxu0 0
    %3341 = vmatpush1.bf16.msra.mxu0 %v3118
    %3342 = vmatprep.subr.bf16.mxu0 0
    %3343 = vmatpush1.bf16.msra.mxu0 %v3121
    %3344 = vmatprep.subr.bf16.mxu0 0
    %3345 = vmatpush1.bf16.msra.mxu0 %v3124
    %3346 = vmatprep.subr.bf16.mxu0 0
    %3347 = vmatpush1.bf16.msra.mxu0 %v3127
    %3348 = vmatprep.subr.bf16.mxu0 0
    %3349 = vmatpush1.bf16.msra.mxu0 %v3130
    %3350 = vmatprep.subr.bf16.mxu0 0
    %3351 = vmatpush1.bf16.msra.mxu0 %v3133
    %3352 = vmatprep.subr.bf16.mxu0 0
    %3353 = vmatpush1.bf16.msra.mxu0 %v3136
    %3354 = vmatprep.subr.bf16.mxu0 0
    %3355 = vmatpush1.bf16.msra.mxu0 %v3139
    %3356 = vmatprep.subr.bf16.mxu0 0
    %3357 = vmatpush1.bf16.msra.mxu0 %v3142
    %3358 = vmatprep.subr.bf16.mxu0 0
    %3359 = vmatpush1.bf16.msra.mxu0 %v3145
    %3360 = vmatprep.subr.bf16.mxu0 0
    %3361 = vmatpush1.bf16.msra.mxu0 %v3148
    %3362 = vmatprep.subr.bf16.mxu0 0
    %3363 = vmatpush1.bf16.msra.mxu0 %v3151
    %3364 = vmatprep.subr.bf16.mxu0 0
    %3365 = vmatpush1.bf16.msra.mxu0 %v3154
    %3366 = vmatprep.subr.bf16.mxu0 0
    %3367 = vmatpush1.bf16.msra.mxu0 %v3157
    %3368 = vmatprep.mubr.bf16.mxu0 %v2760
    %3369 = vmatmul.mubr.bf16.gmra.mrb[0].mxu0 %v2759
    %v3370 = vpop.f32.mrb[0].mxu0
    %v3371 = vadd.f32 %v2869, %v3370
    %v3372 = vpop.f32.mrb[0].mxu0
    %v3373 = vpop.f32.mrb[0].mxu0
    %v3374 = vpop.f32.mrb[0].mxu0
    %3375 = vdwg.mxu0
    %3376 = vmatprep.subr.bf16.mxu0 0
    %3377 = vmatpush1.bf16.msra.mxu0 %v3160
    %3378 = vmatprep.subr.bf16.mxu0 0
    %3379 = vmatpush1.bf16.msra.mxu0 %v3163
    %3380 = vmatprep.subr.bf16.mxu0 0
    %3381 = vmatpush1.bf16.msra.mxu0 %v3166
    %3382 = vmatprep.subr.bf16.mxu0 0
    %3383 = vmatpush1.bf16.msra.mxu0 %v3169
    %3384 = vmatprep.subr.bf16.mxu0 0
    %3385 = vmatpush1.bf16.msra.mxu0 %v3172
    %3386 = vmatprep.subr.bf16.mxu0 0
    %3387 = vmatpush1.bf16.msra.mxu0 %v3175
    %3388 = vmatprep.subr.bf16.mxu0 0
    %3389 = vmatpush1.bf16.msra.mxu0 %v3178
    %3390 = vmatprep.subr.bf16.mxu0 0
    %3391 = vmatpush1.bf16.msra.mxu0 %v3181
    %3392 = vmatprep.subr.bf16.mxu0 0
    %3393 = vmatpush1.bf16.msra.mxu0 0
    %3394 = vmatprep.subr.bf16.mxu0 0
    %3395 = vmatpush1.bf16.msra.mxu0 0
    %3396 = vmatprep.subr.bf16.mxu0 0
    %3397 = vmatpush1.bf16.msra.mxu0 0
    %3398 = vmatprep.subr.bf16.mxu0 0
    %3399 = vmatpush1.bf16.msra.mxu0 0
    %3400 = vmatprep.subr.bf16.mxu0 0
    %3401 = vmatpush1.bf16.msra.mxu0 0
    %3402 = vmatprep.subr.bf16.mxu0 0
    %3403 = vmatpush1.bf16.msra.mxu0 0
    %3404 = vmatprep.subr.bf16.mxu0 0
    %3405 = vmatpush1.bf16.msra.mxu0 0
    %3406 = vmatprep.subr.bf16.mxu0 0
    %3407 = vmatpush1.bf16.msra.mxu0 0
    %3408 = vmatprep.mubr.bf16.mxu0 0
    %3409 = vmatmul.mubr.bf16.gmra.mrb[0].mxu0 %v2761
    %v3410 = vpop.f32.mrb[0].mxu0
    %v3411 = vadd.f32 %v3371, %v3410
    %v3412 = vpop.f32.mrb[0].mxu0
    %v3413 = vpop.f32.mrb[0].mxu0
    %v3414 = vpop.f32.mrb[0].mxu0
    %3415 = vdwg.mxu0
    %v3416 = vmax.f32 %v3330, 0.0
    %v3417 = vmax.f32 %v3332, 0.0
    %v3418 = vmax.f32 %v3411, 0.0
    %v3419 = vpack.c.bf16 %v3416, %v3416
    %v3420 = vpack.c.bf16 %v3417, %v3417
    %v3421 = vpack.c.bf16 %v3418, %v3418
    %v3422 = vld [vmem:[#allocation7] sm:$0xf]
    %v3423 = vld [vmem:[#allocation7 + $0x4] sm:$0xf]
    %v3424 = vld [vmem:[#allocation7 + $0x8] sm:$0xf]
    %v3425 = vld [vmem:[#allocation7 + $0xc] sm:$0xf]
    %v3426 = vld [vmem:[#allocation7 + $0x10] sm:$0xf]
    %v3427 = vld [vmem:[#allocation7 + $0x14] sm:$0xf]
    %v3428 = vld [vmem:[#allocation7 + $0x18] sm:$0xf]
    %v3429 = vld [vmem:[#allocation7 + $0x1c] sm:$0xf]
    %v3430 = vld [vmem:[#allocation7 + $0x20] sm:$0xf]
    %v3431 = vld [vmem:[#allocation7 + $0x24] sm:$0xf]
    %v3432 = vld [vmem:[#allocation7 + $0x28] sm:$0xf]
    %v3433 = vld [vmem:[#allocation7 + $0x2c] sm:$0xf]
    %v3434 = vld [vmem:[#allocation7 + $0x30] sm:$0xf]
    %v3435 = vld [vmem:[#allocation7 + $0x34] sm:$0xf]
    %v3436 = vld [vmem:[#allocation7 + $0x38] sm:$0xf]
    %v3437 = vld [vmem:[#allocation7 + $0x3c] sm:$0xf]
    %v3438 = vld [vmem:[#allocation7 + $0x40] sm:$0xf]
    %v3439 = vld [vmem:[#allocation7 + $0x44] sm:$0xf]
    %v3440 = vld [vmem:[#allocation7 + $0x48] sm:$0xf]
    %v3441 = vld [vmem:[#allocation7 + $0x4c] sm:$0xf]
    %v3442 = vld [vmem:[#allocation7 + $0x50] sm:$0xf]
    %v3443 = vld [vmem:[#allocation7 + $0x54] sm:$0xf]
    %v3444 = vld [vmem:[#allocation7 + $0x58] sm:$0xf]
    %v3445 = vld [vmem:[#allocation7 + $0x5c] sm:$0xf]
    %v3446 = vld [vmem:[#allocation7 + $0x60] sm:$0xf]
    %v3447 = vld [vmem:[#allocation7 + $0x64] sm:$0xf]
    %v3448 = vld [vmem:[#allocation7 + $0x68] sm:$0xf]
    %v3449 = vld [vmem:[#allocation7 + $0x6c] sm:$0xf]
    %v3450 = vld [vmem:[#allocation7 + $0x70] sm:$0xf]
    %v3451 = vld [vmem:[#allocation7 + $0x74] sm:$0xf]
    %v3452 = vld [vmem:[#allocation7 + $0x78] sm:$0xf]
    %v3453 = vld [vmem:[#allocation7 + $0x7c] sm:$0xf]
    %v3454 = vld [vmem:[#allocation7 + $0x80] sm:$0xf]
    %v3455 = vld [vmem:[#allocation7 + $0x84] sm:$0xf]
    %v3456 = vld [vmem:[#allocation7 + $0x88] sm:$0xf]
    %v3457 = vld [vmem:[#allocation7 + $0x8c] sm:$0xf]
    %v3458 = vld [vmem:[#allocation7 + $0x90] sm:$0xf]
    %v3459 = vld [vmem:[#allocation7 + $0x94] sm:$0xf]
    %v3460 = vld [vmem:[#allocation7 + $0x98] sm:$0xf]
    %v3461 = vld [vmem:[#allocation7 + $0x9c] sm:$0xf]
    %v3462 = vld [vmem:[#allocation7 + $0xa0] sm:$0xf]
    %v3463 = vld [vmem:[#allocation7 + $0xa4] sm:$0xf]
    %v3464 = vld [vmem:[#allocation7 + $0xa8] sm:$0xf]
    %v3465 = vld [vmem:[#allocation7 + $0xac] sm:$0xf]
    %v3466 = vld [vmem:[#allocation7 + $0xb0] sm:$0xf]
    %v3467 = vld [vmem:[#allocation7 + $0xb4] sm:$0xf]
    %v3468 = vld [vmem:[#allocation7 + $0xb8] sm:$0xf]
    %v3469 = vld [vmem:[#allocation7 + $0xbc] sm:$0xf]
    %v3470 = vld [vmem:[#allocation12] sm:$0xf]
    %v3471 = vld [vmem:[#allocation12 + $0x4] sm:$0xf]
    %v3472 = vld [vmem:[#allocation12 + $0x8] sm:$0xf]
    %v3473 = vld [vmem:[#allocation12 + $0xc] sm:$0xf]
    %v3474 = vld [vmem:[#allocation12 + $0x10] sm:$0xf]
    %v3475 = vld [vmem:[#allocation12 + $0x14] sm:$0xf]
    %v3476 = vld [vmem:[#allocation12 + $0x18] sm:$0xf]
    %v3477 = vld [vmem:[#allocation12 + $0x1c] sm:$0xf]
    %v3478 = vld [vmem:[#allocation12 + $0x20] sm:$0xf]
    %v3479 = vld [vmem:[#allocation12 + $0x24] sm:$0xf]
    %v3480 = vld [vmem:[#allocation12 + $0x28] sm:$0xf]
    %v3481 = vld [vmem:[#allocation12 + $0x2c] sm:$0xf]
    %v3482 = vld [vmem:[#allocation12 + $0x30] sm:$0xf]
    %v3483 = vld [vmem:[#allocation12 + $0x34] sm:$0xf]
    %v3484 = vld [vmem:[#allocation12 + $0x38] sm:$0xf]
    %v3485 = vld [vmem:[#allocation12 + $0x3c] sm:$0xf]
    %v3486 = vld [vmem:[#allocation12 + $0x40] sm:$0xf]
    %v3487 = vld [vmem:[#allocation12 + $0x44] sm:$0xf]
    %v3488 = vld [vmem:[#allocation12 + $0x48] sm:$0xf]
    %v3489 = vld [vmem:[#allocation12 + $0x4c] sm:$0xf]
    %v3490 = vld [vmem:[#allocation12 + $0x50] sm:$0xf]
    %v3491 = vld [vmem:[#allocation12 + $0x54] sm:$0xf]
    %v3492 = vld [vmem:[#allocation12 + $0x58] sm:$0xf]
    %v3493 = vld [vmem:[#allocation12 + $0x5c] sm:$0xf]
    %v3494 = vld [vmem:[#allocation12 + $0x60] sm:$0xf]
    %v3495 = vld [vmem:[#allocation12 + $0x64] sm:$0xf]
    %v3496 = vld [vmem:[#allocation12 + $0x68] sm:$0xf]
    %v3497 = vld [vmem:[#allocation12 + $0x6c] sm:$0xf]
    %v3498 = vld [vmem:[#allocation12 + $0x70] sm:$0xf]
    %v3499 = vld [vmem:[#allocation12 + $0x74] sm:$0xf]
    %v3500 = vld [vmem:[#allocation12 + $0x78] sm:$0xf]
    %v3501 = vld [vmem:[#allocation12 + $0x7c] sm:$0xf]
    %v3502 = vld [vmem:[#allocation12 + $0x80] sm:$0xf]
    %v3503 = vld [vmem:[#allocation12 + $0x84] sm:$0xf]
    %v3504 = vld [vmem:[#allocation12 + $0x88] sm:$0xf]
    %v3505 = vld [vmem:[#allocation12 + $0x8c] sm:$0xf]
    %v3506 = vld [vmem:[#allocation12 + $0x90] sm:$0xf]
    %v3507 = vld [vmem:[#allocation12 + $0x94] sm:$0xf]
    %v3508 = vld [vmem:[#allocation12 + $0x98] sm:$0xf]
    %v3509 = vld [vmem:[#allocation12 + $0x9c] sm:$0xf]
    %v3510 = vld [vmem:[#allocation12 + $0xa0] sm:$0xf]
    %v3511 = vld [vmem:[#allocation12 + $0xa4] sm:$0xf]
    %v3512 = vld [vmem:[#allocation12 + $0xa8] sm:$0xf]
    %v3513 = vld [vmem:[#allocation12 + $0xac] sm:$0xf]
    %v3514 = vld [vmem:[#allocation12 + $0xb0] sm:$0xf]
    %v3515 = vld [vmem:[#allocation12 + $0xb4] sm:$0xf]
    %v3516 = vld [vmem:[#allocation12 + $0xb8] sm:$0xf]
    %v3517 = vld [vmem:[#allocation12 + $0xbc] sm:$0xf]
    %v3566 = vunpack.c.l.b16 %v3470
    %v3567 = vunpack.c.l.b16 %v3471
    %v3568 = vunpack.c.l.b16 %v3472
    %v3569 = vunpack.c.l.b16 %v3473
    %v3570 = vunpack.c.l.b16 %v3474
    %v3571 = vunpack.c.l.b16 %v3475
    %v3572 = vunpack.c.l.b16 %v3476
    %v3573 = vunpack.c.l.b16 %v3477
    %v3574 = vunpack.c.l.b16 %v3478
    %v3575 = vunpack.c.l.b16 %v3479
    %v3576 = vunpack.c.l.b16 %v3480
    %v3577 = vunpack.c.l.b16 %v3481
    %v3578 = vunpack.c.l.b16 %v3482
    %v3579 = vunpack.c.l.b16 %v3483
    %v3580 = vunpack.c.l.b16 %v3484
    %v3581 = vunpack.c.l.b16 %v3485
    %v3582 = vunpack.c.l.b16 %v3486
    %v3583 = vunpack.c.l.b16 %v3487
    %v3584 = vunpack.c.l.b16 %v3488
    %v3585 = vunpack.c.l.b16 %v3489
    %v3586 = vunpack.c.l.b16 %v3490
    %v3587 = vunpack.c.l.b16 %v3491
    %v3588 = vunpack.c.l.b16 %v3492
    %v3589 = vunpack.c.l.b16 %v3493
    %v3590 = vunpack.c.l.b16 %v3494
    %v3591 = vunpack.c.l.b16 %v3495
    %v3592 = vunpack.c.l.b16 %v3496
    %v3593 = vunpack.c.l.b16 %v3497
    %v3594 = vunpack.c.l.b16 %v3498
    %v3595 = vunpack.c.l.b16 %v3499
    %v3596 = vunpack.c.l.b16 %v3500
    %v3597 = vunpack.c.l.b16 %v3501
    %v3598 = vunpack.c.l.b16 %v3502
    %v3599 = vunpack.c.l.b16 %v3503
    %v3600 = vunpack.c.l.b16 %v3504
    %v3601 = vunpack.c.l.b16 %v3505
    %v3602 = vunpack.c.l.b16 %v3506
    %v3603 = vunpack.c.l.b16 %v3507
    %v3604 = vunpack.c.l.b16 %v3508
    %v3605 = vunpack.c.l.b16 %v3509
    %v3606 = vunpack.c.l.b16 %v3510
    %v3607 = vunpack.c.l.b16 %v3511
    %v3608 = vunpack.c.l.b16 %v3512
    %v3609 = vunpack.c.l.b16 %v3513
    %v3610 = vunpack.c.l.b16 %v3514
    %v3611 = vunpack.c.l.b16 %v3515
    %v3612 = vunpack.c.l.b16 %v3516
    %v3613 = vunpack.c.l.b16 %v3517
    %v3614 = vpack.c.b16 %v3567, %v3566
    %v3615 = vpack.c.b16 %v3569, %v3568
    %v3616 = vpack.c.b16 %v3571, %v3570
    %v3617 = vpack.c.b16 %v3573, %v3572
    %v3618 = vpack.c.b16 %v3575, %v3574
    %v3619 = vpack.c.b16 %v3577, %v3576
    %v3620 = vpack.c.b16 %v3579, %v3578
    %v3621 = vpack.c.b16 %v3581, %v3580
    %v3622 = vpack.c.b16 %v3583, %v3582
    %v3623 = vpack.c.b16 %v3585, %v3584
    %v3624 = vpack.c.b16 %v3587, %v3586
    %v3625 = vpack.c.b16 %v3589, %v3588
    %v3626 = vpack.c.b16 %v3591, %v3590
    %v3627 = vpack.c.b16 %v3593, %v3592
    %v3628 = vpack.c.b16 %v3595, %v3594
    %v3629 = vpack.c.b16 %v3597, %v3596
    %v3630 = vpack.c.b16 %v3599, %v3598
    %v3631 = vpack.c.b16 %v3601, %v3600
    %v3632 = vpack.c.b16 %v3603, %v3602
    %v3633 = vpack.c.b16 %v3605, %v3604
    %v3634 = vpack.c.b16 %v3607, %v3606
    %v3635 = vpack.c.b16 %v3609, %v3608
    %v3636 = vpack.c.b16 %v3611, %v3610
    %v3637 = vpack.c.b16 %v3613, %v3612
    %3662 = vmatprep.subr.bf16.mxu0 0
    %3663 = vmatpush1.bf16.msra.mxu0 %v3614
    %3664 = vmatprep.subr.bf16.mxu0 0
    %3665 = vmatpush1.bf16.msra.mxu0 %v3615
    %3666 = vmatprep.subr.bf16.mxu0 0
    %3667 = vmatpush1.bf16.msra.mxu0 %v3616
    %3668 = vmatprep.subr.bf16.mxu0 0
    %3669 = vmatpush1.bf16.msra.mxu0 %v3617
    %3670 = vmatprep.subr.bf16.mxu0 0
    %3671 = vmatpush1.bf16.msra.mxu0 %v3618
    %3672 = vmatprep.subr.bf16.mxu0 0
    %3673 = vmatpush1.bf16.msra.mxu0 %v3619
    %3674 = vmatprep.subr.bf16.mxu0 0
    %3675 = vmatpush1.bf16.msra.mxu0 %v3620
    %3676 = vmatprep.subr.bf16.mxu0 0
    %3677 = vmatpush1.bf16.msra.mxu0 %v3621
    %3678 = vmatprep.subr.bf16.mxu0 0
    %3679 = vmatpush1.bf16.msra.mxu0 %v3622
    %3680 = vmatprep.subr.bf16.mxu0 0
    %3681 = vmatpush1.bf16.msra.mxu0 %v3623
    %3682 = vmatprep.subr.bf16.mxu0 0
    %3683 = vmatpush1.bf16.msra.mxu0 %v3624
    %3684 = vmatprep.subr.bf16.mxu0 0
    %3685 = vmatpush1.bf16.msra.mxu0 %v3625
    %3686 = vmatprep.subr.bf16.mxu0 0
    %3687 = vmatpush1.bf16.msra.mxu0 %v3626
    %3688 = vmatprep.subr.bf16.mxu0 0
    %3689 = vmatpush1.bf16.msra.mxu0 %v3627
    %3690 = vmatprep.subr.bf16.mxu0 0
    %3691 = vmatpush1.bf16.msra.mxu0 %v3628
    %3692 = vmatprep.subr.bf16.mxu0 0
    %3693 = vmatpush1.bf16.msra.mxu0 %v3629
    %3694 = vmatprep.mubr.bf16.mxu0 %v3420
    %3695 = vmatmul.mubr.bf16.gmra.mrb[0].mxu0 %v3419
    %v3696 = vpop.f32.mrb[0].mxu0
    %v3697 = vadd.f32 0.0, %v3696
    %v3698 = vpop.f32.mrb[0].mxu0
    %v3699 = vpop.f32.mrb[0].mxu0
    %v3700 = vpop.f32.mrb[0].mxu0
    %3701 = vdwg.mxu0
    %3702 = vmatprep.subr.bf16.mxu0 0
    %3703 = vmatpush1.bf16.msra.mxu0 %v3630
    %3704 = vmatprep.subr.bf16.mxu0 0
    %3705 = vmatpush1.bf16.msra.mxu0 %v3631
    %3706 = vmatprep.subr.bf16.mxu0 0
    %3707 = vmatpush1.bf16.msra.mxu0 %v3632
    %3708 = vmatprep.subr.bf16.mxu0 0
    %3709 = vmatpush1.bf16.msra.mxu0 %v3633
    %3710 = vmatprep.subr.bf16.mxu0 0
    %3711 = vmatpush1.bf16.msra.mxu0 %v3634
    %3712 = vmatprep.subr.bf16.mxu0 0
    %3713 = vmatpush1.bf16.msra.mxu0 %v3635
    %3714 = vmatprep.subr.bf16.mxu0 0
    %3715 = vmatpush1.bf16.msra.mxu0 %v3636
    %3716 = vmatprep.subr.bf16.mxu0 0
    %3717 = vmatpush1.bf16.msra.mxu0 %v3637
    %3718 = vmatprep.subr.bf16.mxu0 0
    %3719 = vmatpush1.bf16.msra.mxu0 0
    %3720 = vmatprep.subr.bf16.mxu0 0
    %3721 = vmatpush1.bf16.msra.mxu0 0
    %3722 = vmatprep.subr.bf16.mxu0 0
    %3723 = vmatpush1.bf16.msra.mxu0 0
    %3724 = vmatprep.subr.bf16.mxu0 0
    %3725 = vmatpush1.bf16.msra.mxu0 0
    %3726 = vmatprep.subr.bf16.mxu0 0
    %3727 = vmatpush1.bf16.msra.mxu0 0
    %3728 = vmatprep.subr.bf16.mxu0 0
    %3729 = vmatpush1.bf16.msra.mxu0 0
    %3730 = vmatprep.subr.bf16.mxu0 0
    %3731 = vmatpush1.bf16.msra.mxu0 0
    %3732 = vmatprep.subr.bf16.mxu0 0
    %3733 = vmatpush1.bf16.msra.mxu0 0
    %3734 = vmatprep.mubr.bf16.mxu0 0
    %3735 = vmatmul.mubr.bf16.gmra.mrb[0].mxu0 %v3421
    %v3736 = vpop.f32.mrb[0].mxu0
    %v3737 = vadd.f32 %v3697, %v3736
    %v3738 = vpop.f32.mrb[0].mxu0
    %v3739 = vpop.f32.mrb[0].mxu0
    %v3740 = vpop.f32.mrb[0].mxu0
    %3741 = vdwg.mxu0
    %v3790 = vunpack.c.l.b16 %v3422
    %v3791 = vunpack.c.l.b16 %v3423
    %v3792 = vunpack.c.l.b16 %v3424
    %v3793 = vunpack.c.l.b16 %v3425
    %v3794 = vunpack.c.l.b16 %v3426
    %v3795 = vunpack.c.l.b16 %v3427
    %v3796 = vunpack.c.l.b16 %v3428
    %v3797 = vunpack.c.l.b16 %v3429
    %v3798 = vunpack.c.l.b16 %v3430
    %v3799 = vunpack.c.l.b16 %v3431
    %v3800 = vunpack.c.l.b16 %v3432
    %v3801 = vunpack.c.l.b16 %v3433
    %v3802 = vunpack.c.l.b16 %v3434
    %v3803 = vunpack.c.l.b16 %v3435
    %v3804 = vunpack.c.l.b16 %v3436
    %v3805 = vunpack.c.l.b16 %v3437
    %v3806 = vunpack.c.l.b16 %v3438
    %v3807 = vunpack.c.l.b16 %v3439
    %v3808 = vunpack.c.l.b16 %v3440
    %v3809 = vunpack.c.l.b16 %v3441
    %v3810 = vunpack.c.l.b16 %v3442
    %v3811 = vunpack.c.l.b16 %v3443
    %v3812 = vunpack.c.l.b16 %v3444
    %v3813 = vunpack.c.l.b16 %v3445
    %v3814 = vunpack.c.l.b16 %v3446
    %v3815 = vunpack.c.l.b16 %v3447
    %v3816 = vunpack.c.l.b16 %v3448
    %v3817 = vunpack.c.l.b16 %v3449
    %v3818 = vunpack.c.l.b16 %v3450
    %v3819 = vunpack.c.l.b16 %v3451
    %v3820 = vunpack.c.l.b16 %v3452
    %v3821 = vunpack.c.l.b16 %v3453
    %v3822 = vunpack.c.l.b16 %v3454
    %v3823 = vunpack.c.l.b16 %v3455
    %v3824 = vunpack.c.l.b16 %v3456
    %v3825 = vunpack.c.l.b16 %v3457
    %v3826 = vunpack.c.l.b16 %v3458
    %v3827 = vunpack.c.l.b16 %v3459
    %v3828 = vunpack.c.l.b16 %v3460
    %v3829 = vunpack.c.l.b16 %v3461
    %v3830 = vunpack.c.l.b16 %v3462
    %v3831 = vunpack.c.l.b16 %v3463
    %v3832 = vunpack.c.l.b16 %v3464
    %v3833 = vunpack.c.l.b16 %v3465
    %v3834 = vunpack.c.l.b16 %v3466
    %v3835 = vunpack.c.l.b16 %v3467
    %v3836 = vunpack.c.l.b16 %v3468
    %v3837 = vunpack.c.l.b16 %v3469
    %v3838 = vpack.c.b16 %v3791, %v3790
    %v3839 = vpack.c.b16 %v3793, %v3792
    %v3840 = vpack.c.b16 %v3795, %v3794
    %v3841 = vpack.c.b16 %v3797, %v3796
    %v3842 = vpack.c.b16 %v3799, %v3798
    %v3843 = vpack.c.b16 %v3801, %v3800
    %v3844 = vpack.c.b16 %v3803, %v3802
    %v3845 = vpack.c.b16 %v3805, %v3804
    %v3846 = vpack.c.b16 %v3807, %v3806
    %v3847 = vpack.c.b16 %v3809, %v3808
    %v3848 = vpack.c.b16 %v3811, %v3810
    %v3849 = vpack.c.b16 %v3813, %v3812
    %v3850 = vpack.c.b16 %v3815, %v3814
    %v3851 = vpack.c.b16 %v3817, %v3816
    %v3852 = vpack.c.b16 %v3819, %v3818
    %v3853 = vpack.c.b16 %v3821, %v3820
    %v3854 = vpack.c.b16 %v3823, %v3822
    %v3855 = vpack.c.b16 %v3825, %v3824
    %v3856 = vpack.c.b16 %v3827, %v3826
    %v3857 = vpack.c.b16 %v3829, %v3828
    %v3858 = vpack.c.b16 %v3831, %v3830
    %v3859 = vpack.c.b16 %v3833, %v3832
    %v3860 = vpack.c.b16 %v3835, %v3834
    %v3861 = vpack.c.b16 %v3837, %v3836
    %3886 = vmatprep.subr.bf16.mxu0 0
    %3887 = vmatpush1.bf16.msra.mxu0 %v3838
    %3888 = vmatprep.subr.bf16.mxu0 0
    %3889 = vmatpush1.bf16.msra.mxu0 %v3839
    %3890 = vmatprep.subr.bf16.mxu0 0
    %3891 = vmatpush1.bf16.msra.mxu0 %v3840
    %3892 = vmatprep.subr.bf16.mxu0 0
    %3893 = vmatpush1.bf16.msra.mxu0 %v3841
    %3894 = vmatprep.subr.bf16.mxu0 0
    %3895 = vmatpush1.bf16.msra.mxu0 %v3842
    %3896 = vmatprep.subr.bf16.mxu0 0
    %3897 = vmatpush1.bf16.msra.mxu0 %v3843
    %3898 = vmatprep.subr.bf16.mxu0 0
    %3899 = vmatpush1.bf16.msra.mxu0 %v3844
    %3900 = vmatprep.subr.bf16.mxu0 0
    %3901 = vmatpush1.bf16.msra.mxu0 %v3845
    %3902 = vmatprep.subr.bf16.mxu0 0
    %3903 = vmatpush1.bf16.msra.mxu0 %v3846
    %3904 = vmatprep.subr.bf16.mxu0 0
    %3905 = vmatpush1.bf16.msra.mxu0 %v3847
    %3906 = vmatprep.subr.bf16.mxu0 0
    %3907 = vmatpush1.bf16.msra.mxu0 %v3848
    %3908 = vmatprep.subr.bf16.mxu0 0
    %3909 = vmatpush1.bf16.msra.mxu0 %v3849
    %3910 = vmatprep.subr.bf16.mxu0 0
    %3911 = vmatpush1.bf16.msra.mxu0 %v3850
    %3912 = vmatprep.subr.bf16.mxu0 0
    %3913 = vmatpush1.bf16.msra.mxu0 %v3851
    %3914 = vmatprep.subr.bf16.mxu0 0
    %3915 = vmatpush1.bf16.msra.mxu0 %v3852
    %3916 = vmatprep.subr.bf16.mxu0 0
    %3917 = vmatpush1.bf16.msra.mxu0 %v3853
    %3918 = vmatprep.mubr.bf16.mxu0 %v1940
    %3919 = vmatmul.mubr.bf16.gmra.mrb[0].mxu0 %v1939
    %v3920 = vpop.f32.mrb[0].mxu0
    %v3921 = vadd.f32 %v3737, %v3920
    %v3922 = vpop.f32.mrb[0].mxu0
    %v3923 = vpop.f32.mrb[0].mxu0
    %v3924 = vpop.f32.mrb[0].mxu0
    %3925 = vdwg.mxu0
    %3926 = vmatprep.subr.bf16.mxu0 0
    %3927 = vmatpush1.bf16.msra.mxu0 %v3854
    %3928 = vmatprep.subr.bf16.mxu0 0
    %3929 = vmatpush1.bf16.msra.mxu0 %v3855
    %3930 = vmatprep.subr.bf16.mxu0 0
    %3931 = vmatpush1.bf16.msra.mxu0 %v3856
    %3932 = vmatprep.subr.bf16.mxu0 0
    %3933 = vmatpush1.bf16.msra.mxu0 %v3857
    %3934 = vmatprep.subr.bf16.mxu0 0
    %3935 = vmatpush1.bf16.msra.mxu0 %v3858
    %3936 = vmatprep.subr.bf16.mxu0 0
    %3937 = vmatpush1.bf16.msra.mxu0 %v3859
    %3938 = vmatprep.subr.bf16.mxu0 0
    %3939 = vmatpush1.bf16.msra.mxu0 %v3860
    %3940 = vmatprep.subr.bf16.mxu0 0
    %3941 = vmatpush1.bf16.msra.mxu0 %v3861
    %3942 = vmatprep.subr.bf16.mxu0 0
    %3943 = vmatpush1.bf16.msra.mxu0 0
    %3944 = vmatprep.subr.bf16.mxu0 0
    %3945 = vmatpush1.bf16.msra.mxu0 0
    %3946 = vmatprep.subr.bf16.mxu0 0
    %3947 = vmatpush1.bf16.msra.mxu0 0
    %3948 = vmatprep.subr.bf16.mxu0 0
    %3949 = vmatpush1.bf16.msra.mxu0 0
    %3950 = vmatprep.subr.bf16.mxu0 0
    %3951 = vmatpush1.bf16.msra.mxu0 0
    %3952 = vmatprep.subr.bf16.mxu0 0
    %3953 = vmatpush1.bf16.msra.mxu0 0
    %3954 = vmatprep.subr.bf16.mxu0 0
    %3955 = vmatpush1.bf16.msra.mxu0 0
    %3956 = vmatprep.subr.bf16.mxu0 0
    %3957 = vmatpush1.bf16.msra.mxu0 0
    %3958 = vmatprep.mubr.bf16.mxu0 0
    %3959 = vmatmul.mubr.bf16.gmra.mrb[0].mxu0 %v1941
    %v3960 = vpop.f32.mrb[0].mxu0
    %v3961 = vadd.f32 %v3921, %v3960
    %v3962 = vpop.f32.mrb[0].mxu0
    %v3963 = vpop.f32.mrb[0].mxu0
    %v3964 = vpop.f32.mrb[0].mxu0
    %3965 = vdwg.mxu0
    %v3966 = vlaneseq
    %v3967 = vshrl.u32 %v3966, 7
    %v3968 = vsub.s32 5, %v3967
    %v3969 = vrot.slane %v142, %v3968
    %v3970 = vadd.f32 %v3961, %v3969
    %3971 = vst [vmem:[%s9] sm:$0xff] %v3970
    // Predicated region
    $region70: #{critic_forward.1} parent=1 // pred_check
      _
    $region71: #{critic_forward.1} parent=1 // pred_check_branch
      %3973 = sbr.rel (0) target = $region73
    $region72: #{critic_forward.1} parent=1 // pred_region
      _
    $region73: #{critic_forward.1} parent=1 // pred_fallthru
      _
    // Predicated region
    $region74: #{critic_forward.1} parent=1 // pred_check
      _
    $region75: #{critic_forward.1} parent=1 // pred_check_branch
      %3975 = sbr.rel (0) target = $region77
    $region76: #{critic_forward.1} parent=1 // pred_region
      _
    $region77: #{critic_forward.1} parent=1 // pred_fallthru
      _
    %3976 = vsyncpa [#allocation3], 1
    %3977 = vsyncpa [#allocation5], 1
    %3978 = vsyncpa [#allocation8], 1
    %3979 = vsyncpa [#allocation11], 1
    %3980 = vsyncpa [#allocation14], 1

</llo_original>
